<compile_context>
chip_gen: v7x
topology: tpu7x:2x2x1
jax: 0.10.0
libtpu: 0.0.40
codegen_flags: <defaults>
</compile_context>

<pallas_src>
import functools

import jax
import jax.numpy as jnp
from jax import lax
from jax.experimental import pallas as pl
from jax.experimental.pallas import tpu as pltpu

BN_EPS = 1e-5


def _round_up(x, m):
    return (x + m - 1) // m * m


def _pick_row_tile(h, wp, target_rows):
    """Largest divisor of h whose tile (rows * wp) stays <= target_rows."""
    best = 1
    for d in range(1, h + 1):
        if h % d == 0 and d * wp <= target_rows:
            best = d
    return best


@functools.partial(jax.jit,
                   static_argnames=("row_tile_conv", "row_tile_post", "mxu_dtype"))
def acblock_forward(x_nchw, params, *, row_tile_conv=None, row_tile_post=None,
                    mxu_dtype=jnp.bfloat16):
    n, cin, h, w = x_nchw.shape
    cout = params["w_square"].shape[0]
    wp = _round_up(w + 2, 8)                      # padded, sublane-aligned working width

    # kernel-1 tiles target m >= 256 rows for MXU M-amortization; kernel 2 is purely
    # memory-bound so its (decoupled) tiles are pushed larger.
    th1 = row_tile_conv if row_tile_conv is not None else _pick_row_tile(h, wp, 2048)
    th2 = row_tile_post if row_tile_post is not None else _pick_row_tile(h, wp, 8192)
    assert h % th1 == 0 and h % th2 == 0, "row tiles must divide H"
    t1, t2 = h // th1, h // th2
    m1, m2 = th1 * wp, th2 * wp
    halo = (th1 + 3) * wp                         # rows per conv tile incl. halo rows

    # ------------- XLA-side layout prep (single fused pass over the input) -------------
    x = jnp.transpose(x_nchw, (0, 2, 3, 1)).astype(jnp.float32)          # NHWC
    # rows: 1 top + 2 bottom pad; cols: 1 left pad + (wp - w - 1) right (1 conv + align).
    xp = jnp.pad(x, ((0, 0), (1, 2), (1, wp - w - 1), (0, 0)))           # (n, h+3, wp, cin)
    row_ids = jnp.arange(t1)[:, None] * th1 + jnp.arange(th1 + 3)[None, :]
    xtiles = xp[:, row_ids].reshape(n, t1, halo, cin)                    # halo'd row tiles

    # merged per-tap weights: K = 9*cin (tap-major, cin-minor), one matrix per branch.
    w_sq = jnp.transpose(params["w_square"], (2, 3, 1, 0))               # (dy,dx,cin,cout)
    w_v = jnp.transpose(params["w_ver"][:, :, :, 0], (2, 1, 0))          # (dy,cin,cout)
    w_h = jnp.transpose(params["w_hor"][:, :, 0, :], (2, 1, 0))          # (dx,cin,cout)
    w_ver_full = jnp.zeros((3, 3, cin, cout), jnp.float32).at[:, 1].set(w_v)
    w_hor_full = jnp.zeros((3, 3, cin, cout), jnp.float32).at[1, :].set(w_h)
    w_all = jnp.stack([w_sq, w_ver_full, w_hor_full], 0)
    w_all = w_all.reshape(3, 9 * cin, cout).astype(mxu_dtype)            # (3, 9cin, cout)

    # (8, m1) column mask (1 = real column, 0 = pad column), row-replicated so the BN
    # partial statistics become layout-friendly MXU matmuls instead of XLU reductions.
    mask = ((jnp.arange(m1) % wp) < w).astype(jnp.float32)
    mask = jnp.broadcast_to(mask[None, :], (8, m1))

    # ------------- kernel 1: 3-branch conv + per-(batch, tile) BN partial stats --------
    def conv_kernel(xt_ref, w_ref, mask_ref, conv_ref, stats_ref):
        # Nine tap views read directly off the resident tile ref at static offsets and
        # K-merged into a single (m1, 9*cin) lhs (one matmul per branch, no acc RMW chain).
        lhs = jnp.concatenate(
            [xt_ref[0, 0, pl.ds(dy * wp + dx, m1), :]
             for dy in range(3) for dx in range(3)],
            axis=-1).astype(mxu_dtype)                                   # (m1, 9*cin)
        mrow = mask_ref[...]                                             # (8, m1) f32
        sums, sqs = [], []
        for j in range(3):                                               # square, ver, hor
            y = jnp.dot(lhs, w_ref[j], preferred_element_type=jnp.float32)   # (m1, cout)
            conv_ref[0, j] = y
            sums.append(jnp.dot(mrow, y, preferred_element_type=jnp.float32)[0:1])
            sqs.append(jnp.dot(mrow, y * y, preferred_element_type=jnp.float32)[0:1])
        stats_ref[0, 0] = jnp.concatenate(sums + sqs, axis=0)            # (6, cout)

    itm = jnp.dtype(mxu_dtype).itemsize
    step1 = (halo * cin * 4 + 3 * 9 * cin * cout * itm + 8 * m1 * 4
             + m1 * 9 * cin * itm + 6 * m1 * cout * 4 + 6 * cout * 4)
    vmem1 = int(min(64 * 2 ** 20, max(16 * 2 ** 20, 3 * step1)))

    conv_out, stats = pl.pallas_call(
        conv_kernel,
        out_shape=(jax.ShapeDtypeStruct((n, 3, h * wp, cout), jnp.float32),
                   jax.ShapeDtypeStruct((n, t1, 6, cout), jnp.float32)),
        grid_spec=pltpu.PrefetchScalarGridSpec(
            num_scalar_prefetch=0,
            grid=(n, t1),
            in_specs=[
                pl.BlockSpec((1, 1, halo, cin), lambda b, t: (b, t, 0, 0)),
                pl.BlockSpec((3, 9 * cin, cout), lambda b, t: (0, 0, 0)),
                pl.BlockSpec((8, m1), lambda b, t: (0, 0)),
            ],
            out_specs=(
                pl.BlockSpec((1, 3, m1, cout), lambda b, t: (b, 0, t, 0)),
                pl.BlockSpec((1, 1, 6, cout), lambda b, t: (b, t, 0, 0)),
            )),
        compiler_params=pltpu.CompilerParams(
            dimension_semantics=("parallel", "parallel"),
            vmem_limit_bytes=vmem1),
    )(xtiles, w_all, mask)

    # ------------- fold training-mode BN into per-branch scale + one summed bias -------
    st = stats.sum(axis=(0, 1))                                          # (6, cout)
    cnt = jnp.float32(n * h * w)
    mean = st[0:3] / cnt                                                 # (3, cout)
    var = st[3:6] / cnt - mean * mean                                    # biased variance
    # TODO(synk): E[x^2]-E[x]^2 from f32 partials is fine at these scales; switch to a
    #             shifted/Welford accumulation if N*H*W gets very large.
    gamma = jnp.stack([params["bn_square_gamma"], params["bn_ver_gamma"],
                       params["bn_hor_gamma"]])
    beta = jnp.stack([params["bn_square_beta"], params["bn_ver_beta"],
                      params["bn_hor_beta"]])
    scale = gamma * lax.rsqrt(var + BN_EPS)                              # (3, cout)
    bias_total = jnp.sum(beta - mean * scale, axis=0)                    # (cout,)

    # Metadata-only reshape onto the (row, padded-col) grid; no extra HBM pass.
    conv5 = conv_out.reshape(n, 3, h, wp, cout)

    # ------------- kernel 2: BN scale, branch sum, bias, ReLU, pad-column crop ---------
    def bn_add_relu_kernel(conv_ref, scale_ref, bias_ref, out_ref):
        z = (conv_ref[0, 0] * scale_ref[0]
             + conv_ref[0, 1] * scale_ref[1]
             + conv_ref[0, 2] * scale_ref[2]
             + bias_ref[...])                                            # (th2, wp, cout)
        out_ref[0] = jnp.maximum(z[:, :w, :], 0.0)                       # crop pad columns

    step2 = 3 * m2 * cout * 4 + m2 * cout * 4 + th2 * w * cout * 4 + 8 * cout * 4
    vmem2 = int(min(64 * 2 ** 20, max(16 * 2 ** 20, 3 * step2)))

    out_nhwc = pl.pallas_call(
        bn_add_relu_kernel,
        out_shape=jax.ShapeDtypeStruct((n, h, w, cout), jnp.float32),
        grid_spec=pltpu.PrefetchScalarGridSpec(
            num_scalar_prefetch=0,
            grid=(n, t2),
            in_specs=[
                pl.BlockSpec((1, 3, th2, wp, cout), lambda b, t: (b, 0, t, 0, 0)),
                pl.BlockSpec((3, 1, 1, cout), lambda b, t: (0, 0, 0, 0)),
                pl.BlockSpec((1, 1, cout), lambda b, t: (0, 0, 0)),
            ],
            out_specs=pl.BlockSpec((1, th2, w, cout), lambda b, t: (b, t, 0, 0))),
        compiler_params=pltpu.CompilerParams(
            dimension_semantics=("parallel", "parallel"),
            vmem_limit_bytes=vmem2),
    )(conv5, scale.reshape(3, 1, 1, cout), bias_total.reshape(1, 1, cout))

    # TODO(synk): NHWC consumers could take out_nhwc directly and skip this transpose pass.
    return jnp.transpose(out_nhwc, (0, 3, 1, 2))                         # NCHW


def acblock_reference(x_nchw, params):
    """Pure-JAX (XLA conv) reference matching the PyTorch forward in training mode."""
    dn = ("NCHW", "OIHW", "NCHW")
    sq = lax.conv_general_dilated(x_nchw, params["w_square"], (1, 1),
                                  ((1, 1), (1, 1)), dimension_numbers=dn)
    ver = lax.conv_general_dilated(x_nchw, params["w_ver"], (1, 1),
                                   ((1, 1), (0, 0)), dimension_numbers=dn)
    hor = lax.conv_general_dilated(x_nchw, params["w_hor"], (1, 1),
                                   ((0, 0), (1, 1)), dimension_numbers=dn)

    def bn(y, g, b):
        mean = jnp.mean(y, axis=(0, 2, 3), keepdims=True)
        var = jnp.var(y, axis=(0, 2, 3), keepdims=True)   # biased, as PyTorch BN
        return ((y - mean) * lax.rsqrt(var + BN_EPS) * g[None, :, None, None]
                + b[None, :, None, None])

    y = (bn(sq, params["bn_square_gamma"], params["bn_square_beta"])
         + bn(ver, params["bn_ver_gamma"], params["bn_ver_beta"])
         + bn(hor, params["bn_hor_gamma"], params["bn_hor_beta"]))
    return jnp.maximum(y, 0.0)


if __name__ == "__main__":
    N, CIN, COUT, H, W = 2, 4, 8, 16, 16
    key = jax.random.PRNGKey(0)
    keys = jax.random.split(key, 10)

    x = jax.random.normal(keys[0], (N, CIN, H, W), jnp.float32)
    params = {
        # Conv weights in PyTorch OIHW layout (bias=False for all three convs).
        "w_square": 0.1 * jax.random.normal(keys[1], (COUT, CIN, 3, 3), jnp.float32),
        "w_ver":    0.1 * jax.random.normal(keys[2], (COUT, CIN, 3, 1), jnp.float32),
        "w_hor":    0.1 * jax.random.normal(keys[3], (COUT, CIN, 1, 3), jnp.float32),
        # BatchNorm affine parameters (deterministic, non-trivial).
        "bn_square_gamma": 1.0 + 0.1 * jax.random.normal(keys[4], (COUT,), jnp.float32),
        "bn_square_beta":  0.1 * jax.random.normal(keys[5], (COUT,), jnp.float32),
        "bn_ver_gamma":    1.0 + 0.1 * jax.random.normal(keys[6], (COUT,), jnp.float32),
        "bn_ver_beta":     0.1 * jax.random.normal(keys[7], (COUT,), jnp.float32),
        "bn_hor_gamma":    1.0 + 0.1 * jax.random.normal(keys[8], (COUT,), jnp.float32),
        "bn_hor_beta":     0.1 * jax.random.normal(keys[9], (COUT,), jnp.float32),
    }

    ref = jax.block_until_ready(acblock_reference(x, params))

    # Exact-path check: f32 MXU operands vs the pure-XLA f32 reference (tight tolerance).
    out_f32 = jax.block_until_ready(acblock_forward(x, params, mxu_dtype=jnp.float32))
    assert out_f32.shape == (N, COUT, H, W), out_f32.shape
    if not jnp.allclose(out_f32, ref, atol=1e-3, rtol=1e-3):
        raise AssertionError(
            f"f32 path mismatch, max abs err = {jnp.max(jnp.abs(out_f32 - ref))}")

    # Default fast path: bf16 MXU operands (f32 accumulation, f32 HBM intermediates).
    # Tolerance reflects bf16 operand quantization (~2^-9 relative) through the BN fold.
    out = jax.block_until_ready(acblock_forward(x, params))
    assert out.shape == (N, COUT, H, W), out.shape
    if not jnp.allclose(out, ref, atol=2e-2, rtol=2e-2):
        raise AssertionError(
            f"bf16 path mismatch, max abs err = {jnp.max(jnp.abs(out - ref))}")

    print("KERNEL_OK")
</pallas_src>

<mosaic_0001>
module attributes {stable_mosaic.version = 11 : i64} {
  func.func @conv_kernel(%arg0: i32, %arg1: i32, %arg2: memref<1x1x456x4xf32, #tpu.memory_space<vmem>>, %arg3: memref<3x36x8xf32, #tpu.memory_space<vmem>>, %arg4: memref<8x384xf32, #tpu.memory_space<vmem>>, %arg5: memref<1x3x384x8xf32, #tpu.memory_space<vmem>>, %arg6: memref<1x1x6x8xf32, #tpu.memory_space<vmem>>) attributes {dimension_semantics = [#tpu.dimension_semantics<parallel>, #tpu.dimension_semantics<parallel>], iteration_bounds = array<i64: 2, 1>, scalar_prefetch = 0 : i64, scratch_operands = 0 : i64, tpu.core_type = #tpu.core_type<tc>, window_params = [{transform_indices = @transform_0, window_bounds = array<i64: 1, 1, 456, 4>}, {pipeline_mode = #tpu.pipeline_mode<synchronous>, transform_indices = @transform_1, window_bounds = array<i64: 3, 36, 8>}, {pipeline_mode = #tpu.pipeline_mode<synchronous>, transform_indices = @transform_2, window_bounds = array<i64: 8, 384>}, {transform_indices = @transform_3, window_bounds = array<i64: 1, 3, 384, 8>}, {transform_indices = @transform_4, window_bounds = array<i64: 1, 1, 6, 8>}]} {
    %c0 = arith.constant 0 : index
    %c0_0 = arith.constant 0 : index
    %c0_1 = arith.constant 0 : index
    %c0_2 = arith.constant 0 : index
    %0 = vector.load %arg2[%c0, %c0_0, %c0_1, %c0_2] : memref<1x1x456x4xf32, #tpu.memory_space<vmem>>, vector<1x1x384x4xf32>
    %1 = vector.shape_cast %0 : vector<1x1x384x4xf32> to vector<384x4xf32>
    %c0_3 = arith.constant 0 : index
    %c0_4 = arith.constant 0 : index
    %c1 = arith.constant 1 : index
    %c0_5 = arith.constant 0 : index
    %2 = vector.load %arg2[%c0_3, %c0_4, %c1, %c0_5] : memref<1x1x456x4xf32, #tpu.memory_space<vmem>>, vector<1x1x384x4xf32>
    %3 = vector.shape_cast %2 : vector<1x1x384x4xf32> to vector<384x4xf32>
    %c0_6 = arith.constant 0 : index
    %c0_7 = arith.constant 0 : index
    %c2 = arith.constant 2 : index
    %c0_8 = arith.constant 0 : index
    %4 = vector.load %arg2[%c0_6, %c0_7, %c2, %c0_8] : memref<1x1x456x4xf32, #tpu.memory_space<vmem>>, vector<1x1x384x4xf32>
    %5 = vector.shape_cast %4 : vector<1x1x384x4xf32> to vector<384x4xf32>
    %c0_9 = arith.constant 0 : index
    %c0_10 = arith.constant 0 : index
    %c24 = arith.constant 24 : index
    %c0_11 = arith.constant 0 : index
    %6 = vector.load %arg2[%c0_9, %c0_10, %c24, %c0_11] : memref<1x1x456x4xf32, #tpu.memory_space<vmem>>, vector<1x1x384x4xf32>
    %7 = vector.shape_cast %6 : vector<1x1x384x4xf32> to vector<384x4xf32>
    %c0_12 = arith.constant 0 : index
    %c0_13 = arith.constant 0 : index
    %c25 = arith.constant 25 : index
    %c0_14 = arith.constant 0 : index
    %8 = vector.load %arg2[%c0_12, %c0_13, %c25, %c0_14] : memref<1x1x456x4xf32, #tpu.memory_space<vmem>>, vector<1x1x384x4xf32>
    %9 = vector.shape_cast %8 : vector<1x1x384x4xf32> to vector<384x4xf32>
    %c0_15 = arith.constant 0 : index
    %c0_16 = arith.constant 0 : index
    %c26 = arith.constant 26 : index
    %c0_17 = arith.constant 0 : index
    %10 = vector.load %arg2[%c0_15, %c0_16, %c26, %c0_17] : memref<1x1x456x4xf32, #tpu.memory_space<vmem>>, vector<1x1x384x4xf32>
    %11 = vector.shape_cast %10 : vector<1x1x384x4xf32> to vector<384x4xf32>
    %c0_18 = arith.constant 0 : index
    %c0_19 = arith.constant 0 : index
    %c48 = arith.constant 48 : index
    %c0_20 = arith.constant 0 : index
    %12 = vector.load %arg2[%c0_18, %c0_19, %c48, %c0_20] : memref<1x1x456x4xf32, #tpu.memory_space<vmem>>, vector<1x1x384x4xf32>
    %13 = vector.shape_cast %12 : vector<1x1x384x4xf32> to vector<384x4xf32>
    %c0_21 = arith.constant 0 : index
    %c0_22 = arith.constant 0 : index
    %c49 = arith.constant 49 : index
    %c0_23 = arith.constant 0 : index
    %14 = vector.load %arg2[%c0_21, %c0_22, %c49, %c0_23] : memref<1x1x456x4xf32, #tpu.memory_space<vmem>>, vector<1x1x384x4xf32>
    %15 = vector.shape_cast %14 : vector<1x1x384x4xf32> to vector<384x4xf32>
    %c0_24 = arith.constant 0 : index
    %c0_25 = arith.constant 0 : index
    %c50 = arith.constant 50 : index
    %c0_26 = arith.constant 0 : index
    %16 = vector.load %arg2[%c0_24, %c0_25, %c50, %c0_26] : memref<1x1x456x4xf32, #tpu.memory_space<vmem>>, vector<1x1x384x4xf32>
    %17 = vector.shape_cast %16 : vector<1x1x384x4xf32> to vector<384x4xf32>
    %18 = tpu.concatenate %1, %3, %5, %7, %9, %11, %13, %15, %17 in 1 : vector<384x4xf32>, vector<384x4xf32>, vector<384x4xf32>, vector<384x4xf32>, vector<384x4xf32>, vector<384x4xf32>, vector<384x4xf32>, vector<384x4xf32>, vector<384x4xf32> -> vector<384x36xf32>
    %c0_27 = arith.constant 0 : index
    %c0_28 = arith.constant 0 : index
    %19 = vector.load %arg4[%c0_27, %c0_28] : memref<8x384xf32, #tpu.memory_space<vmem>>, vector<8x384xf32>
    %c0_29 = arith.constant 0 : index
    %c0_30 = arith.constant 0 : index
    %c0_31 = arith.constant 0 : index
    %20 = vector.load %arg3[%c0_29, %c0_30, %c0_31] : memref<3x36x8xf32, #tpu.memory_space<vmem>>, vector<1x36x8xf32>
    %21 = vector.shape_cast %20 : vector<1x36x8xf32> to vector<36x8xf32>
    %cst = arith.constant dense<0.000000e+00> : vector<384x8xf32>
    %22 = tpu.matmul %18, %21, %cst {dimension_numbers = #tpu.dot_dimension_numbers<[1], [0], [0], [1], [0, 0, 1, 1], [], []>} : vector<384x36xf32>, vector<36x8xf32>, vector<384x8xf32> -> vector<384x8xf32>
    %c0_32 = arith.constant 0 : index
    %c0_33 = arith.constant 0 : index
    %c0_34 = arith.constant 0 : index
    %c0_35 = arith.constant 0 : index
    %23 = vector.load %arg5[%c0_32, %c0_33, %c0_34, %c0_35] : memref<1x3x384x8xf32, #tpu.memory_space<vmem>>, vector<1x1x384x8xf32>
    %24 = vector.shape_cast %23 : vector<1x1x384x8xf32> to vector<384x8xf32>
    %25 = vector.shape_cast %22 : vector<384x8xf32> to vector<1x1x384x8xf32>
    tpu.vector_store %arg5[%c0_32, %c0_33, %c0_34, %c0_35], %25 {strides = array<i32>} : memref<1x3x384x8xf32, #tpu.memory_space<vmem>>, vector<1x1x384x8xf32>,
    %cst_36 = arith.constant dense<0.000000e+00> : vector<8x8xf32>
    %26 = tpu.matmul %19, %22, %cst_36 {dimension_numbers = #tpu.dot_dimension_numbers<[1], [0], [0], [1], [0, 0, 1, 1], [], []>} : vector<8x384xf32>, vector<384x8xf32>, vector<8x8xf32> -> vector<8x8xf32>
    %27 = vector.extract_strided_slice %26 {offsets = [0, 0], sizes = [1, 8], strides = [1, 1]} : vector<8x8xf32> to vector<1x8xf32>
    %28 = arith.mulf %22, %22 : vector<384x8xf32>
    %cst_37 = arith.constant dense<0.000000e+00> : vector<8x8xf32>
    %29 = tpu.matmul %19, %28, %cst_37 {dimension_numbers = #tpu.dot_dimension_numbers<[1], [0], [0], [1], [0, 0, 1, 1], [], []>} : vector<8x384xf32>, vector<384x8xf32>, vector<8x8xf32> -> vector<8x8xf32>
    %30 = vector.extract_strided_slice %29 {offsets = [0, 0], sizes = [1, 8], strides = [1, 1]} : vector<8x8xf32> to vector<1x8xf32>
    %c1_38 = arith.constant 1 : index
    %c0_39 = arith.constant 0 : index
    %c0_40 = arith.constant 0 : index
    %31 = vector.load %arg3[%c1_38, %c0_39, %c0_40] : memref<3x36x8xf32, #tpu.memory_space<vmem>>, vector<1x36x8xf32>
    %32 = vector.shape_cast %31 : vector<1x36x8xf32> to vector<36x8xf32>
    %cst_41 = arith.constant dense<0.000000e+00> : vector<384x8xf32>
    %33 = tpu.matmul %18, %32, %cst_41 {dimension_numbers = #tpu.dot_dimension_numbers<[1], [0], [0], [1], [0, 0, 1, 1], [], []>} : vector<384x36xf32>, vector<36x8xf32>, vector<384x8xf32> -> vector<384x8xf32>
    %c0_42 = arith.constant 0 : index
    %c1_43 = arith.constant 1 : index
    %c0_44 = arith.constant 0 : index
    %c0_45 = arith.constant 0 : index
    %34 = vector.load %arg5[%c0_42, %c1_43, %c0_44, %c0_45] : memref<1x3x384x8xf32, #tpu.memory_space<vmem>>, vector<1x1x384x8xf32>
    %35 = vector.shape_cast %34 : vector<1x1x384x8xf32> to vector<384x8xf32>
    %36 = vector.shape_cast %33 : vector<384x8xf32> to vector<1x1x384x8xf32>
    tpu.vector_store %arg5[%c0_42, %c1_43, %c0_44, %c0_45], %36 {strides = array<i32>} : memref<1x3x384x8xf32, #tpu.memory_space<vmem>>, vector<1x1x384x8xf32>,
    %cst_46 = arith.constant dense<0.000000e+00> : vector<8x8xf32>
    %37 = tpu.matmul %19, %33, %cst_46 {dimension_numbers = #tpu.dot_dimension_numbers<[1], [0], [0], [1], [0, 0, 1, 1], [], []>} : vector<8x384xf32>, vector<384x8xf32>, vector<8x8xf32> -> vector<8x8xf32>
    %38 = vector.extract_strided_slice %37 {offsets = [0, 0], sizes = [1, 8], strides = [1, 1]} : vector<8x8xf32> to vector<1x8xf32>
    %39 = arith.mulf %33, %33 : vector<384x8xf32>
    %cst_47 = arith.constant dense<0.000000e+00> : vector<8x8xf32>
    %40 = tpu.matmul %19, %39, %cst_47 {dimension_numbers = #tpu.dot_dimension_numbers<[1], [0], [0], [1], [0, 0, 1, 1], [], []>} : vector<8x384xf32>, vector<384x8xf32>, vector<8x8xf32> -> vector<8x8xf32>
    %41 = vector.extract_strided_slice %40 {offsets = [0, 0], sizes = [1, 8], strides = [1, 1]} : vector<8x8xf32> to vector<1x8xf32>
    %c2_48 = arith.constant 2 : index
    %c0_49 = arith.constant 0 : index
    %c0_50 = arith.constant 0 : index
    %42 = vector.load %arg3[%c2_48, %c0_49, %c0_50] : memref<3x36x8xf32, #tpu.memory_space<vmem>>, vector<1x36x8xf32>
    %43 = vector.shape_cast %42 : vector<1x36x8xf32> to vector<36x8xf32>
    %cst_51 = arith.constant dense<0.000000e+00> : vector<384x8xf32>
    %44 = tpu.matmul %18, %43, %cst_51 {dimension_numbers = #tpu.dot_dimension_numbers<[1], [0], [0], [1], [0, 0, 1, 1], [], []>} : vector<384x36xf32>, vector<36x8xf32>, vector<384x8xf32> -> vector<384x8xf32>
    %c0_52 = arith.constant 0 : index
    %c2_53 = arith.constant 2 : index
    %c0_54 = arith.constant 0 : index
    %c0_55 = arith.constant 0 : index
    %45 = vector.load %arg5[%c0_52, %c2_53, %c0_54, %c0_55] : memref<1x3x384x8xf32, #tpu.memory_space<vmem>>, vector<1x1x384x8xf32>
    %46 = vector.shape_cast %45 : vector<1x1x384x8xf32> to vector<384x8xf32>
    %47 = vector.shape_cast %44 : vector<384x8xf32> to vector<1x1x384x8xf32>
    tpu.vector_store %arg5[%c0_52, %c2_53, %c0_54, %c0_55], %47 {strides = array<i32>} : memref<1x3x384x8xf32, #tpu.memory_space<vmem>>, vector<1x1x384x8xf32>,
    %cst_56 = arith.constant dense<0.000000e+00> : vector<8x8xf32>
    %48 = tpu.matmul %19, %44, %cst_56 {dimension_numbers = #tpu.dot_dimension_numbers<[1], [0], [0], [1], [0, 0, 1, 1], [], []>} : vector<8x384xf32>, vector<384x8xf32>, vector<8x8xf32> -> vector<8x8xf32>
    %49 = vector.extract_strided_slice %48 {offsets = [0, 0], sizes = [1, 8], strides = [1, 1]} : vector<8x8xf32> to vector<1x8xf32>
    %50 = arith.mulf %44, %44 : vector<384x8xf32>
    %cst_57 = arith.constant dense<0.000000e+00> : vector<8x8xf32>
    %51 = tpu.matmul %19, %50, %cst_57 {dimension_numbers = #tpu.dot_dimension_numbers<[1], [0], [0], [1], [0, 0, 1, 1], [], []>} : vector<8x384xf32>, vector<384x8xf32>, vector<8x8xf32> -> vector<8x8xf32>
    %52 = vector.extract_strided_slice %51 {offsets = [0, 0], sizes = [1, 8], strides = [1, 1]} : vector<8x8xf32> to vector<1x8xf32>
    %53 = tpu.concatenate %27, %38, %49, %30, %41, %52 in 0 : vector<1x8xf32>, vector<1x8xf32>, vector<1x8xf32>, vector<1x8xf32>, vector<1x8xf32>, vector<1x8xf32> -> vector<6x8xf32>
    %c0_58 = arith.constant 0 : index
    %c0_59 = arith.constant 0 : index
    %c0_60 = arith.constant 0 : index
    %c0_61 = arith.constant 0 : index
    %54 = vector.load %arg6[%c0_58, %c0_59, %c0_60, %c0_61] : memref<1x1x6x8xf32, #tpu.memory_space<vmem>>, vector<1x1x6x8xf32>
    %55 = vector.shape_cast %54 : vector<1x1x6x8xf32> to vector<6x8xf32>
    %56 = vector.shape_cast %53 : vector<6x8xf32> to vector<1x1x6x8xf32>
    tpu.vector_store %arg6[%c0_58, %c0_59, %c0_60, %c0_61], %56 {strides = array<i32>} : memref<1x1x6x8xf32, #tpu.memory_space<vmem>>, vector<1x1x6x8xf32>,
    return
  }
  func.func @transform_0(%arg0: i32, %arg1: i32) -> (i32, i32, i32, i32) {
    %c0_i32 = arith.constant 0 : i32
    %c0_i32_0 = arith.constant 0 : i32
    %c0_i32_1 = arith.constant 0 : i32
    return %arg0, %arg1, %c0_i32, %c0_i32_0 : i32, i32, i32, i32
  }
  func.func @transform_1(%arg0: i32, %arg1: i32) -> (i32, i32, i32) {
    %c0_i32 = arith.constant 0 : i32
    %c0_i32_0 = arith.constant 0 : i32
    %c0_i32_1 = arith.constant 0 : i32
    %c0_i32_2 = arith.constant 0 : i32
    return %c0_i32, %c0_i32_0, %c0_i32_1 : i32, i32, i32
  }
  func.func @transform_2(%arg0: i32, %arg1: i32) -> (i32, i32) {
    %c0_i32 = arith.constant 0 : i32
    %c0_i32_0 = arith.constant 0 : i32
    %c0_i32_1 = arith.constant 0 : i32
    return %c0_i32, %c0_i32_0 : i32, i32
  }
  func.func @transform_3(%arg0: i32, %arg1: i32) -> (i32, i32, i32, i32) {
    %c0_i32 = arith.constant 0 : i32
    %c0_i32_0 = arith.constant 0 : i32
    %c0_i32_1 = arith.constant 0 : i32
    return %arg0, %c0_i32, %arg1, %c0_i32_0 : i32, i32, i32, i32
  }
  func.func @transform_4(%arg0: i32, %arg1: i32) -> (i32, i32, i32, i32) {
    %c0_i32 = arith.constant 0 : i32
    %c0_i32_0 = arith.constant 0 : i32
    %c0_i32_1 = arith.constant 0 : i32
    return %arg0, %arg1, %c0_i32, %c0_i32_0 : i32, i32, i32, i32
  }
}

module attributes {stable_mosaic.version = 11 : i64} {
  func.func @bn_add_relu_kernel(%arg0: i32, %arg1: i32, %arg2: memref<1x3x16x24x8xf32, #tpu.memory_space<vmem>>, %arg3: memref<3x1x1x8xf32, #tpu.memory_space<vmem>>, %arg4: memref<1x1x8xf32, #tpu.memory_space<vmem>>, %arg5: memref<1x16x16x8xf32, #tpu.memory_space<vmem>>) attributes {dimension_semantics = [#tpu.dimension_semantics<parallel>, #tpu.dimension_semantics<parallel>], iteration_bounds = array<i64: 2, 1>, scalar_prefetch = 0 : i64, scratch_operands = 0 : i64, tpu.core_type = #tpu.core_type<tc>, window_params = [{transform_indices = @transform_0, window_bounds = array<i64: 1, 3, 16, 24, 8>}, {pipeline_mode = #tpu.pipeline_mode<synchronous>, transform_indices = @transform_1, window_bounds = array<i64: 3, 1, 1, 8>}, {pipeline_mode = #tpu.pipeline_mode<synchronous>, transform_indices = @transform_2, window_bounds = array<i64: 1, 1, 8>}, {transform_indices = @transform_3, window_bounds = array<i64: 1, 16, 16, 8>}]} {
    %c0 = arith.constant 0 : index
    %c0_0 = arith.constant 0 : index
    %c0_1 = arith.constant 0 : index
    %c0_2 = arith.constant 0 : index
    %c0_3 = arith.constant 0 : index
    %0 = vector.load %arg2[%c0, %c0_0, %c0_1, %c0_2, %c0_3] : memref<1x3x16x24x8xf32, #tpu.memory_space<vmem>>, vector<1x1x16x24x8xf32>
    %1 = vector.shape_cast %0 : vector<1x1x16x24x8xf32> to vector<16x24x8xf32>
    %c0_4 = arith.constant 0 : index
    %c0_5 = arith.constant 0 : index
    %c0_6 = arith.constant 0 : index
    %c0_7 = arith.constant 0 : index
    %2 = vector.load %arg3[%c0_4, %c0_5, %c0_6, %c0_7] : memref<3x1x1x8xf32, #tpu.memory_space<vmem>>, vector<1x1x1x8xf32>
    %3 = vector.shape_cast %2 : vector<1x1x1x8xf32> to vector<1x1x8xf32>
    %4 = vector.broadcast %3 : vector<1x1x8xf32> to vector<16x24x8xf32>
    %5 = arith.mulf %1, %4 : vector<16x24x8xf32>
    %c0_8 = arith.constant 0 : index
    %c1 = arith.constant 1 : index
    %c0_9 = arith.constant 0 : index
    %c0_10 = arith.constant 0 : index
    %c0_11 = arith.constant 0 : index
    %6 = vector.load %arg2[%c0_8, %c1, %c0_9, %c0_10, %c0_11] : memref<1x3x16x24x8xf32, #tpu.memory_space<vmem>>, vector<1x1x16x24x8xf32>
    %7 = vector.shape_cast %6 : vector<1x1x16x24x8xf32> to vector<16x24x8xf32>
    %c1_12 = arith.constant 1 : index
    %c0_13 = arith.constant 0 : index
    %c0_14 = arith.constant 0 : index
    %c0_15 = arith.constant 0 : index
    %8 = vector.load %arg3[%c1_12, %c0_13, %c0_14, %c0_15] : memref<3x1x1x8xf32, #tpu.memory_space<vmem>>, vector<1x1x1x8xf32>
    %9 = vector.shape_cast %8 : vector<1x1x1x8xf32> to vector<1x1x8xf32>
    %10 = vector.broadcast %9 : vector<1x1x8xf32> to vector<16x24x8xf32>
    %11 = arith.mulf %7, %10 : vector<16x24x8xf32>
    %12 = arith.addf %5, %11 : vector<16x24x8xf32>
    %c0_16 = arith.constant 0 : index
    %c2 = arith.constant 2 : index
    %c0_17 = arith.constant 0 : index
    %c0_18 = arith.constant 0 : index
    %c0_19 = arith.constant 0 : index
    %13 = vector.load %arg2[%c0_16, %c2, %c0_17, %c0_18, %c0_19] : memref<1x3x16x24x8xf32, #tpu.memory_space<vmem>>, vector<1x1x16x24x8xf32>
    %14 = vector.shape_cast %13 : vector<1x1x16x24x8xf32> to vector<16x24x8xf32>
    %c2_20 = arith.constant 2 : index
    %c0_21 = arith.constant 0 : index
    %c0_22 = arith.constant 0 : index
    %c0_23 = arith.constant 0 : index
    %15 = vector.load %arg3[%c2_20, %c0_21, %c0_22, %c0_23] : memref<3x1x1x8xf32, #tpu.memory_space<vmem>>, vector<1x1x1x8xf32>
    %16 = vector.shape_cast %15 : vector<1x1x1x8xf32> to vector<1x1x8xf32>
    %17 = vector.broadcast %16 : vector<1x1x8xf32> to vector<16x24x8xf32>
    %18 = arith.mulf %14, %17 : vector<16x24x8xf32>
    %19 = arith.addf %12, %18 : vector<16x24x8xf32>
    %c0_24 = arith.constant 0 : index
    %c0_25 = arith.constant 0 : index
    %c0_26 = arith.constant 0 : index
    %20 = vector.load %arg4[%c0_24, %c0_25, %c0_26] : memref<1x1x8xf32, #tpu.memory_space<vmem>>, vector<1x1x8xf32>
    %21 = vector.broadcast %20 : vector<1x1x8xf32> to vector<16x24x8xf32>
    %22 = arith.addf %19, %21 : vector<16x24x8xf32>
    %23 = vector.extract_strided_slice %22 {offsets = [0, 0, 0], sizes = [16, 16, 8], strides = [1, 1, 1]} : vector<16x24x8xf32> to vector<16x16x8xf32>
    %cst = arith.constant 0.000000e+00 : f32
    %24 = vector.broadcast %cst : f32 to vector<16x16x8xf32>
    %25 = arith.maximumf %23, %24 : vector<16x16x8xf32>
    %c0_27 = arith.constant 0 : index
    %c0_28 = arith.constant 0 : index
    %c0_29 = arith.constant 0 : index
    %c0_30 = arith.constant 0 : index
    %26 = vector.load %arg5[%c0_27, %c0_28, %c0_29, %c0_30] : memref<1x16x16x8xf32, #tpu.memory_space<vmem>>, vector<1x16x16x8xf32>
    %27 = vector.shape_cast %26 : vector<1x16x16x8xf32> to vector<16x16x8xf32>
    %28 = vector.shape_cast %25 : vector<16x16x8xf32> to vector<1x16x16x8xf32>
    tpu.vector_store %arg5[%c0_27, %c0_28, %c0_29, %c0_30], %28 {strides = array<i32>} : memref<1x16x16x8xf32, #tpu.memory_space<vmem>>, vector<1x16x16x8xf32>,
    return
  }
  func.func @transform_0(%arg0: i32, %arg1: i32) -> (i32, i32, i32, i32, i32) {
    %c0_i32 = arith.constant 0 : i32
    %c0_i32_0 = arith.constant 0 : i32
    %c0_i32_1 = arith.constant 0 : i32
    %c0_i32_2 = arith.constant 0 : i32
    return %arg0, %c0_i32, %arg1, %c0_i32_0, %c0_i32_1 : i32, i32, i32, i32, i32
  }
  func.func @transform_1(%arg0: i32, %arg1: i32) -> (i32, i32, i32, i32) {
    %c0_i32 = arith.constant 0 : i32
    %c0_i32_0 = arith.constant 0 : i32
    %c0_i32_1 = arith.constant 0 : i32
    %c0_i32_2 = arith.constant 0 : i32
    %c0_i32_3 = arith.constant 0 : i32
    return %c0_i32, %c0_i32_0, %c0_i32_1, %c0_i32_2 : i32, i32, i32, i32
  }
  func.func @transform_2(%arg0: i32, %arg1: i32) -> (i32, i32, i32) {
    %c0_i32 = arith.constant 0 : i32
    %c0_i32_0 = arith.constant 0 : i32
    %c0_i32_1 = arith.constant 0 : i32
    %c0_i32_2 = arith.constant 0 : i32
    return %c0_i32, %c0_i32_0, %c0_i32_1 : i32, i32, i32
  }
  func.func @transform_3(%arg0: i32, %arg1: i32) -> (i32, i32, i32, i32) {
    %c0_i32 = arith.constant 0 : i32
    %c0_i32_0 = arith.constant 0 : i32
    %c0_i32_1 = arith.constant 0 : i32
    return %arg0, %arg1, %c0_i32, %c0_i32_0 : i32, i32, i32, i32
  }
}

</mosaic_0001>

<llo_original>
// kernel: acblock_forward.3
$region0: #{acblock_forward.3}
  #allocation0 [shape = 'u32[]', space=smem, size = 0x4, offset = 0x4, fixed_abs, tag = 'smem constant byte address 0x4 - core index']
  #allocation1 [shape = 'u32[144,128]{1,0:T(1,128)}', space=vmem, size = 0x12000, scoped, tag = 'internal scratch']
  %s0 = inlined_call_operand.vmem [shape: f32[2,3,16,24,8], index: 0, kind: input, shape index: {}]
  %s1 = inlined_call_operand.vmem [shape: f32[3,1,1,8], index: 1, kind: input, shape index: {}]
  %s2 = inlined_call_operand.vmem [shape: f32[1,1,8], index: 2, kind: input, shape index: {}]
  %s3 = inlined_call_operand.vmem [shape: f32[2,16,16,8], index: 3, kind: output, shape index: {}]
  %s4 = sld [smem:[#allocation0]]
  $region45: #{acblock_forward.3} parent=0
    _
  %s6 = ssub.s32 1, %s4
  %s7 = scalar_select 0, %s6, %s4
  loop: start=0, step=1, limit=4
  $region2: #{acblock_forward.3} parent=0 // loop_pre_header
    _
  $region3: #{acblock_forward.3} parent=0 // loop_header
    %s9 = sphi 0, %s13
    %p10 = scmp.ge.s32.totalorder %s9, 4
    %s16 = sphi 0, %s28
    %s17 = sphi 0, %s24
    %s18 = sphi 0, %s16
    %s19 = sphi 0, %s17
    %s20 = sphi 0, %s18
    %s21 = sphi 0, %s19
    %s33 = sphi 0, %s35
    %s36 = sphi 0, %s33
    %s37 = sphi 0, %s36
    %s53 = sphi 0, %s37
    %s57 = sphi 0, %s57
    %s59 = sphi 0, %s57
    %s60 = sphi 0, %s59
    %s74 = sphi 0, %s60
    %s78 = sphi 0, %s78
    %s80 = sphi 0, %s78
    %s81 = sphi 0, %s80
    %s95 = sphi 0, %s81
    %s103 = sphi 0, %s105
    %s106 = sphi 0, %s103
    %s107 = sphi 0, %s106
    %s123 = sphi 0, %s107
  $region4: #{acblock_forward.3} parent=0 // loop_header_branch
    %12 = sbr.rel (%p10) target = $region8
  $region5: #{acblock_forward.3} parent=0 // loop_body
    %s14 = ssub.s32 %s9, 1
    %s15 = ssub.s32 %s9, 2
    %s22 = sadd.s32 1, %s17
    %p23 = scmp.ge.s32.totalorder %s22, 1
    %s24 = scalar_select %p23, 0, %s22
    %s25 = sadd.s32 1, %s16
    %s26 = scalar_select %p23, %s25, %s16
    %p27 = scmp.ge.s32.totalorder %s26, 2
    %s28 = scalar_select %p27, 0, %s26
    %s29 = ssub.s32 %s16, %s28
    %s30 = ssub.s32 %s17, %s24
    %s31 = sor.u32 %s29, %s30
    %p32 = scmp.eq.s32.totalorder %s31, 0
    %s34 = sadd.s32 %s33, 1
    %s35 = scalar_select %p32, %s33, %s34
    %p38 = pneg %p32
    %p39 = scmp.eq.s32.totalorder %s9, 1
    %p40 = por %p38, %p39
    %p41 = scmp.ne.s32.totalorder %s33, %s36
    %p42 = scmp.eq.s32.totalorder %s9, 0
    %p43 = por %p41, %p42
    %p44 = scmp.ne.s32.totalorder %s33, %s36
    %p45 = scmp.eq.s32.totalorder %s14, 1
    %p46 = por %p44, %p45
    %p47 = scmp.ne.s32.totalorder %s36, %s37
    %p48 = scmp.eq.s32.totalorder %s14, 0
    %p49 = por %p47, %p48
    %p50 = scmp.ne.s32.totalorder %s36, %s37
    %p51 = scmp.eq.s32.totalorder %s15, 1
    %p52 = por %p50, %p51
    %p54 = scmp.ne.s32.totalorder %s37, %s53
    %p55 = scmp.eq.s32.totalorder %s15, 0
    %p56 = por %p54, %p55
    %s58 = sadd.s32 %s57, 1
    %p61 = scmp.eq.s32.totalorder %s9, 1
    %p62 = scmp.ne.s32.totalorder %s57, %s59
    %p63 = scmp.eq.s32.totalorder %s9, 0
    %p64 = por %p62, %p63
    %p65 = scmp.ne.s32.totalorder %s57, %s59
    %p66 = scmp.eq.s32.totalorder %s14, 1
    %p67 = por %p65, %p66
    %p68 = scmp.ne.s32.totalorder %s59, %s60
    %p69 = scmp.eq.s32.totalorder %s14, 0
    %p70 = por %p68, %p69
    %p71 = scmp.ne.s32.totalorder %s59, %s60
    %p72 = scmp.eq.s32.totalorder %s15, 1
    %p73 = por %p71, %p72
    %p75 = scmp.ne.s32.totalorder %s60, %s74
    %p76 = scmp.eq.s32.totalorder %s15, 0
    %p77 = por %p75, %p76
    %s79 = sadd.s32 %s78, 1
    %p82 = scmp.eq.s32.totalorder %s9, 1
    %p83 = scmp.ne.s32.totalorder %s78, %s80
    %p84 = scmp.eq.s32.totalorder %s9, 0
    %p85 = por %p83, %p84
    %p86 = scmp.ne.s32.totalorder %s78, %s80
    %p87 = scmp.eq.s32.totalorder %s14, 1
    %p88 = por %p86, %p87
    %p89 = scmp.ne.s32.totalorder %s80, %s81
    %p90 = scmp.eq.s32.totalorder %s14, 0
    %p91 = por %p89, %p90
    %p92 = scmp.ne.s32.totalorder %s80, %s81
    %p93 = scmp.eq.s32.totalorder %s15, 1
    %p94 = por %p92, %p93
    %p96 = scmp.ne.s32.totalorder %s81, %s95
    %p97 = scmp.eq.s32.totalorder %s15, 0
    %p98 = por %p96, %p97
    %s99 = ssub.s32 %s16, %s28
    %s100 = ssub.s32 %s17, %s24
    %s101 = sor.u32 %s99, %s100
    %p102 = scmp.eq.s32.totalorder %s101, 0
    %s104 = sadd.s32 %s103, 1
    %s105 = scalar_select %p102, %s103, %s104
    %p108 = pneg %p102
    %p109 = scmp.eq.s32.totalorder %s9, 1
    %p110 = por %p108, %p109
    %p111 = scmp.ne.s32.totalorder %s103, %s106
    %p112 = scmp.eq.s32.totalorder %s9, 0
    %p113 = por %p111, %p112
    %p114 = scmp.ne.s32.totalorder %s103, %s106
    %p115 = scmp.eq.s32.totalorder %s14, 1
    %p116 = por %p114, %p115
    %p117 = scmp.ne.s32.totalorder %s106, %s107
    %p118 = scmp.eq.s32.totalorder %s14, 0
    %p119 = por %p117, %p118
    %p120 = scmp.ne.s32.totalorder %s106, %s107
    %p121 = scmp.eq.s32.totalorder %s15, 1
    %p122 = por %p120, %p121
    %p124 = scmp.ne.s32.totalorder %s107, %s123
    %p125 = scmp.eq.s32.totalorder %s15, 0
    %p126 = por %p124, %p125
    %p127 = scmp.le.s32.totalorder 1, %s9
    %p128 = scmp.lt.s32.totalorder %s9, 3
    %p129 = pnand %p127, %p128
    %p130 = pneg %p129
    // Predicated region
    $region9: #{acblock_forward.3} parent=5 // pred_check
      _
    $region10: #{acblock_forward.3} parent=5 // pred_check_branch
      %132 = sbr.rel (%p129) target = $region12
    $region11: #{acblock_forward.3} parent=5 // pred_region
      %s133 = ssub.s32 %s9, 1
      // Predicated region
      $region13: #{acblock_forward.3} parent=11 // pred_check
        %p134 = pneg %p70
      $region14: #{acblock_forward.3} parent=11 // pred_check_branch
        %136 = sbr.rel (%p134) target = $region16
      $region15: #{acblock_forward.3} parent=11 // pred_region
        _
      $region16: #{acblock_forward.3} parent=11 // pred_fallthru
        _
      // Predicated region
      $region17: #{acblock_forward.3} parent=11 // pred_check
        %p137 = pneg %p91
      $region18: #{acblock_forward.3} parent=11 // pred_check_branch
        %139 = sbr.rel (%p137) target = $region20
      $region19: #{acblock_forward.3} parent=11 // pred_region
        _
      $region20: #{acblock_forward.3} parent=11 // pred_fallthru
        _
    $region12: #{acblock_forward.3} parent=5 // pred_fallthru
      _
    %p140 = scmp.lt.s32.totalorder %s9, 2
    // Predicated region
    $region21: #{acblock_forward.3} parent=5 // pred_check
      %p141 = pneg %p140
    $region22: #{acblock_forward.3} parent=5 // pred_check_branch
      %143 = sbr.rel (%p141) target = $region24
    $region23: #{acblock_forward.3} parent=5 // pred_region
      // Predicated region
      $region25: #{acblock_forward.3} parent=23 // pred_check
        %p144 = pneg %p43
      $region26: #{acblock_forward.3} parent=23 // pred_check_branch
        %146 = sbr.rel (%p144) target = $region28
      $region27: #{acblock_forward.3} parent=23 // pred_region
        %s147 = smul.u32 16, %s17
        %p148 = scmp.lt.s32.totalorder %s16, 1
        %s149 = scalar_select %p148, %s16, 1
        %p150 = scmp.lt.s32.totalorder %s147, 15
        %s151 = scalar_select %p150, %s147, 15
        %s152 = smul.addr %s151, 3
        %s153 = smul.addr %s149, 144
        %s154 = sadd.s32 %s152, %s153
        %s155 = smul.addr %s154, 8
        %s156 = scalar_lea.vmem %s0, %s155
        %s157 = smul.u32 16, %s17
      $region28: #{acblock_forward.3} parent=23 // pred_fallthru
        _
    $region24: #{acblock_forward.3} parent=5 // pred_fallthru
      _
    %p158 = scmp.le.s32.totalorder 1, %s9
    %p159 = scmp.lt.s32.totalorder %s9, 3
    %p160 = pnand %p158, %p159
    %p161 = pneg %p160
    // Predicated region
    $region29: #{acblock_forward.3} parent=5 // pred_check
      _
    $region30: #{acblock_forward.3} parent=5 // pred_check_branch
      %163 = sbr.rel (%p160) target = $region32
    $region31: #{acblock_forward.3} parent=5 // pred_region
      %s164 = ssub.s32 %s9, 1
      %s165 = smul.u32 16, %s19
      %p166 = scmp.lt.s32.totalorder %s18, 1
      %s167 = scalar_select %p166, %s18, 1
      %p168 = scmp.lt.s32.totalorder %s165, 15
      %s169 = scalar_select %p168, %s165, 15
      %s170 = smul.addr %s169, 3
      %s171 = smul.addr %s167, 144
      %s172 = sadd.s32 %s170, %s171
      %s173 = smul.addr %s172, 8
      %s174 = scalar_lea.vmem %s0, %s173
      %p175 = pneg %p49
      %p176 = pneg %p46
      %p177 = pneg %p70
      %p178 = pneg %p67
      %p179 = pneg %p91
      %p180 = pneg %p88
      %p181 = pneg %p119
      %p182 = pneg %p116
      %s183 = smul.u32 16, %s19
      %p184 = scmp.lt.s32.totalorder %s18, 1
      %s185 = scalar_select %p184, %s18, 1
      %p186 = scmp.lt.s32.totalorder %s183, 15
      %s187 = scalar_select %p186, %s183, 15
      %s188 = smul.addr %s187, 2
      %s189 = smul.addr %s185, 32
      %s190 = sadd.s32 %s188, %s189
      %s191 = smul.addr %s190, 8
      %s192 = scalar_lea.vmem %s3, %s191
      %s193 = smul.u32 16, %s19
      %p194 = scmp.lt.s32.totalorder %s18, 1
      %s195 = scalar_select %p194, %s18, 1
      %p196 = scmp.lt.s32.totalorder %s193, 15
      %s197 = scalar_select %p196, %s193, 15
      %s198 = smul.addr %s197, 3
      %s199 = smul.addr %s195, 144
      %s200 = sadd.s32 %s198, %s199
      %s201 = smul.addr %s200, 8
      %s202 = scalar_lea.vmem %s0, %s201
      %s203 = smul.u32 16, %s19
      %s204 = smul.u32 16, %s19
      %p205 = scmp.lt.s32.totalorder %s18, 1
      %s206 = scalar_select %p205, %s18, 1
      %p207 = scmp.lt.s32.totalorder %s204, 15
      %s208 = scalar_select %p207, %s204, 15
      %s209 = smul.addr %s208, 2
      %s210 = smul.addr %s206, 32
      %s211 = sadd.s32 %s209, %s210
      %s212 = smul.addr %s211, 8
      %s213 = scalar_lea.vmem %s3, %s212
      %s214 = smul.u32 16, %s19
      %v215 = vld [vmem:[%s202] sm:$0xff]
      %v216 = vld [vmem:[%s202 + $0x8] sm:$0xff]
      %v217 = vld [vmem:[%s202 + $0x18] sm:$0xff]
      %v218 = vld [vmem:[%s202 + $0x20] sm:$0xff]
      %v219 = vld [vmem:[%s202 + $0x30] sm:$0xff]
      %v220 = vld [vmem:[%s202 + $0x38] sm:$0xff]
      %v221 = vld [vmem:[%s202 + $0x48] sm:$0xff]
      %v222 = vld [vmem:[%s202 + $0x50] sm:$0xff]
      %v223 = vld [vmem:[%s202 + $0x60] sm:$0xff]
      %v224 = vld [vmem:[%s202 + $0x68] sm:$0xff]
      %v225 = vld [vmem:[%s202 + $0x78] sm:$0xff]
      %v226 = vld [vmem:[%s202 + $0x80] sm:$0xff]
      %v227 = vld [vmem:[%s202 + $0x90] sm:$0xff]
      %v228 = vld [vmem:[%s202 + $0x98] sm:$0xff]
      %v229 = vld [vmem:[%s202 + $0xa8] sm:$0xff]
      %v230 = vld [vmem:[%s202 + $0xb0] sm:$0xff]
      %v231 = vld [vmem:[%s202 + $0xc0] sm:$0xff]
      %v232 = vld [vmem:[%s202 + $0xc8] sm:$0xff]
      %v233 = vld [vmem:[%s202 + $0xd8] sm:$0xff]
      %v234 = vld [vmem:[%s202 + $0xe0] sm:$0xff]
      %v235 = vld [vmem:[%s202 + $0xf0] sm:$0xff]
      %v236 = vld [vmem:[%s202 + $0xf8] sm:$0xff]
      %v237 = vld [vmem:[%s202 + $0x108] sm:$0xff]
      %v238 = vld [vmem:[%s202 + $0x110] sm:$0xff]
      %v239 = vld [vmem:[%s202 + $0x120] sm:$0xff]
      %v240 = vld [vmem:[%s202 + $0x128] sm:$0xff]
      %v241 = vld [vmem:[%s202 + $0x138] sm:$0xff]
      %v242 = vld [vmem:[%s202 + $0x140] sm:$0xff]
      %v243 = vld [vmem:[%s202 + $0x150] sm:$0xff]
      %v244 = vld [vmem:[%s202 + $0x158] sm:$0xff]
      %v245 = vld [vmem:[%s202 + $0x168] sm:$0xff]
      %v246 = vld [vmem:[%s202 + $0x170] sm:$0xff]
      %v247 = vld [vmem:[%s1] sm:$0x1]
      %v249 = vlaneseq
      %v250 = vshrl.u32 %v249, 7
      %v251 = vsub.s32 0, %v250
      %v252 = vrot.slane %v247, %v251
      %v254 = vmul.f32 %v215, %v252
      %v255 = vmul.f32 %v216, %v252
      %v256 = vmul.f32 %v217, %v252
      %v257 = vmul.f32 %v218, %v252
      %v258 = vmul.f32 %v219, %v252
      %v259 = vmul.f32 %v220, %v252
      %v260 = vmul.f32 %v221, %v252
      %v261 = vmul.f32 %v222, %v252
      %v262 = vmul.f32 %v223, %v252
      %v263 = vmul.f32 %v224, %v252
      %v264 = vmul.f32 %v225, %v252
      %v265 = vmul.f32 %v226, %v252
      %v266 = vmul.f32 %v227, %v252
      %v267 = vmul.f32 %v228, %v252
      %v268 = vmul.f32 %v229, %v252
      %v269 = vmul.f32 %v230, %v252
      %v270 = vmul.f32 %v231, %v252
      %v271 = vmul.f32 %v232, %v252
      %v272 = vmul.f32 %v233, %v252
      %v273 = vmul.f32 %v234, %v252
      %v274 = vmul.f32 %v235, %v252
      %v275 = vmul.f32 %v236, %v252
      %v276 = vmul.f32 %v237, %v252
      %v277 = vmul.f32 %v238, %v252
      %v278 = vmul.f32 %v239, %v252
      %v279 = vmul.f32 %v240, %v252
      %v280 = vmul.f32 %v241, %v252
      %v281 = vmul.f32 %v242, %v252
      %v282 = vmul.f32 %v243, %v252
      %v283 = vmul.f32 %v244, %v252
      %v284 = vmul.f32 %v245, %v252
      %v285 = vmul.f32 %v246, %v252
      %s286 = scalar_lea.vmem %s202, 384
      %v287 = vld [vmem:[%s286] sm:$0xff]
      %v288 = vld [vmem:[%s286 + $0x8] sm:$0xff]
      %v289 = vld [vmem:[%s286 + $0x18] sm:$0xff]
      %v290 = vld [vmem:[%s286 + $0x20] sm:$0xff]
      %v291 = vld [vmem:[%s286 + $0x30] sm:$0xff]
      %v292 = vld [vmem:[%s286 + $0x38] sm:$0xff]
      %v293 = vld [vmem:[%s286 + $0x48] sm:$0xff]
      %v294 = vld [vmem:[%s286 + $0x50] sm:$0xff]
      %v295 = vld [vmem:[%s286 + $0x60] sm:$0xff]
      %v296 = vld [vmem:[%s286 + $0x68] sm:$0xff]
      %v297 = vld [vmem:[%s286 + $0x78] sm:$0xff]
      %v298 = vld [vmem:[%s286 + $0x80] sm:$0xff]
      %v299 = vld [vmem:[%s286 + $0x90] sm:$0xff]
      %v300 = vld [vmem:[%s286 + $0x98] sm:$0xff]
      %v301 = vld [vmem:[%s286 + $0xa8] sm:$0xff]
      %v302 = vld [vmem:[%s286 + $0xb0] sm:$0xff]
      %v303 = vld [vmem:[%s286 + $0xc0] sm:$0xff]
      %v304 = vld [vmem:[%s286 + $0xc8] sm:$0xff]
      %v305 = vld [vmem:[%s286 + $0xd8] sm:$0xff]
      %v306 = vld [vmem:[%s286 + $0xe0] sm:$0xff]
      %v307 = vld [vmem:[%s286 + $0xf0] sm:$0xff]
      %v308 = vld [vmem:[%s286 + $0xf8] sm:$0xff]
      %v309 = vld [vmem:[%s286 + $0x108] sm:$0xff]
      %v310 = vld [vmem:[%s286 + $0x110] sm:$0xff]
      %v311 = vld [vmem:[%s286 + $0x120] sm:$0xff]
      %v312 = vld [vmem:[%s286 + $0x128] sm:$0xff]
      %v313 = vld [vmem:[%s286 + $0x138] sm:$0xff]
      %v314 = vld [vmem:[%s286 + $0x140] sm:$0xff]
      %v315 = vld [vmem:[%s286 + $0x150] sm:$0xff]
      %v316 = vld [vmem:[%s286 + $0x158] sm:$0xff]
      %v317 = vld [vmem:[%s286 + $0x168] sm:$0xff]
      %v318 = vld [vmem:[%s286 + $0x170] sm:$0xff]
      %s319 = scalar_lea.vmem %s1, 1
      %v320 = vld [vmem:[%s319] sm:$0x1]
      %v322 = vlaneseq
      %v323 = vshrl.u32 %v322, 7
      %v324 = vsub.s32 0, %v323
      %v325 = vrot.slane %v320, %v324
      %v327 = vmul.f32 %v287, %v325
      %v328 = vmul.f32 %v288, %v325
      %v329 = vmul.f32 %v289, %v325
      %v330 = vmul.f32 %v290, %v325
      %v331 = vmul.f32 %v291, %v325
      %v332 = vmul.f32 %v292, %v325
      %v333 = vmul.f32 %v293, %v325
      %v334 = vmul.f32 %v294, %v325
      %v335 = vmul.f32 %v295, %v325
      %v336 = vmul.f32 %v296, %v325
      %v337 = vmul.f32 %v297, %v325
      %v338 = vmul.f32 %v298, %v325
      %v339 = vmul.f32 %v299, %v325
      %v340 = vmul.f32 %v300, %v325
      %v341 = vmul.f32 %v301, %v325
      %v342 = vmul.f32 %v302, %v325
      %v343 = vmul.f32 %v303, %v325
      %v344 = vmul.f32 %v304, %v325
      %v345 = vmul.f32 %v305, %v325
      %v346 = vmul.f32 %v306, %v325
      %v347 = vmul.f32 %v307, %v325
      %v348 = vmul.f32 %v308, %v325
      %v349 = vmul.f32 %v309, %v325
      %v350 = vmul.f32 %v310, %v325
      %v351 = vmul.f32 %v311, %v325
      %v352 = vmul.f32 %v312, %v325
      %v353 = vmul.f32 %v313, %v325
      %v354 = vmul.f32 %v314, %v325
      %v355 = vmul.f32 %v315, %v325
      %v356 = vmul.f32 %v316, %v325
      %v357 = vmul.f32 %v317, %v325
      %v358 = vmul.f32 %v318, %v325
      %v359 = vadd.f32 %v254, %v327
      %v360 = vadd.f32 %v255, %v328
      %v361 = vadd.f32 %v256, %v329
      %v362 = vadd.f32 %v257, %v330
      %v363 = vadd.f32 %v258, %v331
      %v364 = vadd.f32 %v259, %v332
      %v365 = vadd.f32 %v260, %v333
      %v366 = vadd.f32 %v261, %v334
      %v367 = vadd.f32 %v262, %v335
      %v368 = vadd.f32 %v263, %v336
      %v369 = vadd.f32 %v264, %v337
      %v370 = vadd.f32 %v265, %v338
      %v371 = vadd.f32 %v266, %v339
      %v372 = vadd.f32 %v267, %v340
      %v373 = vadd.f32 %v268, %v341
      %v374 = vadd.f32 %v269, %v342
      %v375 = vadd.f32 %v270, %v343
      %v376 = vadd.f32 %v271, %v344
      %v377 = vadd.f32 %v272, %v345
      %v378 = vadd.f32 %v273, %v346
      %v379 = vadd.f32 %v274, %v347
      %v380 = vadd.f32 %v275, %v348
      %v381 = vadd.f32 %v276, %v349
      %v382 = vadd.f32 %v277, %v350
      %v383 = vadd.f32 %v278, %v351
      %v384 = vadd.f32 %v279, %v352
      %v385 = vadd.f32 %v280, %v353
      %v386 = vadd.f32 %v281, %v354
      %v387 = vadd.f32 %v282, %v355
      %v388 = vadd.f32 %v283, %v356
      %v389 = vadd.f32 %v284, %v357
      %v390 = vadd.f32 %v285, %v358
      %s391 = scalar_lea.vmem %s202, 768
      %v392 = vld [vmem:[%s391] sm:$0xff]
      %v393 = vld [vmem:[%s391 + $0x8] sm:$0xff]
      %v394 = vld [vmem:[%s391 + $0x18] sm:$0xff]
      %v395 = vld [vmem:[%s391 + $0x20] sm:$0xff]
      %v396 = vld [vmem:[%s391 + $0x30] sm:$0xff]
      %v397 = vld [vmem:[%s391 + $0x38] sm:$0xff]
      %v398 = vld [vmem:[%s391 + $0x48] sm:$0xff]
      %v399 = vld [vmem:[%s391 + $0x50] sm:$0xff]
      %v400 = vld [vmem:[%s391 + $0x60] sm:$0xff]
      %v401 = vld [vmem:[%s391 + $0x68] sm:$0xff]
      %v402 = vld [vmem:[%s391 + $0x78] sm:$0xff]
      %v403 = vld [vmem:[%s391 + $0x80] sm:$0xff]
      %v404 = vld [vmem:[%s391 + $0x90] sm:$0xff]
      %v405 = vld [vmem:[%s391 + $0x98] sm:$0xff]
      %v406 = vld [vmem:[%s391 + $0xa8] sm:$0xff]
      %v407 = vld [vmem:[%s391 + $0xb0] sm:$0xff]
      %v408 = vld [vmem:[%s391 + $0xc0] sm:$0xff]
      %v409 = vld [vmem:[%s391 + $0xc8] sm:$0xff]
      %v410 = vld [vmem:[%s391 + $0xd8] sm:$0xff]
      %v411 = vld [vmem:[%s391 + $0xe0] sm:$0xff]
      %v412 = vld [vmem:[%s391 + $0xf0] sm:$0xff]
      %v413 = vld [vmem:[%s391 + $0xf8] sm:$0xff]
      %v414 = vld [vmem:[%s391 + $0x108] sm:$0xff]
      %v415 = vld [vmem:[%s391 + $0x110] sm:$0xff]
      %v416 = vld [vmem:[%s391 + $0x120] sm:$0xff]
      %v417 = vld [vmem:[%s391 + $0x128] sm:$0xff]
      %v418 = vld [vmem:[%s391 + $0x138] sm:$0xff]
      %v419 = vld [vmem:[%s391 + $0x140] sm:$0xff]
      %v420 = vld [vmem:[%s391 + $0x150] sm:$0xff]
      %v421 = vld [vmem:[%s391 + $0x158] sm:$0xff]
      %v422 = vld [vmem:[%s391 + $0x168] sm:$0xff]
      %v423 = vld [vmem:[%s391 + $0x170] sm:$0xff]
      %s424 = scalar_lea.vmem %s1, 2
      %v425 = vld [vmem:[%s424] sm:$0x1]
      %v427 = vlaneseq
      %v428 = vshrl.u32 %v427, 7
      %v429 = vsub.s32 0, %v428
      %v430 = vrot.slane %v425, %v429
      %v432 = vmul.f32 %v392, %v430
      %v433 = vmul.f32 %v393, %v430
      %v434 = vmul.f32 %v394, %v430
      %v435 = vmul.f32 %v395, %v430
      %v436 = vmul.f32 %v396, %v430
      %v437 = vmul.f32 %v397, %v430
      %v438 = vmul.f32 %v398, %v430
      %v439 = vmul.f32 %v399, %v430
      %v440 = vmul.f32 %v400, %v430
      %v441 = vmul.f32 %v401, %v430
      %v442 = vmul.f32 %v402, %v430
      %v443 = vmul.f32 %v403, %v430
      %v444 = vmul.f32 %v404, %v430
      %v445 = vmul.f32 %v405, %v430
      %v446 = vmul.f32 %v406, %v430
      %v447 = vmul.f32 %v407, %v430
      %v448 = vmul.f32 %v408, %v430
      %v449 = vmul.f32 %v409, %v430
      %v450 = vmul.f32 %v410, %v430
      %v451 = vmul.f32 %v411, %v430
      %v452 = vmul.f32 %v412, %v430
      %v453 = vmul.f32 %v413, %v430
      %v454 = vmul.f32 %v414, %v430
      %v455 = vmul.f32 %v415, %v430
      %v456 = vmul.f32 %v416, %v430
      %v457 = vmul.f32 %v417, %v430
      %v458 = vmul.f32 %v418, %v430
      %v459 = vmul.f32 %v419, %v430
      %v460 = vmul.f32 %v420, %v430
      %v461 = vmul.f32 %v421, %v430
      %v462 = vmul.f32 %v422, %v430
      %v463 = vmul.f32 %v423, %v430
      %v464 = vadd.f32 %v359, %v432
      %v465 = vadd.f32 %v360, %v433
      %v466 = vadd.f32 %v361, %v434
      %v467 = vadd.f32 %v362, %v435
      %v468 = vadd.f32 %v363, %v436
      %v469 = vadd.f32 %v364, %v437
      %v470 = vadd.f32 %v365, %v438
      %v471 = vadd.f32 %v366, %v439
      %v472 = vadd.f32 %v367, %v440
      %v473 = vadd.f32 %v368, %v441
      %v474 = vadd.f32 %v369, %v442
      %v475 = vadd.f32 %v370, %v443
      %v476 = vadd.f32 %v371, %v444
      %v477 = vadd.f32 %v372, %v445
      %v478 = vadd.f32 %v373, %v446
      %v479 = vadd.f32 %v374, %v447
      %v480 = vadd.f32 %v375, %v448
      %v481 = vadd.f32 %v376, %v449
      %v482 = vadd.f32 %v377, %v450
      %v483 = vadd.f32 %v378, %v451
      %v484 = vadd.f32 %v379, %v452
      %v485 = vadd.f32 %v380, %v453
      %v486 = vadd.f32 %v381, %v454
      %v487 = vadd.f32 %v382, %v455
      %v488 = vadd.f32 %v383, %v456
      %v489 = vadd.f32 %v384, %v457
      %v490 = vadd.f32 %v385, %v458
      %v491 = vadd.f32 %v386, %v459
      %v492 = vadd.f32 %v387, %v460
      %v493 = vadd.f32 %v388, %v461
      %v494 = vadd.f32 %v389, %v462
      %v495 = vadd.f32 %v390, %v463
      %v496 = vld [vmem:[%s2] sm:$0x1]
      %v498 = vlaneseq
      %v499 = vshrl.u32 %v498, 7
      %v500 = vsub.s32 0, %v499
      %v501 = vrot.slane %v496, %v500
      %v503 = vadd.f32 %v464, %v501
      %v504 = vadd.f32 %v465, %v501
      %v505 = vadd.f32 %v466, %v501
      %v506 = vadd.f32 %v467, %v501
      %v507 = vadd.f32 %v468, %v501
      %v508 = vadd.f32 %v469, %v501
      %v509 = vadd.f32 %v470, %v501
      %v510 = vadd.f32 %v471, %v501
      %v511 = vadd.f32 %v472, %v501
      %v512 = vadd.f32 %v473, %v501
      %v513 = vadd.f32 %v474, %v501
      %v514 = vadd.f32 %v475, %v501
      %v515 = vadd.f32 %v476, %v501
      %v516 = vadd.f32 %v477, %v501
      %v517 = vadd.f32 %v478, %v501
      %v518 = vadd.f32 %v479, %v501
      %v519 = vadd.f32 %v480, %v501
      %v520 = vadd.f32 %v481, %v501
      %v521 = vadd.f32 %v482, %v501
      %v522 = vadd.f32 %v483, %v501
      %v523 = vadd.f32 %v484, %v501
      %v524 = vadd.f32 %v485, %v501
      %v525 = vadd.f32 %v486, %v501
      %v526 = vadd.f32 %v487, %v501
      %v527 = vadd.f32 %v488, %v501
      %v528 = vadd.f32 %v489, %v501
      %v529 = vadd.f32 %v490, %v501
      %v530 = vadd.f32 %v491, %v501
      %v531 = vadd.f32 %v492, %v501
      %v532 = vadd.f32 %v493, %v501
      %v533 = vadd.f32 %v494, %v501
      %v534 = vadd.f32 %v495, %v501
      %v535 = vmax.f32 %v503, 0.0
      %v536 = vmax.f32 %v504, 0.0
      %v537 = vmax.f32 %v505, 0.0
      %v538 = vmax.f32 %v506, 0.0
      %v539 = vmax.f32 %v507, 0.0
      %v540 = vmax.f32 %v508, 0.0
      %v541 = vmax.f32 %v509, 0.0
      %v542 = vmax.f32 %v510, 0.0
      %v543 = vmax.f32 %v511, 0.0
      %v544 = vmax.f32 %v512, 0.0
      %v545 = vmax.f32 %v513, 0.0
      %v546 = vmax.f32 %v514, 0.0
      %v547 = vmax.f32 %v515, 0.0
      %v548 = vmax.f32 %v516, 0.0
      %v549 = vmax.f32 %v517, 0.0
      %v550 = vmax.f32 %v518, 0.0
      %v551 = vmax.f32 %v519, 0.0
      %v552 = vmax.f32 %v520, 0.0
      %v553 = vmax.f32 %v521, 0.0
      %v554 = vmax.f32 %v522, 0.0
      %v555 = vmax.f32 %v523, 0.0
      %v556 = vmax.f32 %v524, 0.0
      %v557 = vmax.f32 %v525, 0.0
      %v558 = vmax.f32 %v526, 0.0
      %v559 = vmax.f32 %v527, 0.0
      %v560 = vmax.f32 %v528, 0.0
      %v561 = vmax.f32 %v529, 0.0
      %v562 = vmax.f32 %v530, 0.0
      %v563 = vmax.f32 %v531, 0.0
      %v564 = vmax.f32 %v532, 0.0
      %v565 = vmax.f32 %v533, 0.0
      %v566 = vmax.f32 %v534, 0.0
      %vm567 = vcmask 64512
      %568 = vst.msk [vmem:[%s213] sm:$0xff] %vm567, %v535
      %569 = vst.msk [vmem:[%s213 + $0x8] sm:$0xff] %vm567, %v536
      %570 = vst.msk [vmem:[%s213 + $0x10] sm:$0xff] %vm567, %v537
      %571 = vst.msk [vmem:[%s213 + $0x18] sm:$0xff] %vm567, %v538
      %572 = vst.msk [vmem:[%s213 + $0x20] sm:$0xff] %vm567, %v539
      %573 = vst.msk [vmem:[%s213 + $0x28] sm:$0xff] %vm567, %v540
      %574 = vst.msk [vmem:[%s213 + $0x30] sm:$0xff] %vm567, %v541
      %575 = vst.msk [vmem:[%s213 + $0x38] sm:$0xff] %vm567, %v542
      %576 = vst.msk [vmem:[%s213 + $0x40] sm:$0xff] %vm567, %v543
      %577 = vst.msk [vmem:[%s213 + $0x48] sm:$0xff] %vm567, %v544
      %578 = vst.msk [vmem:[%s213 + $0x50] sm:$0xff] %vm567, %v545
      %579 = vst.msk [vmem:[%s213 + $0x58] sm:$0xff] %vm567, %v546
      %580 = vst.msk [vmem:[%s213 + $0x60] sm:$0xff] %vm567, %v547
      %581 = vst.msk [vmem:[%s213 + $0x68] sm:$0xff] %vm567, %v548
      %582 = vst.msk [vmem:[%s213 + $0x70] sm:$0xff] %vm567, %v549
      %583 = vst.msk [vmem:[%s213 + $0x78] sm:$0xff] %vm567, %v550
      %584 = vst.msk [vmem:[%s213 + $0x80] sm:$0xff] %vm567, %v551
      %585 = vst.msk [vmem:[%s213 + $0x88] sm:$0xff] %vm567, %v552
      %586 = vst.msk [vmem:[%s213 + $0x90] sm:$0xff] %vm567, %v553
      %587 = vst.msk [vmem:[%s213 + $0x98] sm:$0xff] %vm567, %v554
      %588 = vst.msk [vmem:[%s213 + $0xa0] sm:$0xff] %vm567, %v555
      %589 = vst.msk [vmem:[%s213 + $0xa8] sm:$0xff] %vm567, %v556
      %590 = vst.msk [vmem:[%s213 + $0xb0] sm:$0xff] %vm567, %v557
      %591 = vst.msk [vmem:[%s213 + $0xb8] sm:$0xff] %vm567, %v558
      %592 = vst.msk [vmem:[%s213 + $0xc0] sm:$0xff] %vm567, %v559
      %593 = vst.msk [vmem:[%s213 + $0xc8] sm:$0xff] %vm567, %v560
      %594 = vst.msk [vmem:[%s213 + $0xd0] sm:$0xff] %vm567, %v561
      %595 = vst.msk [vmem:[%s213 + $0xd8] sm:$0xff] %vm567, %v562
      %596 = vst.msk [vmem:[%s213 + $0xe0] sm:$0xff] %vm567, %v563
      %597 = vst.msk [vmem:[%s213 + $0xe8] sm:$0xff] %vm567, %v564
      %598 = vst.msk [vmem:[%s213 + $0xf0] sm:$0xff] %vm567, %v565
      %599 = vst.msk [vmem:[%s213 + $0xf8] sm:$0xff] %vm567, %v566
      %s600 = smul.u32 16, %s19
      %p601 = scmp.lt.s32.totalorder %s18, 1
      %s602 = scalar_select %p601, %s18, 1
      %p603 = scmp.lt.s32.totalorder %s600, 15
      %s604 = scalar_select %p603, %s600, 15
      %s605 = smul.addr %s604, 2
      %s606 = smul.addr %s602, 32
      %s607 = sadd.s32 %s605, %s606
      %s608 = smul.addr %s607, 8
      %s609 = scalar_lea.vmem %s3, %s608
      // Predicated region
      $region33: #{acblock_forward.3} parent=31 // pred_check
        %p610 = pneg %p116
      $region34: #{acblock_forward.3} parent=31 // pred_check_branch
        %612 = sbr.rel (%p610) target = $region36
      $region35: #{acblock_forward.3} parent=31 // pred_region
        %s613 = smul.u32 16, %s19
      $region36: #{acblock_forward.3} parent=31 // pred_fallthru
        _
    $region32: #{acblock_forward.3} parent=5 // pred_fallthru
      _
    %p614 = scmp.le.s32.totalorder 2, %s9
    // Predicated region
    $region37: #{acblock_forward.3} parent=5 // pred_check
      %p615 = pneg %p614
    $region38: #{acblock_forward.3} parent=5 // pred_check_branch
      %617 = sbr.rel (%p615) target = $region40
    $region39: #{acblock_forward.3} parent=5 // pred_region
      %s618 = ssub.s32 %s9, 2
      // Predicated region
      $region41: #{acblock_forward.3} parent=39 // pred_check
        %p619 = pneg %p122
      $region42: #{acblock_forward.3} parent=39 // pred_check_branch
        %621 = sbr.rel (%p619) target = $region44
      $region43: #{acblock_forward.3} parent=39 // pred_region
        %s622 = smul.u32 16, %s21
        %p623 = scmp.lt.s32.totalorder %s20, 1
        %s624 = scalar_select %p623, %s20, 1
        %p625 = scmp.lt.s32.totalorder %s622, 15
        %s626 = scalar_select %p625, %s622, 15
        %s627 = smul.addr %s626, 2
        %s628 = smul.addr %s624, 32
        %s629 = sadd.s32 %s627, %s628
        %s630 = smul.addr %s629, 8
        %s631 = scalar_lea.vmem %s3, %s630
      $region44: #{acblock_forward.3} parent=39 // pred_fallthru
        _
    $region40: #{acblock_forward.3} parent=5 // pred_fallthru
      _
  $region6: #{acblock_forward.3} parent=0 // loop_footer
    %s13 = sadd.s32 1, %s9
  $region7: #{acblock_forward.3} parent=0 // loop_footer_branch
    %8 = sbr.rel target = $region3
  $region8: #{acblock_forward.3} parent=0 // loop_exit
    _

// kernel: acblock_forward.2
$region0: #{acblock_forward.2}
  #allocation0 [shape = 'u32[]', space=smem, size = 0x4, offset = 0x4, fixed_abs, tag = 'smem constant byte address 0x4 - core index']
  #allocation1 [shape = 'u32[144,128]{1,0:T(1,128)}', space=vmem, size = 0x12000, scoped, tag = 'internal scratch']
  %s0 = inlined_call_operand.vmem [shape: f32[2,1,456,4], index: 0, kind: input, shape index: {}]
  %s1 = inlined_call_operand.vmem [shape: f32[3,36,8], index: 1, kind: input, shape index: {}]
  %s2 = inlined_call_operand.vmem [shape: f32[8,384], index: 2, kind: input, shape index: {}]
  %s3 = inlined_call_operand.vmem [shape: f32[2,3,384,8], index: 3, kind: output, shape index: {0}]
  %s4 = inlined_call_operand.vmem [shape: f32[2,1,6,8], index: 4, kind: output, shape index: {1}]
  %5 = xla_tuple %s3, %s4
  %s6 = sld [smem:[#allocation0]]
  $region53: #{acblock_forward.2} parent=0
    _
  %s8 = ssub.s32 1, %s6
  %s9 = scalar_select 0, %s8, %s6
  loop: start=0, step=1, limit=4
  $region2: #{acblock_forward.2} parent=0 // loop_pre_header
    _
  $region3: #{acblock_forward.2} parent=0 // loop_header
    %s11 = sphi 0, %s15
    %p12 = scmp.ge.s32.totalorder %s11, 4
    %s18 = sphi 0, %s30
    %s19 = sphi 0, %s26
    %s20 = sphi 0, %s18
    %s21 = sphi 0, %s19
    %s22 = sphi 0, %s20
    %s23 = sphi 0, %s21
    %s35 = sphi 0, %s37
    %s38 = sphi 0, %s35
    %s39 = sphi 0, %s38
    %s55 = sphi 0, %s39
    %s59 = sphi 0, %s59
    %s61 = sphi 0, %s59
    %s62 = sphi 0, %s61
    %s76 = sphi 0, %s62
    %s80 = sphi 0, %s80
    %s82 = sphi 0, %s80
    %s83 = sphi 0, %s82
    %s97 = sphi 0, %s83
    %s105 = sphi 0, %s107
    %s108 = sphi 0, %s105
    %s109 = sphi 0, %s108
    %s125 = sphi 0, %s109
    %s133 = sphi 0, %s135
    %s136 = sphi 0, %s133
    %s137 = sphi 0, %s136
    %s153 = sphi 0, %s137
  $region4: #{acblock_forward.2} parent=0 // loop_header_branch
    %14 = sbr.rel (%p12) target = $region8
  $region5: #{acblock_forward.2} parent=0 // loop_body
    %s16 = ssub.s32 %s11, 1
    %s17 = ssub.s32 %s11, 2
    %s24 = sadd.s32 1, %s19
    %p25 = scmp.ge.s32.totalorder %s24, 1
    %s26 = scalar_select %p25, 0, %s24
    %s27 = sadd.s32 1, %s18
    %s28 = scalar_select %p25, %s27, %s18
    %p29 = scmp.ge.s32.totalorder %s28, 2
    %s30 = scalar_select %p29, 0, %s28
    %s31 = ssub.s32 %s18, %s30
    %s32 = ssub.s32 %s19, %s26
    %s33 = sor.u32 %s31, %s32
    %p34 = scmp.eq.s32.totalorder %s33, 0
    %s36 = sadd.s32 %s35, 1
    %s37 = scalar_select %p34, %s35, %s36
    %p40 = pneg %p34
    %p41 = scmp.eq.s32.totalorder %s11, 1
    %p42 = por %p40, %p41
    %p43 = scmp.ne.s32.totalorder %s35, %s38
    %p44 = scmp.eq.s32.totalorder %s11, 0
    %p45 = por %p43, %p44
    %p46 = scmp.ne.s32.totalorder %s35, %s38
    %p47 = scmp.eq.s32.totalorder %s16, 1
    %p48 = por %p46, %p47
    %p49 = scmp.ne.s32.totalorder %s38, %s39
    %p50 = scmp.eq.s32.totalorder %s16, 0
    %p51 = por %p49, %p50
    %p52 = scmp.ne.s32.totalorder %s38, %s39
    %p53 = scmp.eq.s32.totalorder %s17, 1
    %p54 = por %p52, %p53
    %p56 = scmp.ne.s32.totalorder %s39, %s55
    %p57 = scmp.eq.s32.totalorder %s17, 0
    %p58 = por %p56, %p57
    %s60 = sadd.s32 %s59, 1
    %p63 = scmp.eq.s32.totalorder %s11, 1
    %p64 = scmp.ne.s32.totalorder %s59, %s61
    %p65 = scmp.eq.s32.totalorder %s11, 0
    %p66 = por %p64, %p65
    %p67 = scmp.ne.s32.totalorder %s59, %s61
    %p68 = scmp.eq.s32.totalorder %s16, 1
    %p69 = por %p67, %p68
    %p70 = scmp.ne.s32.totalorder %s61, %s62
    %p71 = scmp.eq.s32.totalorder %s16, 0
    %p72 = por %p70, %p71
    %p73 = scmp.ne.s32.totalorder %s61, %s62
    %p74 = scmp.eq.s32.totalorder %s17, 1
    %p75 = por %p73, %p74
    %p77 = scmp.ne.s32.totalorder %s62, %s76
    %p78 = scmp.eq.s32.totalorder %s17, 0
    %p79 = por %p77, %p78
    %s81 = sadd.s32 %s80, 1
    %p84 = scmp.eq.s32.totalorder %s11, 1
    %p85 = scmp.ne.s32.totalorder %s80, %s82
    %p86 = scmp.eq.s32.totalorder %s11, 0
    %p87 = por %p85, %p86
    %p88 = scmp.ne.s32.totalorder %s80, %s82
    %p89 = scmp.eq.s32.totalorder %s16, 1
    %p90 = por %p88, %p89
    %p91 = scmp.ne.s32.totalorder %s82, %s83
    %p92 = scmp.eq.s32.totalorder %s16, 0
    %p93 = por %p91, %p92
    %p94 = scmp.ne.s32.totalorder %s82, %s83
    %p95 = scmp.eq.s32.totalorder %s17, 1
    %p96 = por %p94, %p95
    %p98 = scmp.ne.s32.totalorder %s83, %s97
    %p99 = scmp.eq.s32.totalorder %s17, 0
    %p100 = por %p98, %p99
    %s101 = ssub.s32 %s18, %s30
    %s102 = ssub.s32 %s19, %s26
    %s103 = sor.u32 %s101, %s102
    %p104 = scmp.eq.s32.totalorder %s103, 0
    %s106 = sadd.s32 %s105, 1
    %s107 = scalar_select %p104, %s105, %s106
    %p110 = pneg %p104
    %p111 = scmp.eq.s32.totalorder %s11, 1
    %p112 = por %p110, %p111
    %p113 = scmp.ne.s32.totalorder %s105, %s108
    %p114 = scmp.eq.s32.totalorder %s11, 0
    %p115 = por %p113, %p114
    %p116 = scmp.ne.s32.totalorder %s105, %s108
    %p117 = scmp.eq.s32.totalorder %s16, 1
    %p118 = por %p116, %p117
    %p119 = scmp.ne.s32.totalorder %s108, %s109
    %p120 = scmp.eq.s32.totalorder %s16, 0
    %p121 = por %p119, %p120
    %p122 = scmp.ne.s32.totalorder %s108, %s109
    %p123 = scmp.eq.s32.totalorder %s17, 1
    %p124 = por %p122, %p123
    %p126 = scmp.ne.s32.totalorder %s109, %s125
    %p127 = scmp.eq.s32.totalorder %s17, 0
    %p128 = por %p126, %p127
    %s129 = ssub.s32 %s18, %s30
    %s130 = ssub.s32 %s19, %s26
    %s131 = sor.u32 %s129, %s130
    %p132 = scmp.eq.s32.totalorder %s131, 0
    %s134 = sadd.s32 %s133, 1
    %s135 = scalar_select %p132, %s133, %s134
    %p138 = pneg %p132
    %p139 = scmp.eq.s32.totalorder %s11, 1
    %p140 = por %p138, %p139
    %p141 = scmp.ne.s32.totalorder %s133, %s136
    %p142 = scmp.eq.s32.totalorder %s11, 0
    %p143 = por %p141, %p142
    %p144 = scmp.ne.s32.totalorder %s133, %s136
    %p145 = scmp.eq.s32.totalorder %s16, 1
    %p146 = por %p144, %p145
    %p147 = scmp.ne.s32.totalorder %s136, %s137
    %p148 = scmp.eq.s32.totalorder %s16, 0
    %p149 = por %p147, %p148
    %p150 = scmp.ne.s32.totalorder %s136, %s137
    %p151 = scmp.eq.s32.totalorder %s17, 1
    %p152 = por %p150, %p151
    %p154 = scmp.ne.s32.totalorder %s137, %s153
    %p155 = scmp.eq.s32.totalorder %s17, 0
    %p156 = por %p154, %p155
    %p157 = scmp.le.s32.totalorder 1, %s11
    %p158 = scmp.lt.s32.totalorder %s11, 3
    %p159 = pnand %p157, %p158
    %p160 = pneg %p159
    // Predicated region
    $region9: #{acblock_forward.2} parent=5 // pred_check
      _
    $region10: #{acblock_forward.2} parent=5 // pred_check_branch
      %162 = sbr.rel (%p159) target = $region12
    $region11: #{acblock_forward.2} parent=5 // pred_region
      %s163 = ssub.s32 %s11, 1
      // Predicated region
      $region13: #{acblock_forward.2} parent=11 // pred_check
        %p164 = pneg %p72
      $region14: #{acblock_forward.2} parent=11 // pred_check_branch
        %166 = sbr.rel (%p164) target = $region16
      $region15: #{acblock_forward.2} parent=11 // pred_region
        _
      $region16: #{acblock_forward.2} parent=11 // pred_fallthru
        _
      // Predicated region
      $region17: #{acblock_forward.2} parent=11 // pred_check
        %p167 = pneg %p93
      $region18: #{acblock_forward.2} parent=11 // pred_check_branch
        %169 = sbr.rel (%p167) target = $region20
      $region19: #{acblock_forward.2} parent=11 // pred_region
        _
      $region20: #{acblock_forward.2} parent=11 // pred_fallthru
        _
    $region12: #{acblock_forward.2} parent=5 // pred_fallthru
      _
    %p170 = scmp.lt.s32.totalorder %s11, 2
    // Predicated region
    $region21: #{acblock_forward.2} parent=5 // pred_check
      %p171 = pneg %p170
    $region22: #{acblock_forward.2} parent=5 // pred_check_branch
      %173 = sbr.rel (%p171) target = $region24
    $region23: #{acblock_forward.2} parent=5 // pred_region
      // Predicated region
      $region25: #{acblock_forward.2} parent=23 // pred_check
        %p174 = pneg %p45
      $region26: #{acblock_forward.2} parent=23 // pred_check_branch
        %176 = sbr.rel (%p174) target = $region28
      $region27: #{acblock_forward.2} parent=23 // pred_region
        %p177 = scmp.lt.s32.totalorder %s18, 1
        %s178 = scalar_select %p177, %s18, 1
        %p179 = scmp.lt.s32.totalorder %s19, 0
        %s180 = scalar_select %p179, %s19, 0
        %s181 = smul.addr %s180, 57
        %s182 = smul.addr %s178, 57
        %s183 = sadd.s32 %s181, %s182
        %s184 = smul.addr %s183, 8
        %s185 = scalar_lea.vmem %s0, %s184
      $region28: #{acblock_forward.2} parent=23 // pred_fallthru
        _
    $region24: #{acblock_forward.2} parent=5 // pred_fallthru
      _
    %p186 = scmp.le.s32.totalorder 1, %s11
    %p187 = scmp.lt.s32.totalorder %s11, 3
    %p188 = pnand %p186, %p187
    %p189 = pneg %p188
    // Predicated region
    $region29: #{acblock_forward.2} parent=5 // pred_check
      _
    $region30: #{acblock_forward.2} parent=5 // pred_check_branch
      %191 = sbr.rel (%p188) target = $region32
    $region31: #{acblock_forward.2} parent=5 // pred_region
      %s192 = ssub.s32 %s11, 1
      %p193 = scmp.lt.s32.totalorder %s20, 1
      %s194 = scalar_select %p193, %s20, 1
      %p195 = scmp.lt.s32.totalorder %s21, 0
      %s196 = scalar_select %p195, %s21, 0
      %s197 = smul.addr %s196, 57
      %s198 = smul.addr %s194, 57
      %s199 = sadd.s32 %s197, %s198
      %s200 = smul.addr %s199, 8
      %s201 = scalar_lea.vmem %s0, %s200
      %p202 = pneg %p51
      %p203 = pneg %p48
      %p204 = pneg %p72
      %p205 = pneg %p69
      %p206 = pneg %p93
      %p207 = pneg %p90
      %p208 = pneg %p121
      %p209 = pneg %p118
      %s210 = smul.u32 48, %s21
      %p211 = scmp.lt.s32.totalorder %s20, 1
      %s212 = scalar_select %p211, %s20, 1
      %p213 = scmp.lt.s32.totalorder %s210, 47
      %s214 = scalar_select %p213, %s210, 47
      %s215 = smul.addr %s212, 144
      %s216 = sadd.s32 %s214, %s215
      %s217 = smul.addr %s216, 8
      %s218 = scalar_lea.vmem %s3, %s217
      %p219 = pneg %p149
      %p220 = pneg %p146
      %p221 = scmp.lt.s32.totalorder %s20, 1
      %s222 = scalar_select %p221, %s20, 1
      %p223 = scmp.lt.s32.totalorder %s21, 0
      %s224 = scalar_select %p223, %s21, 0
      %s225 = sadd.s32 %s224, %s222
      %s226 = smul.addr %s225, 8
      %s227 = scalar_lea.vmem %s4, %s226
      %p228 = scmp.lt.s32.totalorder %s20, 1
      %s229 = scalar_select %p228, %s20, 1
      %p230 = scmp.lt.s32.totalorder %s21, 0
      %s231 = scalar_select %p230, %s21, 0
      %s232 = smul.addr %s231, 57
      %s233 = smul.addr %s229, 57
      %s234 = sadd.s32 %s232, %s233
      %s235 = smul.addr %s234, 8
      %s236 = scalar_lea.vmem %s0, %s235
      %s237 = smul.u32 48, %s21
      %p238 = scmp.lt.s32.totalorder %s20, 1
      %s239 = scalar_select %p238, %s20, 1
      %p240 = scmp.lt.s32.totalorder %s237, 47
      %s241 = scalar_select %p240, %s237, 47
      %s242 = smul.addr %s239, 144
      %s243 = sadd.s32 %s241, %s242
      %s244 = smul.addr %s243, 8
      %s245 = scalar_lea.vmem %s3, %s244
      %s246 = smul.u32 48, %s21
      %p247 = scmp.lt.s32.totalorder %s20, 1
      %s248 = scalar_select %p247, %s20, 1
      %p249 = scmp.lt.s32.totalorder %s21, 0
      %s250 = scalar_select %p249, %s21, 0
      %s251 = sadd.s32 %s250, %s248
      %s252 = smul.addr %s251, 8
      %s253 = scalar_lea.vmem %s4, %s252
      %v254 = vld [vmem:[%s236] sm:$0xff]
      %v255 = vld [vmem:[%s236 + $0x8] sm:$0xff]
      %v256 = vld [vmem:[%s236 + $0x10] sm:$0xff]
      %v257 = vld [vmem:[%s236 + $0x18] sm:$0xff]
      %v258 = vld [vmem:[%s236 + $0x20] sm:$0xff]
      %v259 = vld [vmem:[%s236 + $0x28] sm:$0xff]
      %v260 = vld [vmem:[%s236 + $0x30] sm:$0xff]
      %v261 = vld [vmem:[%s236 + $0x38] sm:$0xff]
      %v262 = vld [vmem:[%s236 + $0x40] sm:$0xff]
      %v263 = vld [vmem:[%s236 + $0x48] sm:$0xff]
      %v264 = vld [vmem:[%s236 + $0x50] sm:$0xff]
      %v265 = vld [vmem:[%s236 + $0x58] sm:$0xff]
      %v266 = vld [vmem:[%s236 + $0x60] sm:$0xff]
      %v267 = vld [vmem:[%s236 + $0x68] sm:$0xff]
      %v268 = vld [vmem:[%s236 + $0x70] sm:$0xff]
      %v269 = vld [vmem:[%s236 + $0x78] sm:$0xff]
      %v270 = vld [vmem:[%s236 + $0x80] sm:$0xff]
      %v271 = vld [vmem:[%s236 + $0x88] sm:$0xff]
      %v272 = vld [vmem:[%s236 + $0x90] sm:$0xff]
      %v273 = vld [vmem:[%s236 + $0x98] sm:$0xff]
      %v274 = vld [vmem:[%s236 + $0xa0] sm:$0xff]
      %v275 = vld [vmem:[%s236 + $0xa8] sm:$0xff]
      %v276 = vld [vmem:[%s236 + $0xb0] sm:$0xff]
      %v277 = vld [vmem:[%s236 + $0xb8] sm:$0xff]
      %v278 = vld [vmem:[%s236 + $0xc0] sm:$0xff]
      %v279 = vld [vmem:[%s236 + $0xc8] sm:$0xff]
      %v280 = vld [vmem:[%s236 + $0xd0] sm:$0xff]
      %v281 = vld [vmem:[%s236 + $0xd8] sm:$0xff]
      %v282 = vld [vmem:[%s236 + $0xe0] sm:$0xff]
      %v283 = vld [vmem:[%s236 + $0xe8] sm:$0xff]
      %v284 = vld [vmem:[%s236 + $0xf0] sm:$0xff]
      %v285 = vld [vmem:[%s236 + $0xf8] sm:$0xff]
      %v286 = vld [vmem:[%s236 + $0x100] sm:$0xff]
      %v287 = vld [vmem:[%s236 + $0x108] sm:$0xff]
      %v288 = vld [vmem:[%s236 + $0x110] sm:$0xff]
      %v289 = vld [vmem:[%s236 + $0x118] sm:$0xff]
      %v290 = vld [vmem:[%s236 + $0x120] sm:$0xff]
      %v291 = vld [vmem:[%s236 + $0x128] sm:$0xff]
      %v292 = vld [vmem:[%s236 + $0x130] sm:$0xff]
      %v293 = vld [vmem:[%s236 + $0x138] sm:$0xff]
      %v294 = vld [vmem:[%s236 + $0x140] sm:$0xff]
      %v295 = vld [vmem:[%s236 + $0x148] sm:$0xff]
      %v296 = vld [vmem:[%s236 + $0x150] sm:$0xff]
      %v297 = vld [vmem:[%s236 + $0x158] sm:$0xff]
      %v298 = vld [vmem:[%s236 + $0x160] sm:$0xff]
      %v299 = vld [vmem:[%s236 + $0x168] sm:$0xff]
      %v300 = vld [vmem:[%s236 + $0x170] sm:$0xff]
      %v301 = vld [vmem:[%s236 + $0x178] sm:$0xff]
      %v302 = vld [vmem:[%s236 + $0x1] sm:$0xff]
      %v303 = vld [vmem:[%s236 + $0x9] sm:$0xff]
      %v304 = vld [vmem:[%s236 + $0x11] sm:$0xff]
      %v305 = vld [vmem:[%s236 + $0x19] sm:$0xff]
      %v306 = vld [vmem:[%s236 + $0x21] sm:$0xff]
      %v307 = vld [vmem:[%s236 + $0x29] sm:$0xff]
      %v308 = vld [vmem:[%s236 + $0x31] sm:$0xff]
      %v309 = vld [vmem:[%s236 + $0x39] sm:$0xff]
      %v310 = vld [vmem:[%s236 + $0x41] sm:$0xff]
      %v311 = vld [vmem:[%s236 + $0x49] sm:$0xff]
      %v312 = vld [vmem:[%s236 + $0x51] sm:$0xff]
      %v313 = vld [vmem:[%s236 + $0x59] sm:$0xff]
      %v314 = vld [vmem:[%s236 + $0x61] sm:$0xff]
      %v315 = vld [vmem:[%s236 + $0x69] sm:$0xff]
      %v316 = vld [vmem:[%s236 + $0x71] sm:$0xff]
      %v317 = vld [vmem:[%s236 + $0x79] sm:$0xff]
      %v318 = vld [vmem:[%s236 + $0x81] sm:$0xff]
      %v319 = vld [vmem:[%s236 + $0x89] sm:$0xff]
      %v320 = vld [vmem:[%s236 + $0x91] sm:$0xff]
      %v321 = vld [vmem:[%s236 + $0x99] sm:$0xff]
      %v322 = vld [vmem:[%s236 + $0xa1] sm:$0xff]
      %v323 = vld [vmem:[%s236 + $0xa9] sm:$0xff]
      %v324 = vld [vmem:[%s236 + $0xb1] sm:$0xff]
      %v325 = vld [vmem:[%s236 + $0xb9] sm:$0xff]
      %v326 = vld [vmem:[%s236 + $0xc1] sm:$0xff]
      %v327 = vld [vmem:[%s236 + $0xc9] sm:$0xff]
      %v328 = vld [vmem:[%s236 + $0xd1] sm:$0xff]
      %v329 = vld [vmem:[%s236 + $0xd9] sm:$0xff]
      %v330 = vld [vmem:[%s236 + $0xe1] sm:$0xff]
      %v331 = vld [vmem:[%s236 + $0xe9] sm:$0xff]
      %v332 = vld [vmem:[%s236 + $0xf1] sm:$0xff]
      %v333 = vld [vmem:[%s236 + $0xf9] sm:$0xff]
      %v334 = vld [vmem:[%s236 + $0x101] sm:$0xff]
      %v335 = vld [vmem:[%s236 + $0x109] sm:$0xff]
      %v336 = vld [vmem:[%s236 + $0x111] sm:$0xff]
      %v337 = vld [vmem:[%s236 + $0x119] sm:$0xff]
      %v338 = vld [vmem:[%s236 + $0x121] sm:$0xff]
      %v339 = vld [vmem:[%s236 + $0x129] sm:$0xff]
      %v340 = vld [vmem:[%s236 + $0x131] sm:$0xff]
      %v341 = vld [vmem:[%s236 + $0x139] sm:$0xff]
      %v342 = vld [vmem:[%s236 + $0x141] sm:$0xff]
      %v343 = vld [vmem:[%s236 + $0x149] sm:$0xff]
      %v344 = vld [vmem:[%s236 + $0x151] sm:$0xff]
      %v345 = vld [vmem:[%s236 + $0x159] sm:$0xff]
      %v346 = vld [vmem:[%s236 + $0x161] sm:$0xff]
      %v347 = vld [vmem:[%s236 + $0x169] sm:$0xff]
      %v348 = vld [vmem:[%s236 + $0x171] sm:$0xff]
      %v349 = vld [vmem:[%s236 + $0x179] sm:$0xff]
      %v350 = vld [vmem:[%s236 + $0x2] sm:$0xff]
      %v351 = vld [vmem:[%s236 + $0xa] sm:$0xff]
      %v352 = vld [vmem:[%s236 + $0x12] sm:$0xff]
      %v353 = vld [vmem:[%s236 + $0x1a] sm:$0xff]
      %v354 = vld [vmem:[%s236 + $0x22] sm:$0xff]
      %v355 = vld [vmem:[%s236 + $0x2a] sm:$0xff]
      %v356 = vld [vmem:[%s236 + $0x32] sm:$0xff]
      %v357 = vld [vmem:[%s236 + $0x3a] sm:$0xff]
      %v358 = vld [vmem:[%s236 + $0x42] sm:$0xff]
      %v359 = vld [vmem:[%s236 + $0x4a] sm:$0xff]
      %v360 = vld [vmem:[%s236 + $0x52] sm:$0xff]
      %v361 = vld [vmem:[%s236 + $0x5a] sm:$0xff]
      %v362 = vld [vmem:[%s236 + $0x62] sm:$0xff]
      %v363 = vld [vmem:[%s236 + $0x6a] sm:$0xff]
      %v364 = vld [vmem:[%s236 + $0x72] sm:$0xff]
      %v365 = vld [vmem:[%s236 + $0x7a] sm:$0xff]
      %v366 = vld [vmem:[%s236 + $0x82] sm:$0xff]
      %v367 = vld [vmem:[%s236 + $0x8a] sm:$0xff]
      %v368 = vld [vmem:[%s236 + $0x92] sm:$0xff]
      %v369 = vld [vmem:[%s236 + $0x9a] sm:$0xff]
      %v370 = vld [vmem:[%s236 + $0xa2] sm:$0xff]
      %v371 = vld [vmem:[%s236 + $0xaa] sm:$0xff]
      %v372 = vld [vmem:[%s236 + $0xb2] sm:$0xff]
      %v373 = vld [vmem:[%s236 + $0xba] sm:$0xff]
      %v374 = vld [vmem:[%s236 + $0xc2] sm:$0xff]
      %v375 = vld [vmem:[%s236 + $0xca] sm:$0xff]
      %v376 = vld [vmem:[%s236 + $0xd2] sm:$0xff]
      %v377 = vld [vmem:[%s236 + $0xda] sm:$0xff]
      %v378 = vld [vmem:[%s236 + $0xe2] sm:$0xff]
      %v379 = vld [vmem:[%s236 + $0xea] sm:$0xff]
      %v380 = vld [vmem:[%s236 + $0xf2] sm:$0xff]
      %v381 = vld [vmem:[%s236 + $0xfa] sm:$0xff]
      %v382 = vld [vmem:[%s236 + $0x102] sm:$0xff]
      %v383 = vld [vmem:[%s236 + $0x10a] sm:$0xff]
      %v384 = vld [vmem:[%s236 + $0x112] sm:$0xff]
      %v385 = vld [vmem:[%s236 + $0x11a] sm:$0xff]
      %v386 = vld [vmem:[%s236 + $0x122] sm:$0xff]
      %v387 = vld [vmem:[%s236 + $0x12a] sm:$0xff]
      %v388 = vld [vmem:[%s236 + $0x132] sm:$0xff]
      %v389 = vld [vmem:[%s236 + $0x13a] sm:$0xff]
      %v390 = vld [vmem:[%s236 + $0x142] sm:$0xff]
      %v391 = vld [vmem:[%s236 + $0x14a] sm:$0xff]
      %v392 = vld [vmem:[%s236 + $0x152] sm:$0xff]
      %v393 = vld [vmem:[%s236 + $0x15a] sm:$0xff]
      %v394 = vld [vmem:[%s236 + $0x162] sm:$0xff]
      %v395 = vld [vmem:[%s236 + $0x16a] sm:$0xff]
      %v396 = vld [vmem:[%s236 + $0x172] sm:$0xff]
      %v397 = vld [vmem:[%s236 + $0x17a] sm:$0xff]
      %v398 = vld [vmem:[%s236 + $0x180] sm:$0xff]
      %v399 = vld [vmem:[%s236 + $0x188] sm:$0xff]
      %v400 = vld [vmem:[%s236 + $0x190] sm:$0xff]
      %v401 = vld [vmem:[%s236 + $0x181] sm:$0xff]
      %v402 = vld [vmem:[%s236 + $0x189] sm:$0xff]
      %v403 = vld [vmem:[%s236 + $0x191] sm:$0xff]
      %v404 = vld [vmem:[%s236 + $0x182] sm:$0xff]
      %v405 = vld [vmem:[%s236 + $0x18a] sm:$0xff]
      %v406 = vld [vmem:[%s236 + $0x192] sm:$0xff]
      %v407 = vld [vmem:[%s236 + $0x198] sm:$0xff]
      %v408 = vld [vmem:[%s236 + $0x1a0] sm:$0xff]
      %v409 = vld [vmem:[%s236 + $0x1a8] sm:$0xff]
      %v410 = vld [vmem:[%s236 + $0x199] sm:$0xff]
      %v411 = vld [vmem:[%s236 + $0x1a1] sm:$0xff]
      %v412 = vld [vmem:[%s236 + $0x1a9] sm:$0xff]
      %v413 = vld [vmem:[%s236 + $0x19a] sm:$0xff]
      %v414 = vld [vmem:[%s236 + $0x1a2] sm:$0xff]
      %v415 = vld [vmem:[%s236 + $0x1aa] sm:$0xff]
      %464 = vrot.lane.b32.xlu0 %v302, 4
      %v465 = vpop.permute.xlu0 %464
      %466 = vrot.lane.b32.xlu0 %v303, 4
      %v467 = vpop.permute.xlu0 %466
      %468 = vrot.lane.b32.xlu0 %v304, 4
      %v469 = vpop.permute.xlu0 %468
      %470 = vrot.lane.b32.xlu0 %v305, 4
      %v471 = vpop.permute.xlu0 %470
      %472 = vrot.lane.b32.xlu0 %v306, 4
      %v473 = vpop.permute.xlu0 %472
      %474 = vrot.lane.b32.xlu0 %v307, 4
      %v475 = vpop.permute.xlu0 %474
      %476 = vrot.lane.b32.xlu0 %v308, 4
      %v477 = vpop.permute.xlu0 %476
      %478 = vrot.lane.b32.xlu0 %v309, 4
      %v479 = vpop.permute.xlu0 %478
      %480 = vrot.lane.b32.xlu0 %v310, 4
      %v481 = vpop.permute.xlu0 %480
      %482 = vrot.lane.b32.xlu0 %v311, 4
      %v483 = vpop.permute.xlu0 %482
      %484 = vrot.lane.b32.xlu0 %v312, 4
      %v485 = vpop.permute.xlu0 %484
      %486 = vrot.lane.b32.xlu0 %v313, 4
      %v487 = vpop.permute.xlu0 %486
      %488 = vrot.lane.b32.xlu0 %v314, 4
      %v489 = vpop.permute.xlu0 %488
      %490 = vrot.lane.b32.xlu0 %v315, 4
      %v491 = vpop.permute.xlu0 %490
      %492 = vrot.lane.b32.xlu0 %v316, 4
      %v493 = vpop.permute.xlu0 %492
      %494 = vrot.lane.b32.xlu0 %v317, 4
      %v495 = vpop.permute.xlu0 %494
      %496 = vrot.lane.b32.xlu0 %v318, 4
      %v497 = vpop.permute.xlu0 %496
      %498 = vrot.lane.b32.xlu0 %v319, 4
      %v499 = vpop.permute.xlu0 %498
      %500 = vrot.lane.b32.xlu0 %v320, 4
      %v501 = vpop.permute.xlu0 %500
      %502 = vrot.lane.b32.xlu0 %v321, 4
      %v503 = vpop.permute.xlu0 %502
      %504 = vrot.lane.b32.xlu0 %v322, 4
      %v505 = vpop.permute.xlu0 %504
      %506 = vrot.lane.b32.xlu0 %v323, 4
      %v507 = vpop.permute.xlu0 %506
      %508 = vrot.lane.b32.xlu0 %v324, 4
      %v509 = vpop.permute.xlu0 %508
      %510 = vrot.lane.b32.xlu0 %v325, 4
      %v511 = vpop.permute.xlu0 %510
      %512 = vrot.lane.b32.xlu0 %v326, 4
      %v513 = vpop.permute.xlu0 %512
      %514 = vrot.lane.b32.xlu0 %v327, 4
      %v515 = vpop.permute.xlu0 %514
      %516 = vrot.lane.b32.xlu0 %v328, 4
      %v517 = vpop.permute.xlu0 %516
      %518 = vrot.lane.b32.xlu0 %v329, 4
      %v519 = vpop.permute.xlu0 %518
      %520 = vrot.lane.b32.xlu0 %v330, 4
      %v521 = vpop.permute.xlu0 %520
      %522 = vrot.lane.b32.xlu0 %v331, 4
      %v523 = vpop.permute.xlu0 %522
      %524 = vrot.lane.b32.xlu0 %v332, 4
      %v525 = vpop.permute.xlu0 %524
      %526 = vrot.lane.b32.xlu0 %v333, 4
      %v527 = vpop.permute.xlu0 %526
      %528 = vrot.lane.b32.xlu0 %v334, 4
      %v529 = vpop.permute.xlu0 %528
      %530 = vrot.lane.b32.xlu0 %v335, 4
      %v531 = vpop.permute.xlu0 %530
      %532 = vrot.lane.b32.xlu0 %v336, 4
      %v533 = vpop.permute.xlu0 %532
      %534 = vrot.lane.b32.xlu0 %v337, 4
      %v535 = vpop.permute.xlu0 %534
      %536 = vrot.lane.b32.xlu0 %v338, 4
      %v537 = vpop.permute.xlu0 %536
      %538 = vrot.lane.b32.xlu0 %v339, 4
      %v539 = vpop.permute.xlu0 %538
      %540 = vrot.lane.b32.xlu0 %v340, 4
      %v541 = vpop.permute.xlu0 %540
      %542 = vrot.lane.b32.xlu0 %v341, 4
      %v543 = vpop.permute.xlu0 %542
      %544 = vrot.lane.b32.xlu0 %v342, 4
      %v545 = vpop.permute.xlu0 %544
      %546 = vrot.lane.b32.xlu0 %v343, 4
      %v547 = vpop.permute.xlu0 %546
      %548 = vrot.lane.b32.xlu0 %v344, 4
      %v549 = vpop.permute.xlu0 %548
      %550 = vrot.lane.b32.xlu0 %v345, 4
      %v551 = vpop.permute.xlu0 %550
      %552 = vrot.lane.b32.xlu0 %v346, 4
      %v553 = vpop.permute.xlu0 %552
      %554 = vrot.lane.b32.xlu0 %v347, 4
      %v555 = vpop.permute.xlu0 %554
      %556 = vrot.lane.b32.xlu0 %v348, 4
      %v557 = vpop.permute.xlu0 %556
      %558 = vrot.lane.b32.xlu0 %v349, 4
      %v559 = vpop.permute.xlu0 %558
      %656 = vrot.lane.b32.xlu0 %v350, 8
      %v657 = vpop.permute.xlu0 %656
      %658 = vrot.lane.b32.xlu0 %v351, 8
      %v659 = vpop.permute.xlu0 %658
      %660 = vrot.lane.b32.xlu0 %v352, 8
      %v661 = vpop.permute.xlu0 %660
      %662 = vrot.lane.b32.xlu0 %v353, 8
      %v663 = vpop.permute.xlu0 %662
      %664 = vrot.lane.b32.xlu0 %v354, 8
      %v665 = vpop.permute.xlu0 %664
      %666 = vrot.lane.b32.xlu0 %v355, 8
      %v667 = vpop.permute.xlu0 %666
      %668 = vrot.lane.b32.xlu0 %v356, 8
      %v669 = vpop.permute.xlu0 %668
      %670 = vrot.lane.b32.xlu0 %v357, 8
      %v671 = vpop.permute.xlu0 %670
      %672 = vrot.lane.b32.xlu0 %v358, 8
      %v673 = vpop.permute.xlu0 %672
      %674 = vrot.lane.b32.xlu0 %v359, 8
      %v675 = vpop.permute.xlu0 %674
      %676 = vrot.lane.b32.xlu0 %v360, 8
      %v677 = vpop.permute.xlu0 %676
      %678 = vrot.lane.b32.xlu0 %v361, 8
      %v679 = vpop.permute.xlu0 %678
      %680 = vrot.lane.b32.xlu0 %v362, 8
      %v681 = vpop.permute.xlu0 %680
      %682 = vrot.lane.b32.xlu0 %v363, 8
      %v683 = vpop.permute.xlu0 %682
      %684 = vrot.lane.b32.xlu0 %v364, 8
      %v685 = vpop.permute.xlu0 %684
      %686 = vrot.lane.b32.xlu0 %v365, 8
      %v687 = vpop.permute.xlu0 %686
      %688 = vrot.lane.b32.xlu0 %v366, 8
      %v689 = vpop.permute.xlu0 %688
      %690 = vrot.lane.b32.xlu0 %v367, 8
      %v691 = vpop.permute.xlu0 %690
      %692 = vrot.lane.b32.xlu0 %v368, 8
      %v693 = vpop.permute.xlu0 %692
      %694 = vrot.lane.b32.xlu0 %v369, 8
      %v695 = vpop.permute.xlu0 %694
      %696 = vrot.lane.b32.xlu0 %v370, 8
      %v697 = vpop.permute.xlu0 %696
      %698 = vrot.lane.b32.xlu0 %v371, 8
      %v699 = vpop.permute.xlu0 %698
      %700 = vrot.lane.b32.xlu0 %v372, 8
      %v701 = vpop.permute.xlu0 %700
      %702 = vrot.lane.b32.xlu0 %v373, 8
      %v703 = vpop.permute.xlu0 %702
      %704 = vrot.lane.b32.xlu0 %v374, 8
      %v705 = vpop.permute.xlu0 %704
      %706 = vrot.lane.b32.xlu0 %v375, 8
      %v707 = vpop.permute.xlu0 %706
      %708 = vrot.lane.b32.xlu0 %v376, 8
      %v709 = vpop.permute.xlu0 %708
      %710 = vrot.lane.b32.xlu0 %v377, 8
      %v711 = vpop.permute.xlu0 %710
      %712 = vrot.lane.b32.xlu0 %v378, 8
      %v713 = vpop.permute.xlu0 %712
      %714 = vrot.lane.b32.xlu0 %v379, 8
      %v715 = vpop.permute.xlu0 %714
      %716 = vrot.lane.b32.xlu0 %v380, 8
      %v717 = vpop.permute.xlu0 %716
      %718 = vrot.lane.b32.xlu0 %v381, 8
      %v719 = vpop.permute.xlu0 %718
      %720 = vrot.lane.b32.xlu0 %v382, 8
      %v721 = vpop.permute.xlu0 %720
      %722 = vrot.lane.b32.xlu0 %v383, 8
      %v723 = vpop.permute.xlu0 %722
      %724 = vrot.lane.b32.xlu0 %v384, 8
      %v725 = vpop.permute.xlu0 %724
      %726 = vrot.lane.b32.xlu0 %v385, 8
      %v727 = vpop.permute.xlu0 %726
      %728 = vrot.lane.b32.xlu0 %v386, 8
      %v729 = vpop.permute.xlu0 %728
      %730 = vrot.lane.b32.xlu0 %v387, 8
      %v731 = vpop.permute.xlu0 %730
      %732 = vrot.lane.b32.xlu0 %v388, 8
      %v733 = vpop.permute.xlu0 %732
      %734 = vrot.lane.b32.xlu0 %v389, 8
      %v735 = vpop.permute.xlu0 %734
      %736 = vrot.lane.b32.xlu0 %v390, 8
      %v737 = vpop.permute.xlu0 %736
      %738 = vrot.lane.b32.xlu0 %v391, 8
      %v739 = vpop.permute.xlu0 %738
      %740 = vrot.lane.b32.xlu0 %v392, 8
      %v741 = vpop.permute.xlu0 %740
      %742 = vrot.lane.b32.xlu0 %v393, 8
      %v743 = vpop.permute.xlu0 %742
      %744 = vrot.lane.b32.xlu0 %v394, 8
      %v745 = vpop.permute.xlu0 %744
      %746 = vrot.lane.b32.xlu0 %v395, 8
      %v747 = vpop.permute.xlu0 %746
      %748 = vrot.lane.b32.xlu0 %v396, 8
      %v749 = vpop.permute.xlu0 %748
      %750 = vrot.lane.b32.xlu0 %v397, 8
      %v751 = vpop.permute.xlu0 %750
      %848 = vrot.lane.b32.xlu0 %v257, 12
      %v849 = vpop.permute.xlu0 %848
      %850 = vrot.lane.b32.xlu0 %v258, 12
      %v851 = vpop.permute.xlu0 %850
      %852 = vrot.lane.b32.xlu0 %v259, 12
      %v853 = vpop.permute.xlu0 %852
      %854 = vrot.lane.b32.xlu0 %v260, 12
      %v855 = vpop.permute.xlu0 %854
      %856 = vrot.lane.b32.xlu0 %v261, 12
      %v857 = vpop.permute.xlu0 %856
      %858 = vrot.lane.b32.xlu0 %v262, 12
      %v859 = vpop.permute.xlu0 %858
      %860 = vrot.lane.b32.xlu0 %v263, 12
      %v861 = vpop.permute.xlu0 %860
      %862 = vrot.lane.b32.xlu0 %v264, 12
      %v863 = vpop.permute.xlu0 %862
      %864 = vrot.lane.b32.xlu0 %v265, 12
      %v865 = vpop.permute.xlu0 %864
      %866 = vrot.lane.b32.xlu0 %v266, 12
      %v867 = vpop.permute.xlu0 %866
      %868 = vrot.lane.b32.xlu0 %v267, 12
      %v869 = vpop.permute.xlu0 %868
      %870 = vrot.lane.b32.xlu0 %v268, 12
      %v871 = vpop.permute.xlu0 %870
      %872 = vrot.lane.b32.xlu0 %v269, 12
      %v873 = vpop.permute.xlu0 %872
      %874 = vrot.lane.b32.xlu0 %v270, 12
      %v875 = vpop.permute.xlu0 %874
      %876 = vrot.lane.b32.xlu0 %v271, 12
      %v877 = vpop.permute.xlu0 %876
      %878 = vrot.lane.b32.xlu0 %v272, 12
      %v879 = vpop.permute.xlu0 %878
      %880 = vrot.lane.b32.xlu0 %v273, 12
      %v881 = vpop.permute.xlu0 %880
      %882 = vrot.lane.b32.xlu0 %v274, 12
      %v883 = vpop.permute.xlu0 %882
      %884 = vrot.lane.b32.xlu0 %v275, 12
      %v885 = vpop.permute.xlu0 %884
      %886 = vrot.lane.b32.xlu0 %v276, 12
      %v887 = vpop.permute.xlu0 %886
      %888 = vrot.lane.b32.xlu0 %v277, 12
      %v889 = vpop.permute.xlu0 %888
      %890 = vrot.lane.b32.xlu0 %v278, 12
      %v891 = vpop.permute.xlu0 %890
      %892 = vrot.lane.b32.xlu0 %v279, 12
      %v893 = vpop.permute.xlu0 %892
      %894 = vrot.lane.b32.xlu0 %v280, 12
      %v895 = vpop.permute.xlu0 %894
      %896 = vrot.lane.b32.xlu0 %v281, 12
      %v897 = vpop.permute.xlu0 %896
      %898 = vrot.lane.b32.xlu0 %v282, 12
      %v899 = vpop.permute.xlu0 %898
      %900 = vrot.lane.b32.xlu0 %v283, 12
      %v901 = vpop.permute.xlu0 %900
      %902 = vrot.lane.b32.xlu0 %v284, 12
      %v903 = vpop.permute.xlu0 %902
      %904 = vrot.lane.b32.xlu0 %v285, 12
      %v905 = vpop.permute.xlu0 %904
      %906 = vrot.lane.b32.xlu0 %v286, 12
      %v907 = vpop.permute.xlu0 %906
      %908 = vrot.lane.b32.xlu0 %v287, 12
      %v909 = vpop.permute.xlu0 %908
      %910 = vrot.lane.b32.xlu0 %v288, 12
      %v911 = vpop.permute.xlu0 %910
      %912 = vrot.lane.b32.xlu0 %v289, 12
      %v913 = vpop.permute.xlu0 %912
      %914 = vrot.lane.b32.xlu0 %v290, 12
      %v915 = vpop.permute.xlu0 %914
      %916 = vrot.lane.b32.xlu0 %v291, 12
      %v917 = vpop.permute.xlu0 %916
      %918 = vrot.lane.b32.xlu0 %v292, 12
      %v919 = vpop.permute.xlu0 %918
      %920 = vrot.lane.b32.xlu0 %v293, 12
      %v921 = vpop.permute.xlu0 %920
      %922 = vrot.lane.b32.xlu0 %v294, 12
      %v923 = vpop.permute.xlu0 %922
      %924 = vrot.lane.b32.xlu0 %v295, 12
      %v925 = vpop.permute.xlu0 %924
      %926 = vrot.lane.b32.xlu0 %v296, 12
      %v927 = vpop.permute.xlu0 %926
      %928 = vrot.lane.b32.xlu0 %v297, 12
      %v929 = vpop.permute.xlu0 %928
      %930 = vrot.lane.b32.xlu0 %v298, 12
      %v931 = vpop.permute.xlu0 %930
      %932 = vrot.lane.b32.xlu0 %v299, 12
      %v933 = vpop.permute.xlu0 %932
      %934 = vrot.lane.b32.xlu0 %v300, 12
      %v935 = vpop.permute.xlu0 %934
      %936 = vrot.lane.b32.xlu0 %v301, 12
      %v937 = vpop.permute.xlu0 %936
      %938 = vrot.lane.b32.xlu0 %v398, 12
      %v939 = vpop.permute.xlu0 %938
      %940 = vrot.lane.b32.xlu0 %v399, 12
      %v941 = vpop.permute.xlu0 %940
      %942 = vrot.lane.b32.xlu0 %v400, 12
      %v943 = vpop.permute.xlu0 %942
      %995 = vrot.lane.b32.xlu0 %v305, 16
      %v996 = vpop.permute.xlu0 %995
      %997 = vrot.lane.b32.xlu0 %v306, 16
      %v998 = vpop.permute.xlu0 %997
      %999 = vrot.lane.b32.xlu0 %v307, 16
      %v1000 = vpop.permute.xlu0 %999
      %1001 = vrot.lane.b32.xlu0 %v308, 16
      %v1002 = vpop.permute.xlu0 %1001
      %1003 = vrot.lane.b32.xlu0 %v309, 16
      %v1004 = vpop.permute.xlu0 %1003
      %1005 = vrot.lane.b32.xlu0 %v310, 16
      %v1006 = vpop.permute.xlu0 %1005
      %1007 = vrot.lane.b32.xlu0 %v311, 16
      %v1008 = vpop.permute.xlu0 %1007
      %1009 = vrot.lane.b32.xlu0 %v312, 16
      %v1010 = vpop.permute.xlu0 %1009
      %1011 = vrot.lane.b32.xlu0 %v313, 16
      %v1012 = vpop.permute.xlu0 %1011
      %1013 = vrot.lane.b32.xlu0 %v314, 16
      %v1014 = vpop.permute.xlu0 %1013
      %1015 = vrot.lane.b32.xlu0 %v315, 16
      %v1016 = vpop.permute.xlu0 %1015
      %1017 = vrot.lane.b32.xlu0 %v316, 16
      %v1018 = vpop.permute.xlu0 %1017
      %1019 = vrot.lane.b32.xlu0 %v317, 16
      %v1020 = vpop.permute.xlu0 %1019
      %1021 = vrot.lane.b32.xlu0 %v318, 16
      %v1022 = vpop.permute.xlu0 %1021
      %1023 = vrot.lane.b32.xlu0 %v319, 16
      %v1024 = vpop.permute.xlu0 %1023
      %1025 = vrot.lane.b32.xlu0 %v320, 16
      %v1026 = vpop.permute.xlu0 %1025
      %1027 = vrot.lane.b32.xlu0 %v321, 16
      %v1028 = vpop.permute.xlu0 %1027
      %1029 = vrot.lane.b32.xlu0 %v322, 16
      %v1030 = vpop.permute.xlu0 %1029
      %1031 = vrot.lane.b32.xlu0 %v323, 16
      %v1032 = vpop.permute.xlu0 %1031
      %1033 = vrot.lane.b32.xlu0 %v324, 16
      %v1034 = vpop.permute.xlu0 %1033
      %1035 = vrot.lane.b32.xlu0 %v325, 16
      %v1036 = vpop.permute.xlu0 %1035
      %1037 = vrot.lane.b32.xlu0 %v326, 16
      %v1038 = vpop.permute.xlu0 %1037
      %1039 = vrot.lane.b32.xlu0 %v327, 16
      %v1040 = vpop.permute.xlu0 %1039
      %1041 = vrot.lane.b32.xlu0 %v328, 16
      %v1042 = vpop.permute.xlu0 %1041
      %1043 = vrot.lane.b32.xlu0 %v329, 16
      %v1044 = vpop.permute.xlu0 %1043
      %1045 = vrot.lane.b32.xlu0 %v330, 16
      %v1046 = vpop.permute.xlu0 %1045
      %1047 = vrot.lane.b32.xlu0 %v331, 16
      %v1048 = vpop.permute.xlu0 %1047
      %1049 = vrot.lane.b32.xlu0 %v332, 16
      %v1050 = vpop.permute.xlu0 %1049
      %1051 = vrot.lane.b32.xlu0 %v333, 16
      %v1052 = vpop.permute.xlu0 %1051
      %1053 = vrot.lane.b32.xlu0 %v334, 16
      %v1054 = vpop.permute.xlu0 %1053
      %1055 = vrot.lane.b32.xlu0 %v335, 16
      %v1056 = vpop.permute.xlu0 %1055
      %1057 = vrot.lane.b32.xlu0 %v336, 16
      %v1058 = vpop.permute.xlu0 %1057
      %1059 = vrot.lane.b32.xlu0 %v337, 16
      %v1060 = vpop.permute.xlu0 %1059
      %1061 = vrot.lane.b32.xlu0 %v338, 16
      %v1062 = vpop.permute.xlu0 %1061
      %1063 = vrot.lane.b32.xlu0 %v339, 16
      %v1064 = vpop.permute.xlu0 %1063
      %1065 = vrot.lane.b32.xlu0 %v340, 16
      %v1066 = vpop.permute.xlu0 %1065
      %1067 = vrot.lane.b32.xlu0 %v341, 16
      %v1068 = vpop.permute.xlu0 %1067
      %1069 = vrot.lane.b32.xlu0 %v342, 16
      %v1070 = vpop.permute.xlu0 %1069
      %1071 = vrot.lane.b32.xlu0 %v343, 16
      %v1072 = vpop.permute.xlu0 %1071
      %1073 = vrot.lane.b32.xlu0 %v344, 16
      %v1074 = vpop.permute.xlu0 %1073
      %1075 = vrot.lane.b32.xlu0 %v345, 16
      %v1076 = vpop.permute.xlu0 %1075
      %1077 = vrot.lane.b32.xlu0 %v346, 16
      %v1078 = vpop.permute.xlu0 %1077
      %1079 = vrot.lane.b32.xlu0 %v347, 16
      %v1080 = vpop.permute.xlu0 %1079
      %1081 = vrot.lane.b32.xlu0 %v348, 16
      %v1082 = vpop.permute.xlu0 %1081
      %1083 = vrot.lane.b32.xlu0 %v349, 16
      %v1084 = vpop.permute.xlu0 %1083
      %1085 = vrot.lane.b32.xlu0 %v401, 16
      %v1086 = vpop.permute.xlu0 %1085
      %1087 = vrot.lane.b32.xlu0 %v402, 16
      %v1088 = vpop.permute.xlu0 %1087
      %1089 = vrot.lane.b32.xlu0 %v403, 16
      %v1090 = vpop.permute.xlu0 %1089
      %1142 = vrot.lane.b32.xlu0 %v353, 20
      %v1143 = vpop.permute.xlu0 %1142
      %1144 = vrot.lane.b32.xlu0 %v354, 20
      %v1145 = vpop.permute.xlu0 %1144
      %1146 = vrot.lane.b32.xlu0 %v355, 20
      %v1147 = vpop.permute.xlu0 %1146
      %1148 = vrot.lane.b32.xlu0 %v356, 20
      %v1149 = vpop.permute.xlu0 %1148
      %1150 = vrot.lane.b32.xlu0 %v357, 20
      %v1151 = vpop.permute.xlu0 %1150
      %1152 = vrot.lane.b32.xlu0 %v358, 20
      %v1153 = vpop.permute.xlu0 %1152
      %1154 = vrot.lane.b32.xlu0 %v359, 20
      %v1155 = vpop.permute.xlu0 %1154
      %1156 = vrot.lane.b32.xlu0 %v360, 20
      %v1157 = vpop.permute.xlu0 %1156
      %1158 = vrot.lane.b32.xlu0 %v361, 20
      %v1159 = vpop.permute.xlu0 %1158
      %1160 = vrot.lane.b32.xlu0 %v362, 20
      %v1161 = vpop.permute.xlu0 %1160
      %1162 = vrot.lane.b32.xlu0 %v363, 20
      %v1163 = vpop.permute.xlu0 %1162
      %1164 = vrot.lane.b32.xlu0 %v364, 20
      %v1165 = vpop.permute.xlu0 %1164
      %1166 = vrot.lane.b32.xlu0 %v365, 20
      %v1167 = vpop.permute.xlu0 %1166
      %1168 = vrot.lane.b32.xlu0 %v366, 20
      %v1169 = vpop.permute.xlu0 %1168
      %1170 = vrot.lane.b32.xlu0 %v367, 20
      %v1171 = vpop.permute.xlu0 %1170
      %1172 = vrot.lane.b32.xlu0 %v368, 20
      %v1173 = vpop.permute.xlu0 %1172
      %1174 = vrot.lane.b32.xlu0 %v369, 20
      %v1175 = vpop.permute.xlu0 %1174
      %1176 = vrot.lane.b32.xlu0 %v370, 20
      %v1177 = vpop.permute.xlu0 %1176
      %1178 = vrot.lane.b32.xlu0 %v371, 20
      %v1179 = vpop.permute.xlu0 %1178
      %1180 = vrot.lane.b32.xlu0 %v372, 20
      %v1181 = vpop.permute.xlu0 %1180
      %1182 = vrot.lane.b32.xlu0 %v373, 20
      %v1183 = vpop.permute.xlu0 %1182
      %1184 = vrot.lane.b32.xlu0 %v374, 20
      %v1185 = vpop.permute.xlu0 %1184
      %1186 = vrot.lane.b32.xlu0 %v375, 20
      %v1187 = vpop.permute.xlu0 %1186
      %1188 = vrot.lane.b32.xlu0 %v376, 20
      %v1189 = vpop.permute.xlu0 %1188
      %1190 = vrot.lane.b32.xlu0 %v377, 20
      %v1191 = vpop.permute.xlu0 %1190
      %1192 = vrot.lane.b32.xlu0 %v378, 20
      %v1193 = vpop.permute.xlu0 %1192
      %1194 = vrot.lane.b32.xlu0 %v379, 20
      %v1195 = vpop.permute.xlu0 %1194
      %1196 = vrot.lane.b32.xlu0 %v380, 20
      %v1197 = vpop.permute.xlu0 %1196
      %1198 = vrot.lane.b32.xlu0 %v381, 20
      %v1199 = vpop.permute.xlu0 %1198
      %1200 = vrot.lane.b32.xlu0 %v382, 20
      %v1201 = vpop.permute.xlu0 %1200
      %1202 = vrot.lane.b32.xlu0 %v383, 20
      %v1203 = vpop.permute.xlu0 %1202
      %1204 = vrot.lane.b32.xlu0 %v384, 20
      %v1205 = vpop.permute.xlu0 %1204
      %1206 = vrot.lane.b32.xlu0 %v385, 20
      %v1207 = vpop.permute.xlu0 %1206
      %1208 = vrot.lane.b32.xlu0 %v386, 20
      %v1209 = vpop.permute.xlu0 %1208
      %1210 = vrot.lane.b32.xlu0 %v387, 20
      %v1211 = vpop.permute.xlu0 %1210
      %1212 = vrot.lane.b32.xlu0 %v388, 20
      %v1213 = vpop.permute.xlu0 %1212
      %1214 = vrot.lane.b32.xlu0 %v389, 20
      %v1215 = vpop.permute.xlu0 %1214
      %1216 = vrot.lane.b32.xlu0 %v390, 20
      %v1217 = vpop.permute.xlu0 %1216
      %1218 = vrot.lane.b32.xlu0 %v391, 20
      %v1219 = vpop.permute.xlu0 %1218
      %1220 = vrot.lane.b32.xlu0 %v392, 20
      %v1221 = vpop.permute.xlu0 %1220
      %1222 = vrot.lane.b32.xlu0 %v393, 20
      %v1223 = vpop.permute.xlu0 %1222
      %1224 = vrot.lane.b32.xlu0 %v394, 20
      %v1225 = vpop.permute.xlu0 %1224
      %1226 = vrot.lane.b32.xlu0 %v395, 20
      %v1227 = vpop.permute.xlu0 %1226
      %1228 = vrot.lane.b32.xlu0 %v396, 20
      %v1229 = vpop.permute.xlu0 %1228
      %1230 = vrot.lane.b32.xlu0 %v397, 20
      %v1231 = vpop.permute.xlu0 %1230
      %1232 = vrot.lane.b32.xlu0 %v404, 20
      %v1233 = vpop.permute.xlu0 %1232
      %1234 = vrot.lane.b32.xlu0 %v405, 20
      %v1235 = vpop.permute.xlu0 %1234
      %1236 = vrot.lane.b32.xlu0 %v406, 20
      %v1237 = vpop.permute.xlu0 %1236
      %1289 = vrot.lane.b32.xlu0 %v260, 24
      %v1290 = vpop.permute.xlu0 %1289
      %1291 = vrot.lane.b32.xlu0 %v261, 24
      %v1292 = vpop.permute.xlu0 %1291
      %1293 = vrot.lane.b32.xlu0 %v262, 24
      %v1294 = vpop.permute.xlu0 %1293
      %1295 = vrot.lane.b32.xlu0 %v263, 24
      %v1296 = vpop.permute.xlu0 %1295
      %1297 = vrot.lane.b32.xlu0 %v264, 24
      %v1298 = vpop.permute.xlu0 %1297
      %1299 = vrot.lane.b32.xlu0 %v265, 24
      %v1300 = vpop.permute.xlu0 %1299
      %1301 = vrot.lane.b32.xlu0 %v266, 24
      %v1302 = vpop.permute.xlu0 %1301
      %1303 = vrot.lane.b32.xlu0 %v267, 24
      %v1304 = vpop.permute.xlu0 %1303
      %1305 = vrot.lane.b32.xlu0 %v268, 24
      %v1306 = vpop.permute.xlu0 %1305
      %1307 = vrot.lane.b32.xlu0 %v269, 24
      %v1308 = vpop.permute.xlu0 %1307
      %1309 = vrot.lane.b32.xlu0 %v270, 24
      %v1310 = vpop.permute.xlu0 %1309
      %1311 = vrot.lane.b32.xlu0 %v271, 24
      %v1312 = vpop.permute.xlu0 %1311
      %1313 = vrot.lane.b32.xlu0 %v272, 24
      %v1314 = vpop.permute.xlu0 %1313
      %1315 = vrot.lane.b32.xlu0 %v273, 24
      %v1316 = vpop.permute.xlu0 %1315
      %1317 = vrot.lane.b32.xlu0 %v274, 24
      %v1318 = vpop.permute.xlu0 %1317
      %1319 = vrot.lane.b32.xlu0 %v275, 24
      %v1320 = vpop.permute.xlu0 %1319
      %1321 = vrot.lane.b32.xlu0 %v276, 24
      %v1322 = vpop.permute.xlu0 %1321
      %1323 = vrot.lane.b32.xlu0 %v277, 24
      %v1324 = vpop.permute.xlu0 %1323
      %1325 = vrot.lane.b32.xlu0 %v278, 24
      %v1326 = vpop.permute.xlu0 %1325
      %1327 = vrot.lane.b32.xlu0 %v279, 24
      %v1328 = vpop.permute.xlu0 %1327
      %1329 = vrot.lane.b32.xlu0 %v280, 24
      %v1330 = vpop.permute.xlu0 %1329
      %1331 = vrot.lane.b32.xlu0 %v281, 24
      %v1332 = vpop.permute.xlu0 %1331
      %1333 = vrot.lane.b32.xlu0 %v282, 24
      %v1334 = vpop.permute.xlu0 %1333
      %1335 = vrot.lane.b32.xlu0 %v283, 24
      %v1336 = vpop.permute.xlu0 %1335
      %1337 = vrot.lane.b32.xlu0 %v284, 24
      %v1338 = vpop.permute.xlu0 %1337
      %1339 = vrot.lane.b32.xlu0 %v285, 24
      %v1340 = vpop.permute.xlu0 %1339
      %1341 = vrot.lane.b32.xlu0 %v286, 24
      %v1342 = vpop.permute.xlu0 %1341
      %1343 = vrot.lane.b32.xlu0 %v287, 24
      %v1344 = vpop.permute.xlu0 %1343
      %1345 = vrot.lane.b32.xlu0 %v288, 24
      %v1346 = vpop.permute.xlu0 %1345
      %1347 = vrot.lane.b32.xlu0 %v289, 24
      %v1348 = vpop.permute.xlu0 %1347
      %1349 = vrot.lane.b32.xlu0 %v290, 24
      %v1350 = vpop.permute.xlu0 %1349
      %1351 = vrot.lane.b32.xlu0 %v291, 24
      %v1352 = vpop.permute.xlu0 %1351
      %1353 = vrot.lane.b32.xlu0 %v292, 24
      %v1354 = vpop.permute.xlu0 %1353
      %1355 = vrot.lane.b32.xlu0 %v293, 24
      %v1356 = vpop.permute.xlu0 %1355
      %1357 = vrot.lane.b32.xlu0 %v294, 24
      %v1358 = vpop.permute.xlu0 %1357
      %1359 = vrot.lane.b32.xlu0 %v295, 24
      %v1360 = vpop.permute.xlu0 %1359
      %1361 = vrot.lane.b32.xlu0 %v296, 24
      %v1362 = vpop.permute.xlu0 %1361
      %1363 = vrot.lane.b32.xlu0 %v297, 24
      %v1364 = vpop.permute.xlu0 %1363
      %1365 = vrot.lane.b32.xlu0 %v298, 24
      %v1366 = vpop.permute.xlu0 %1365
      %1367 = vrot.lane.b32.xlu0 %v299, 24
      %v1368 = vpop.permute.xlu0 %1367
      %1369 = vrot.lane.b32.xlu0 %v300, 24
      %v1370 = vpop.permute.xlu0 %1369
      %1371 = vrot.lane.b32.xlu0 %v301, 24
      %v1372 = vpop.permute.xlu0 %1371
      %1373 = vrot.lane.b32.xlu0 %v398, 24
      %v1374 = vpop.permute.xlu0 %1373
      %1375 = vrot.lane.b32.xlu0 %v399, 24
      %v1376 = vpop.permute.xlu0 %1375
      %1377 = vrot.lane.b32.xlu0 %v400, 24
      %v1378 = vpop.permute.xlu0 %1377
      %1379 = vrot.lane.b32.xlu0 %v407, 24
      %v1380 = vpop.permute.xlu0 %1379
      %1381 = vrot.lane.b32.xlu0 %v408, 24
      %v1382 = vpop.permute.xlu0 %1381
      %1383 = vrot.lane.b32.xlu0 %v409, 24
      %v1384 = vpop.permute.xlu0 %1383
      %1436 = vrot.lane.b32.xlu0 %v308, 28
      %v1437 = vpop.permute.xlu0 %1436
      %1438 = vrot.lane.b32.xlu0 %v309, 28
      %v1439 = vpop.permute.xlu0 %1438
      %1440 = vrot.lane.b32.xlu0 %v310, 28
      %v1441 = vpop.permute.xlu0 %1440
      %1442 = vrot.lane.b32.xlu0 %v311, 28
      %v1443 = vpop.permute.xlu0 %1442
      %1444 = vrot.lane.b32.xlu0 %v312, 28
      %v1445 = vpop.permute.xlu0 %1444
      %1446 = vrot.lane.b32.xlu0 %v313, 28
      %v1447 = vpop.permute.xlu0 %1446
      %1448 = vrot.lane.b32.xlu0 %v314, 28
      %v1449 = vpop.permute.xlu0 %1448
      %1450 = vrot.lane.b32.xlu0 %v315, 28
      %v1451 = vpop.permute.xlu0 %1450
      %1452 = vrot.lane.b32.xlu0 %v316, 28
      %v1453 = vpop.permute.xlu0 %1452
      %1454 = vrot.lane.b32.xlu0 %v317, 28
      %v1455 = vpop.permute.xlu0 %1454
      %1456 = vrot.lane.b32.xlu0 %v318, 28
      %v1457 = vpop.permute.xlu0 %1456
      %1458 = vrot.lane.b32.xlu0 %v319, 28
      %v1459 = vpop.permute.xlu0 %1458
      %1460 = vrot.lane.b32.xlu0 %v320, 28
      %v1461 = vpop.permute.xlu0 %1460
      %1462 = vrot.lane.b32.xlu0 %v321, 28
      %v1463 = vpop.permute.xlu0 %1462
      %1464 = vrot.lane.b32.xlu0 %v322, 28
      %v1465 = vpop.permute.xlu0 %1464
      %1466 = vrot.lane.b32.xlu0 %v323, 28
      %v1467 = vpop.permute.xlu0 %1466
      %1468 = vrot.lane.b32.xlu0 %v324, 28
      %v1469 = vpop.permute.xlu0 %1468
      %1470 = vrot.lane.b32.xlu0 %v325, 28
      %v1471 = vpop.permute.xlu0 %1470
      %1472 = vrot.lane.b32.xlu0 %v326, 28
      %v1473 = vpop.permute.xlu0 %1472
      %1474 = vrot.lane.b32.xlu0 %v327, 28
      %v1475 = vpop.permute.xlu0 %1474
      %1476 = vrot.lane.b32.xlu0 %v328, 28
      %v1477 = vpop.permute.xlu0 %1476
      %1478 = vrot.lane.b32.xlu0 %v329, 28
      %v1479 = vpop.permute.xlu0 %1478
      %1480 = vrot.lane.b32.xlu0 %v330, 28
      %v1481 = vpop.permute.xlu0 %1480
      %1482 = vrot.lane.b32.xlu0 %v331, 28
      %v1483 = vpop.permute.xlu0 %1482
      %1484 = vrot.lane.b32.xlu0 %v332, 28
      %v1485 = vpop.permute.xlu0 %1484
      %1486 = vrot.lane.b32.xlu0 %v333, 28
      %v1487 = vpop.permute.xlu0 %1486
      %1488 = vrot.lane.b32.xlu0 %v334, 28
      %v1489 = vpop.permute.xlu0 %1488
      %1490 = vrot.lane.b32.xlu0 %v335, 28
      %v1491 = vpop.permute.xlu0 %1490
      %1492 = vrot.lane.b32.xlu0 %v336, 28
      %v1493 = vpop.permute.xlu0 %1492
      %1494 = vrot.lane.b32.xlu0 %v337, 28
      %v1495 = vpop.permute.xlu0 %1494
      %1496 = vrot.lane.b32.xlu0 %v338, 28
      %v1497 = vpop.permute.xlu0 %1496
      %1498 = vrot.lane.b32.xlu0 %v339, 28
      %v1499 = vpop.permute.xlu0 %1498
      %1500 = vrot.lane.b32.xlu0 %v340, 28
      %v1501 = vpop.permute.xlu0 %1500
      %1502 = vrot.lane.b32.xlu0 %v341, 28
      %v1503 = vpop.permute.xlu0 %1502
      %1504 = vrot.lane.b32.xlu0 %v342, 28
      %v1505 = vpop.permute.xlu0 %1504
      %1506 = vrot.lane.b32.xlu0 %v343, 28
      %v1507 = vpop.permute.xlu0 %1506
      %1508 = vrot.lane.b32.xlu0 %v344, 28
      %v1509 = vpop.permute.xlu0 %1508
      %1510 = vrot.lane.b32.xlu0 %v345, 28
      %v1511 = vpop.permute.xlu0 %1510
      %1512 = vrot.lane.b32.xlu0 %v346, 28
      %v1513 = vpop.permute.xlu0 %1512
      %1514 = vrot.lane.b32.xlu0 %v347, 28
      %v1515 = vpop.permute.xlu0 %1514
      %1516 = vrot.lane.b32.xlu0 %v348, 28
      %v1517 = vpop.permute.xlu0 %1516
      %1518 = vrot.lane.b32.xlu0 %v349, 28
      %v1519 = vpop.permute.xlu0 %1518
      %1520 = vrot.lane.b32.xlu0 %v401, 28
      %v1521 = vpop.permute.xlu0 %1520
      %1522 = vrot.lane.b32.xlu0 %v402, 28
      %v1523 = vpop.permute.xlu0 %1522
      %1524 = vrot.lane.b32.xlu0 %v403, 28
      %v1525 = vpop.permute.xlu0 %1524
      %1526 = vrot.lane.b32.xlu0 %v410, 28
      %v1527 = vpop.permute.xlu0 %1526
      %1528 = vrot.lane.b32.xlu0 %v411, 28
      %v1529 = vpop.permute.xlu0 %1528
      %1530 = vrot.lane.b32.xlu0 %v412, 28
      %v1531 = vpop.permute.xlu0 %1530
      %1583 = vrot.lane.b32.xlu0 %v356, 32
      %v1584 = vpop.permute.xlu0 %1583
      %1585 = vrot.lane.b32.xlu0 %v357, 32
      %v1586 = vpop.permute.xlu0 %1585
      %1587 = vrot.lane.b32.xlu0 %v358, 32
      %v1588 = vpop.permute.xlu0 %1587
      %1589 = vrot.lane.b32.xlu0 %v359, 32
      %v1590 = vpop.permute.xlu0 %1589
      %1591 = vrot.lane.b32.xlu0 %v360, 32
      %v1592 = vpop.permute.xlu0 %1591
      %1593 = vrot.lane.b32.xlu0 %v361, 32
      %v1594 = vpop.permute.xlu0 %1593
      %1595 = vrot.lane.b32.xlu0 %v362, 32
      %v1596 = vpop.permute.xlu0 %1595
      %1597 = vrot.lane.b32.xlu0 %v363, 32
      %v1598 = vpop.permute.xlu0 %1597
      %1599 = vrot.lane.b32.xlu0 %v364, 32
      %v1600 = vpop.permute.xlu0 %1599
      %1601 = vrot.lane.b32.xlu0 %v365, 32
      %v1602 = vpop.permute.xlu0 %1601
      %1603 = vrot.lane.b32.xlu0 %v366, 32
      %v1604 = vpop.permute.xlu0 %1603
      %1605 = vrot.lane.b32.xlu0 %v367, 32
      %v1606 = vpop.permute.xlu0 %1605
      %1607 = vrot.lane.b32.xlu0 %v368, 32
      %v1608 = vpop.permute.xlu0 %1607
      %1609 = vrot.lane.b32.xlu0 %v369, 32
      %v1610 = vpop.permute.xlu0 %1609
      %1611 = vrot.lane.b32.xlu0 %v370, 32
      %v1612 = vpop.permute.xlu0 %1611
      %1613 = vrot.lane.b32.xlu0 %v371, 32
      %v1614 = vpop.permute.xlu0 %1613
      %1615 = vrot.lane.b32.xlu0 %v372, 32
      %v1616 = vpop.permute.xlu0 %1615
      %1617 = vrot.lane.b32.xlu0 %v373, 32
      %v1618 = vpop.permute.xlu0 %1617
      %1619 = vrot.lane.b32.xlu0 %v374, 32
      %v1620 = vpop.permute.xlu0 %1619
      %1621 = vrot.lane.b32.xlu0 %v375, 32
      %v1622 = vpop.permute.xlu0 %1621
      %1623 = vrot.lane.b32.xlu0 %v376, 32
      %v1624 = vpop.permute.xlu0 %1623
      %1625 = vrot.lane.b32.xlu0 %v377, 32
      %v1626 = vpop.permute.xlu0 %1625
      %1627 = vrot.lane.b32.xlu0 %v378, 32
      %v1628 = vpop.permute.xlu0 %1627
      %1629 = vrot.lane.b32.xlu0 %v379, 32
      %v1630 = vpop.permute.xlu0 %1629
      %1631 = vrot.lane.b32.xlu0 %v380, 32
      %v1632 = vpop.permute.xlu0 %1631
      %1633 = vrot.lane.b32.xlu0 %v381, 32
      %v1634 = vpop.permute.xlu0 %1633
      %1635 = vrot.lane.b32.xlu0 %v382, 32
      %v1636 = vpop.permute.xlu0 %1635
      %1637 = vrot.lane.b32.xlu0 %v383, 32
      %v1638 = vpop.permute.xlu0 %1637
      %1639 = vrot.lane.b32.xlu0 %v384, 32
      %v1640 = vpop.permute.xlu0 %1639
      %1641 = vrot.lane.b32.xlu0 %v385, 32
      %v1642 = vpop.permute.xlu0 %1641
      %1643 = vrot.lane.b32.xlu0 %v386, 32
      %v1644 = vpop.permute.xlu0 %1643
      %1645 = vrot.lane.b32.xlu0 %v387, 32
      %v1646 = vpop.permute.xlu0 %1645
      %1647 = vrot.lane.b32.xlu0 %v388, 32
      %v1648 = vpop.permute.xlu0 %1647
      %1649 = vrot.lane.b32.xlu0 %v389, 32
      %v1650 = vpop.permute.xlu0 %1649
      %1651 = vrot.lane.b32.xlu0 %v390, 32
      %v1652 = vpop.permute.xlu0 %1651
      %1653 = vrot.lane.b32.xlu0 %v391, 32
      %v1654 = vpop.permute.xlu0 %1653
      %1655 = vrot.lane.b32.xlu0 %v392, 32
      %v1656 = vpop.permute.xlu0 %1655
      %1657 = vrot.lane.b32.xlu0 %v393, 32
      %v1658 = vpop.permute.xlu0 %1657
      %1659 = vrot.lane.b32.xlu0 %v394, 32
      %v1660 = vpop.permute.xlu0 %1659
      %1661 = vrot.lane.b32.xlu0 %v395, 32
      %v1662 = vpop.permute.xlu0 %1661
      %1663 = vrot.lane.b32.xlu0 %v396, 32
      %v1664 = vpop.permute.xlu0 %1663
      %1665 = vrot.lane.b32.xlu0 %v397, 32
      %v1666 = vpop.permute.xlu0 %1665
      %1667 = vrot.lane.b32.xlu0 %v404, 32
      %v1668 = vpop.permute.xlu0 %1667
      %1669 = vrot.lane.b32.xlu0 %v405, 32
      %v1670 = vpop.permute.xlu0 %1669
      %1671 = vrot.lane.b32.xlu0 %v406, 32
      %v1672 = vpop.permute.xlu0 %1671
      %1673 = vrot.lane.b32.xlu0 %v413, 32
      %v1674 = vpop.permute.xlu0 %1673
      %1675 = vrot.lane.b32.xlu0 %v414, 32
      %v1676 = vpop.permute.xlu0 %1675
      %1677 = vrot.lane.b32.xlu0 %v415, 32
      %v1678 = vpop.permute.xlu0 %1677
      %vm1727 = vcmask 31744
      %v1728 = vsel %vm1727, %v254, %v465
      %v1729 = vsel %vm1727, %v255, %v467
      %v1730 = vsel %vm1727, %v256, %v469
      %v1731 = vsel %vm1727, %v257, %v471
      %v1732 = vsel %vm1727, %v258, %v473
      %v1733 = vsel %vm1727, %v259, %v475
      %v1734 = vsel %vm1727, %v260, %v477
      %v1735 = vsel %vm1727, %v261, %v479
      %v1736 = vsel %vm1727, %v262, %v481
      %v1737 = vsel %vm1727, %v263, %v483
      %v1738 = vsel %vm1727, %v264, %v485
      %v1739 = vsel %vm1727, %v265, %v487
      %v1740 = vsel %vm1727, %v266, %v489
      %v1741 = vsel %vm1727, %v267, %v491
      %v1742 = vsel %vm1727, %v268, %v493
      %v1743 = vsel %vm1727, %v269, %v495
      %v1744 = vsel %vm1727, %v270, %v497
      %v1745 = vsel %vm1727, %v271, %v499
      %v1746 = vsel %vm1727, %v272, %v501
      %v1747 = vsel %vm1727, %v273, %v503
      %v1748 = vsel %vm1727, %v274, %v505
      %v1749 = vsel %vm1727, %v275, %v507
      %v1750 = vsel %vm1727, %v276, %v509
      %v1751 = vsel %vm1727, %v277, %v511
      %v1752 = vsel %vm1727, %v278, %v513
      %v1753 = vsel %vm1727, %v279, %v515
      %v1754 = vsel %vm1727, %v280, %v517
      %v1755 = vsel %vm1727, %v281, %v519
      %v1756 = vsel %vm1727, %v282, %v521
      %v1757 = vsel %vm1727, %v283, %v523
      %v1758 = vsel %vm1727, %v284, %v525
      %v1759 = vsel %vm1727, %v285, %v527
      %v1760 = vsel %vm1727, %v286, %v529
      %v1761 = vsel %vm1727, %v287, %v531
      %v1762 = vsel %vm1727, %v288, %v533
      %v1763 = vsel %vm1727, %v289, %v535
      %v1764 = vsel %vm1727, %v290, %v537
      %v1765 = vsel %vm1727, %v291, %v539
      %v1766 = vsel %vm1727, %v292, %v541
      %v1767 = vsel %vm1727, %v293, %v543
      %v1768 = vsel %vm1727, %v294, %v545
      %v1769 = vsel %vm1727, %v295, %v547
      %v1770 = vsel %vm1727, %v296, %v549
      %v1771 = vsel %vm1727, %v297, %v551
      %v1772 = vsel %vm1727, %v298, %v553
      %v1773 = vsel %vm1727, %v299, %v555
      %v1774 = vsel %vm1727, %v300, %v557
      %v1775 = vsel %vm1727, %v301, %v559
      %vm1776 = vcmask 64512
      %v1777 = vsel %vm1776, %v1728, %v657
      %v1778 = vsel %vm1776, %v1729, %v659
      %v1779 = vsel %vm1776, %v1730, %v661
      %v1780 = vsel %vm1776, %v1731, %v663
      %v1781 = vsel %vm1776, %v1732, %v665
      %v1782 = vsel %vm1776, %v1733, %v667
      %v1783 = vsel %vm1776, %v1734, %v669
      %v1784 = vsel %vm1776, %v1735, %v671
      %v1785 = vsel %vm1776, %v1736, %v673
      %v1786 = vsel %vm1776, %v1737, %v675
      %v1787 = vsel %vm1776, %v1738, %v677
      %v1788 = vsel %vm1776, %v1739, %v679
      %v1789 = vsel %vm1776, %v1740, %v681
      %v1790 = vsel %vm1776, %v1741, %v683
      %v1791 = vsel %vm1776, %v1742, %v685
      %v1792 = vsel %vm1776, %v1743, %v687
      %v1793 = vsel %vm1776, %v1744, %v689
      %v1794 = vsel %vm1776, %v1745, %v691
      %v1795 = vsel %vm1776, %v1746, %v693
      %v1796 = vsel %vm1776, %v1747, %v695
      %v1797 = vsel %vm1776, %v1748, %v697
      %v1798 = vsel %vm1776, %v1749, %v699
      %v1799 = vsel %vm1776, %v1750, %v701
      %v1800 = vsel %vm1776, %v1751, %v703
      %v1801 = vsel %vm1776, %v1752, %v705
      %v1802 = vsel %vm1776, %v1753, %v707
      %v1803 = vsel %vm1776, %v1754, %v709
      %v1804 = vsel %vm1776, %v1755, %v711
      %v1805 = vsel %vm1776, %v1756, %v713
      %v1806 = vsel %vm1776, %v1757, %v715
      %v1807 = vsel %vm1776, %v1758, %v717
      %v1808 = vsel %vm1776, %v1759, %v719
      %v1809 = vsel %vm1776, %v1760, %v721
      %v1810 = vsel %vm1776, %v1761, %v723
      %v1811 = vsel %vm1776, %v1762, %v725
      %v1812 = vsel %vm1776, %v1763, %v727
      %v1813 = vsel %vm1776, %v1764, %v729
      %v1814 = vsel %vm1776, %v1765, %v731
      %v1815 = vsel %vm1776, %v1766, %v733
      %v1816 = vsel %vm1776, %v1767, %v735
      %v1817 = vsel %vm1776, %v1768, %v737
      %v1818 = vsel %vm1776, %v1769, %v739
      %v1819 = vsel %vm1776, %v1770, %v741
      %v1820 = vsel %vm1776, %v1771, %v743
      %v1821 = vsel %vm1776, %v1772, %v745
      %v1822 = vsel %vm1776, %v1773, %v747
      %v1823 = vsel %vm1776, %v1774, %v749
      %v1824 = vsel %vm1776, %v1775, %v751
      %vm1825 = vcmask 97280
      %v1826 = vsel %vm1825, %v1777, %v849
      %v1827 = vsel %vm1825, %v1778, %v851
      %v1828 = vsel %vm1825, %v1779, %v853
      %v1829 = vsel %vm1825, %v1780, %v855
      %v1830 = vsel %vm1825, %v1781, %v857
      %v1831 = vsel %vm1825, %v1782, %v859
      %v1832 = vsel %vm1825, %v1783, %v861
      %v1833 = vsel %vm1825, %v1784, %v863
      %v1834 = vsel %vm1825, %v1785, %v865
      %v1835 = vsel %vm1825, %v1786, %v867
      %v1836 = vsel %vm1825, %v1787, %v869
      %v1837 = vsel %vm1825, %v1788, %v871
      %v1838 = vsel %vm1825, %v1789, %v873
      %v1839 = vsel %vm1825, %v1790, %v875
      %v1840 = vsel %vm1825, %v1791, %v877
      %v1841 = vsel %vm1825, %v1792, %v879
      %v1842 = vsel %vm1825, %v1793, %v881
      %v1843 = vsel %vm1825, %v1794, %v883
      %v1844 = vsel %vm1825, %v1795, %v885
      %v1845 = vsel %vm1825, %v1796, %v887
      %v1846 = vsel %vm1825, %v1797, %v889
      %v1847 = vsel %vm1825, %v1798, %v891
      %v1848 = vsel %vm1825, %v1799, %v893
      %v1849 = vsel %vm1825, %v1800, %v895
      %v1850 = vsel %vm1825, %v1801, %v897
      %v1851 = vsel %vm1825, %v1802, %v899
      %v1852 = vsel %vm1825, %v1803, %v901
      %v1853 = vsel %vm1825, %v1804, %v903
      %v1854 = vsel %vm1825, %v1805, %v905
      %v1855 = vsel %vm1825, %v1806, %v907
      %v1856 = vsel %vm1825, %v1807, %v909
      %v1857 = vsel %vm1825, %v1808, %v911
      %v1858 = vsel %vm1825, %v1809, %v913
      %v1859 = vsel %vm1825, %v1810, %v915
      %v1860 = vsel %vm1825, %v1811, %v917
      %v1861 = vsel %vm1825, %v1812, %v919
      %v1862 = vsel %vm1825, %v1813, %v921
      %v1863 = vsel %vm1825, %v1814, %v923
      %v1864 = vsel %vm1825, %v1815, %v925
      %v1865 = vsel %vm1825, %v1816, %v927
      %v1866 = vsel %vm1825, %v1817, %v929
      %v1867 = vsel %vm1825, %v1818, %v931
      %v1868 = vsel %vm1825, %v1819, %v933
      %v1869 = vsel %vm1825, %v1820, %v935
      %v1870 = vsel %vm1825, %v1821, %v937
      %v1871 = vsel %vm1825, %v1822, %v939
      %v1872 = vsel %vm1825, %v1823, %v941
      %v1873 = vsel %vm1825, %v1824, %v943
      %vm1874 = vcmask 130048
      %v1875 = vsel %vm1874, %v1826, %v996
      %v1876 = vsel %vm1874, %v1827, %v998
      %v1877 = vsel %vm1874, %v1828, %v1000
      %v1878 = vsel %vm1874, %v1829, %v1002
      %v1879 = vsel %vm1874, %v1830, %v1004
      %v1880 = vsel %vm1874, %v1831, %v1006
      %v1881 = vsel %vm1874, %v1832, %v1008
      %v1882 = vsel %vm1874, %v1833, %v1010
      %v1883 = vsel %vm1874, %v1834, %v1012
      %v1884 = vsel %vm1874, %v1835, %v1014
      %v1885 = vsel %vm1874, %v1836, %v1016
      %v1886 = vsel %vm1874, %v1837, %v1018
      %v1887 = vsel %vm1874, %v1838, %v1020
      %v1888 = vsel %vm1874, %v1839, %v1022
      %v1889 = vsel %vm1874, %v1840, %v1024
      %v1890 = vsel %vm1874, %v1841, %v1026
      %v1891 = vsel %vm1874, %v1842, %v1028
      %v1892 = vsel %vm1874, %v1843, %v1030
      %v1893 = vsel %vm1874, %v1844, %v1032
      %v1894 = vsel %vm1874, %v1845, %v1034
      %v1895 = vsel %vm1874, %v1846, %v1036
      %v1896 = vsel %vm1874, %v1847, %v1038
      %v1897 = vsel %vm1874, %v1848, %v1040
      %v1898 = vsel %vm1874, %v1849, %v1042
      %v1899 = vsel %vm1874, %v1850, %v1044
      %v1900 = vsel %vm1874, %v1851, %v1046
      %v1901 = vsel %vm1874, %v1852, %v1048
      %v1902 = vsel %vm1874, %v1853, %v1050
      %v1903 = vsel %vm1874, %v1854, %v1052
      %v1904 = vsel %vm1874, %v1855, %v1054
      %v1905 = vsel %vm1874, %v1856, %v1056
      %v1906 = vsel %vm1874, %v1857, %v1058
      %v1907 = vsel %vm1874, %v1858, %v1060
      %v1908 = vsel %vm1874, %v1859, %v1062
      %v1909 = vsel %vm1874, %v1860, %v1064
      %v1910 = vsel %vm1874, %v1861, %v1066
      %v1911 = vsel %vm1874, %v1862, %v1068
      %v1912 = vsel %vm1874, %v1863, %v1070
      %v1913 = vsel %vm1874, %v1864, %v1072
      %v1914 = vsel %vm1874, %v1865, %v1074
      %v1915 = vsel %vm1874, %v1866, %v1076
      %v1916 = vsel %vm1874, %v1867, %v1078
      %v1917 = vsel %vm1874, %v1868, %v1080
      %v1918 = vsel %vm1874, %v1869, %v1082
      %v1919 = vsel %vm1874, %v1870, %v1084
      %v1920 = vsel %vm1874, %v1871, %v1086
      %v1921 = vsel %vm1874, %v1872, %v1088
      %v1922 = vsel %vm1874, %v1873, %v1090
      %vm1923 = vcmask 162816
      %v1924 = vsel %vm1923, %v1875, %v1143
      %v1925 = vsel %vm1923, %v1876, %v1145
      %v1926 = vsel %vm1923, %v1877, %v1147
      %v1927 = vsel %vm1923, %v1878, %v1149
      %v1928 = vsel %vm1923, %v1879, %v1151
      %v1929 = vsel %vm1923, %v1880, %v1153
      %v1930 = vsel %vm1923, %v1881, %v1155
      %v1931 = vsel %vm1923, %v1882, %v1157
      %v1932 = vsel %vm1923, %v1883, %v1159
      %v1933 = vsel %vm1923, %v1884, %v1161
      %v1934 = vsel %vm1923, %v1885, %v1163
      %v1935 = vsel %vm1923, %v1886, %v1165
      %v1936 = vsel %vm1923, %v1887, %v1167
      %v1937 = vsel %vm1923, %v1888, %v1169
      %v1938 = vsel %vm1923, %v1889, %v1171
      %v1939 = vsel %vm1923, %v1890, %v1173
      %v1940 = vsel %vm1923, %v1891, %v1175
      %v1941 = vsel %vm1923, %v1892, %v1177
      %v1942 = vsel %vm1923, %v1893, %v1179
      %v1943 = vsel %vm1923, %v1894, %v1181
      %v1944 = vsel %vm1923, %v1895, %v1183
      %v1945 = vsel %vm1923, %v1896, %v1185
      %v1946 = vsel %vm1923, %v1897, %v1187
      %v1947 = vsel %vm1923, %v1898, %v1189
      %v1948 = vsel %vm1923, %v1899, %v1191
      %v1949 = vsel %vm1923, %v1900, %v1193
      %v1950 = vsel %vm1923, %v1901, %v1195
      %v1951 = vsel %vm1923, %v1902, %v1197
      %v1952 = vsel %vm1923, %v1903, %v1199
      %v1953 = vsel %vm1923, %v1904, %v1201
      %v1954 = vsel %vm1923, %v1905, %v1203
      %v1955 = vsel %vm1923, %v1906, %v1205
      %v1956 = vsel %vm1923, %v1907, %v1207
      %v1957 = vsel %vm1923, %v1908, %v1209
      %v1958 = vsel %vm1923, %v1909, %v1211
      %v1959 = vsel %vm1923, %v1910, %v1213
      %v1960 = vsel %vm1923, %v1911, %v1215
      %v1961 = vsel %vm1923, %v1912, %v1217
      %v1962 = vsel %vm1923, %v1913, %v1219
      %v1963 = vsel %vm1923, %v1914, %v1221
      %v1964 = vsel %vm1923, %v1915, %v1223
      %v1965 = vsel %vm1923, %v1916, %v1225
      %v1966 = vsel %vm1923, %v1917, %v1227
      %v1967 = vsel %vm1923, %v1918, %v1229
      %v1968 = vsel %vm1923, %v1919, %v1231
      %v1969 = vsel %vm1923, %v1920, %v1233
      %v1970 = vsel %vm1923, %v1921, %v1235
      %v1971 = vsel %vm1923, %v1922, %v1237
      %vm1972 = vcmask 195584
      %v1973 = vsel %vm1972, %v1924, %v1290
      %v1974 = vsel %vm1972, %v1925, %v1292
      %v1975 = vsel %vm1972, %v1926, %v1294
      %v1976 = vsel %vm1972, %v1927, %v1296
      %v1977 = vsel %vm1972, %v1928, %v1298
      %v1978 = vsel %vm1972, %v1929, %v1300
      %v1979 = vsel %vm1972, %v1930, %v1302
      %v1980 = vsel %vm1972, %v1931, %v1304
      %v1981 = vsel %vm1972, %v1932, %v1306
      %v1982 = vsel %vm1972, %v1933, %v1308
      %v1983 = vsel %vm1972, %v1934, %v1310
      %v1984 = vsel %vm1972, %v1935, %v1312
      %v1985 = vsel %vm1972, %v1936, %v1314
      %v1986 = vsel %vm1972, %v1937, %v1316
      %v1987 = vsel %vm1972, %v1938, %v1318
      %v1988 = vsel %vm1972, %v1939, %v1320
      %v1989 = vsel %vm1972, %v1940, %v1322
      %v1990 = vsel %vm1972, %v1941, %v1324
      %v1991 = vsel %vm1972, %v1942, %v1326
      %v1992 = vsel %vm1972, %v1943, %v1328
      %v1993 = vsel %vm1972, %v1944, %v1330
      %v1994 = vsel %vm1972, %v1945, %v1332
      %v1995 = vsel %vm1972, %v1946, %v1334
      %v1996 = vsel %vm1972, %v1947, %v1336
      %v1997 = vsel %vm1972, %v1948, %v1338
      %v1998 = vsel %vm1972, %v1949, %v1340
      %v1999 = vsel %vm1972, %v1950, %v1342
      %v2000 = vsel %vm1972, %v1951, %v1344
      %v2001 = vsel %vm1972, %v1952, %v1346
      %v2002 = vsel %vm1972, %v1953, %v1348
      %v2003 = vsel %vm1972, %v1954, %v1350
      %v2004 = vsel %vm1972, %v1955, %v1352
      %v2005 = vsel %vm1972, %v1956, %v1354
      %v2006 = vsel %vm1972, %v1957, %v1356
      %v2007 = vsel %vm1972, %v1958, %v1358
      %v2008 = vsel %vm1972, %v1959, %v1360
      %v2009 = vsel %vm1972, %v1960, %v1362
      %v2010 = vsel %vm1972, %v1961, %v1364
      %v2011 = vsel %vm1972, %v1962, %v1366
      %v2012 = vsel %vm1972, %v1963, %v1368
      %v2013 = vsel %vm1972, %v1964, %v1370
      %v2014 = vsel %vm1972, %v1965, %v1372
      %v2015 = vsel %vm1972, %v1966, %v1374
      %v2016 = vsel %vm1972, %v1967, %v1376
      %v2017 = vsel %vm1972, %v1968, %v1378
      %v2018 = vsel %vm1972, %v1969, %v1380
      %v2019 = vsel %vm1972, %v1970, %v1382
      %v2020 = vsel %vm1972, %v1971, %v1384
      %vm2021 = vcmask 228352
      %v2022 = vsel %vm2021, %v1973, %v1437
      %v2023 = vsel %vm2021, %v1974, %v1439
      %v2024 = vsel %vm2021, %v1975, %v1441
      %v2025 = vsel %vm2021, %v1976, %v1443
      %v2026 = vsel %vm2021, %v1977, %v1445
      %v2027 = vsel %vm2021, %v1978, %v1447
      %v2028 = vsel %vm2021, %v1979, %v1449
      %v2029 = vsel %vm2021, %v1980, %v1451
      %v2030 = vsel %vm2021, %v1981, %v1453
      %v2031 = vsel %vm2021, %v1982, %v1455
      %v2032 = vsel %vm2021, %v1983, %v1457
      %v2033 = vsel %vm2021, %v1984, %v1459
      %v2034 = vsel %vm2021, %v1985, %v1461
      %v2035 = vsel %vm2021, %v1986, %v1463
      %v2036 = vsel %vm2021, %v1987, %v1465
      %v2037 = vsel %vm2021, %v1988, %v1467
      %v2038 = vsel %vm2021, %v1989, %v1469
      %v2039 = vsel %vm2021, %v1990, %v1471
      %v2040 = vsel %vm2021, %v1991, %v1473
      %v2041 = vsel %vm2021, %v1992, %v1475
      %v2042 = vsel %vm2021, %v1993, %v1477
      %v2043 = vsel %vm2021, %v1994, %v1479
      %v2044 = vsel %vm2021, %v1995, %v1481
      %v2045 = vsel %vm2021, %v1996, %v1483
      %v2046 = vsel %vm2021, %v1997, %v1485
      %v2047 = vsel %vm2021, %v1998, %v1487
      %v2048 = vsel %vm2021, %v1999, %v1489
      %v2049 = vsel %vm2021, %v2000, %v1491
      %v2050 = vsel %vm2021, %v2001, %v1493
      %v2051 = vsel %vm2021, %v2002, %v1495
      %v2052 = vsel %vm2021, %v2003, %v1497
      %v2053 = vsel %vm2021, %v2004, %v1499
      %v2054 = vsel %vm2021, %v2005, %v1501
      %v2055 = vsel %vm2021, %v2006, %v1503
      %v2056 = vsel %vm2021, %v2007, %v1505
      %v2057 = vsel %vm2021, %v2008, %v1507
      %v2058 = vsel %vm2021, %v2009, %v1509
      %v2059 = vsel %vm2021, %v2010, %v1511
      %v2060 = vsel %vm2021, %v2011, %v1513
      %v2061 = vsel %vm2021, %v2012, %v1515
      %v2062 = vsel %vm2021, %v2013, %v1517
      %v2063 = vsel %vm2021, %v2014, %v1519
      %v2064 = vsel %vm2021, %v2015, %v1521
      %v2065 = vsel %vm2021, %v2016, %v1523
      %v2066 = vsel %vm2021, %v2017, %v1525
      %v2067 = vsel %vm2021, %v2018, %v1527
      %v2068 = vsel %vm2021, %v2019, %v1529
      %v2069 = vsel %vm2021, %v2020, %v1531
      %vm2070 = vcmask 261120
      %v2071 = vsel %vm2070, %v2022, %v1584
      %v2072 = vsel %vm2070, %v2023, %v1586
      %v2073 = vsel %vm2070, %v2024, %v1588
      %v2074 = vsel %vm2070, %v2025, %v1590
      %v2075 = vsel %vm2070, %v2026, %v1592
      %v2076 = vsel %vm2070, %v2027, %v1594
      %v2077 = vsel %vm2070, %v2028, %v1596
      %v2078 = vsel %vm2070, %v2029, %v1598
      %v2079 = vsel %vm2070, %v2030, %v1600
      %v2080 = vsel %vm2070, %v2031, %v1602
      %v2081 = vsel %vm2070, %v2032, %v1604
      %v2082 = vsel %vm2070, %v2033, %v1606
      %v2083 = vsel %vm2070, %v2034, %v1608
      %v2084 = vsel %vm2070, %v2035, %v1610
      %v2085 = vsel %vm2070, %v2036, %v1612
      %v2086 = vsel %vm2070, %v2037, %v1614
      %v2087 = vsel %vm2070, %v2038, %v1616
      %v2088 = vsel %vm2070, %v2039, %v1618
      %v2089 = vsel %vm2070, %v2040, %v1620
      %v2090 = vsel %vm2070, %v2041, %v1622
      %v2091 = vsel %vm2070, %v2042, %v1624
      %v2092 = vsel %vm2070, %v2043, %v1626
      %v2093 = vsel %vm2070, %v2044, %v1628
      %v2094 = vsel %vm2070, %v2045, %v1630
      %v2095 = vsel %vm2070, %v2046, %v1632
      %v2096 = vsel %vm2070, %v2047, %v1634
      %v2097 = vsel %vm2070, %v2048, %v1636
      %v2098 = vsel %vm2070, %v2049, %v1638
      %v2099 = vsel %vm2070, %v2050, %v1640
      %v2100 = vsel %vm2070, %v2051, %v1642
      %v2101 = vsel %vm2070, %v2052, %v1644
      %v2102 = vsel %vm2070, %v2053, %v1646
      %v2103 = vsel %vm2070, %v2054, %v1648
      %v2104 = vsel %vm2070, %v2055, %v1650
      %v2105 = vsel %vm2070, %v2056, %v1652
      %v2106 = vsel %vm2070, %v2057, %v1654
      %v2107 = vsel %vm2070, %v2058, %v1656
      %v2108 = vsel %vm2070, %v2059, %v1658
      %v2109 = vsel %vm2070, %v2060, %v1660
      %v2110 = vsel %vm2070, %v2061, %v1662
      %v2111 = vsel %vm2070, %v2062, %v1664
      %v2112 = vsel %vm2070, %v2063, %v1666
      %v2113 = vsel %vm2070, %v2064, %v1668
      %v2114 = vsel %vm2070, %v2065, %v1670
      %v2115 = vsel %vm2070, %v2066, %v1672
      %v2116 = vsel %vm2070, %v2067, %v1674
      %v2117 = vsel %vm2070, %v2068, %v1676
      %v2118 = vsel %vm2070, %v2069, %v1678
      %v2119 = vld [vmem:[%s2] sm:$0xff]
      %v2120 = vld [vmem:[%s2 + $0x8] sm:$0xff]
      %v2121 = vld [vmem:[%s2 + $0x10] sm:$0xff]
      %v2122 = vld [vmem:[%s1] sm:$0xff]
      %v2123 = vld [vmem:[%s1 + $0x8] sm:$0xff]
      %v2124 = vld [vmem:[%s1 + $0x10] sm:$0xff]
      %v2125 = vld [vmem:[%s1 + $0x18] sm:$0xff]
      %v2126 = vld [vmem:[%s1 + $0x20] sm:$0xf]
      %vm2127 = vcmask 293888
      %v2129 = vsel %vm2127, %v2071, 0
      %v2132 = vsel %vm2127, %v2072, 0
      %v2135 = vsel %vm2127, %v2073, 0
      %v2138 = vsel %vm2127, %v2074, 0
      %v2141 = vsel %vm2127, %v2075, 0
      %v2144 = vsel %vm2127, %v2076, 0
      %v2147 = vsel %vm2127, %v2077, 0
      %v2150 = vsel %vm2127, %v2078, 0
      %v2153 = vsel %vm2127, %v2079, 0
      %v2156 = vsel %vm2127, %v2080, 0
      %v2159 = vsel %vm2127, %v2081, 0
      %v2162 = vsel %vm2127, %v2082, 0
      %v2165 = vsel %vm2127, %v2083, 0
      %v2168 = vsel %vm2127, %v2084, 0
      %v2171 = vsel %vm2127, %v2085, 0
      %v2174 = vsel %vm2127, %v2086, 0
      %v2177 = vsel %vm2127, %v2087, 0
      %v2180 = vsel %vm2127, %v2088, 0
      %v2183 = vsel %vm2127, %v2089, 0
      %v2186 = vsel %vm2127, %v2090, 0
      %v2189 = vsel %vm2127, %v2091, 0
      %v2192 = vsel %vm2127, %v2092, 0
      %v2195 = vsel %vm2127, %v2093, 0
      %v2198 = vsel %vm2127, %v2094, 0
      %v2201 = vsel %vm2127, %v2095, 0
      %v2204 = vsel %vm2127, %v2096, 0
      %v2207 = vsel %vm2127, %v2097, 0
      %v2210 = vsel %vm2127, %v2098, 0
      %v2213 = vsel %vm2127, %v2099, 0
      %v2216 = vsel %vm2127, %v2100, 0
      %v2219 = vsel %vm2127, %v2101, 0
      %v2222 = vsel %vm2127, %v2102, 0
      %v2225 = vsel %vm2127, %v2103, 0
      %v2228 = vsel %vm2127, %v2104, 0
      %v2231 = vsel %vm2127, %v2105, 0
      %v2234 = vsel %vm2127, %v2106, 0
      %v2237 = vsel %vm2127, %v2107, 0
      %v2240 = vsel %vm2127, %v2108, 0
      %v2243 = vsel %vm2127, %v2109, 0
      %v2246 = vsel %vm2127, %v2110, 0
      %v2249 = vsel %vm2127, %v2111, 0
      %v2252 = vsel %vm2127, %v2112, 0
      %v2255 = vsel %vm2127, %v2113, 0
      %v2258 = vsel %vm2127, %v2114, 0
      %v2261 = vsel %vm2127, %v2115, 0
      %v2264 = vsel %vm2127, %v2116, 0
      %v2267 = vsel %vm2127, %v2117, 0
      %v2270 = vsel %vm2127, %v2118, 0
      %vm2272 = vcmask 1043456
      %v2274 = vsel %vm2272, %v2126, 0
      %2276 = vmatprep.subr.mxu0 0.0
      %2277 = vmatpush1.msra.mxu0 %v2122
      %2278 = vmatprep.subr.mxu0 0.0
      %2279 = vmatpush1.msra.mxu0 %v2123
      %2280 = vmatprep.subr.mxu0 0.0
      %2281 = vmatpush1.msra.mxu0 %v2124
      %2282 = vmatprep.subr.mxu0 0.0
      %2283 = vmatpush1.msra.mxu0 %v2125
      %2284 = vmatprep.subr.mxu0 0.0
      %2285 = vmatpush1.msra.mxu0 %v2274
      %2286 = vmatprep.subr.mxu0 0.0
      %2287 = vmatpush1.msra.mxu0 0.0
      %2288 = vmatprep.subr.mxu0 0.0
      %2289 = vmatpush1.msra.mxu0 0.0
      %2290 = vmatprep.subr.mxu0 0.0
      %2291 = vmatpush1.msra.mxu0 0.0
      %2292 = vmatprep.subr.mxu0 0.0
      %2293 = vmatpush1.msra.mxu0 0.0
      %2294 = vmatprep.subr.mxu0 0.0
      %2295 = vmatpush1.msra.mxu0 0.0
      %2296 = vmatprep.subr.mxu0 0.0
      %2297 = vmatpush1.msra.mxu0 0.0
      %2298 = vmatprep.subr.mxu0 0.0
      %2299 = vmatpush1.msra.mxu0 0.0
      %2300 = vmatprep.subr.mxu0 0.0
      %2301 = vmatpush1.msra.mxu0 0.0
      %2302 = vmatprep.subr.mxu0 0.0
      %2303 = vmatpush1.msra.mxu0 0.0
      %2304 = vmatprep.subr.mxu0 0.0
      %2305 = vmatpush1.msra.mxu0 0.0
      %2306 = vmatprep.subr.mxu0 0.0
      %2307 = vmatpush1.msra.mxu0 0.0
      %2308 = vmatprep.subr.mxu0 0.0
      %2309 = vmatpush1.msra.mxu0 0.0
      %2310 = vmatprep.subr.mxu0 0.0
      %2311 = vmatpush1.msra.mxu0 0.0
      %2312 = vmatprep.subr.mxu0 0.0
      %2313 = vmatpush1.msra.mxu0 0.0
      %2314 = vmatprep.subr.mxu0 0.0
      %2315 = vmatpush1.msra.mxu0 0.0
      %2316 = vmatprep.subr.mxu0 0.0
      %2317 = vmatpush1.msra.mxu0 0.0
      %2318 = vmatprep.subr.mxu0 0.0
      %2319 = vmatpush1.msra.mxu0 0.0
      %2320 = vmatprep.subr.mxu0 0.0
      %2321 = vmatpush1.msra.mxu0 0.0
      %2322 = vmatprep.subr.mxu0 0.0
      %2323 = vmatpush1.msra.mxu0 0.0
      %2324 = vmatprep.subr.mxu0 0.0
      %2325 = vmatpush1.msra.mxu0 0.0
      %2326 = vmatprep.subr.mxu0 0.0
      %2327 = vmatpush1.msra.mxu0 0.0
      %2328 = vmatprep.subr.mxu0 0.0
      %2329 = vmatpush1.msra.mxu0 0.0
      %2330 = vmatprep.subr.mxu0 0.0
      %2331 = vmatpush1.msra.mxu0 0.0
      %2332 = vmatprep.subr.mxu0 0.0
      %2333 = vmatpush1.msra.mxu0 0.0
      %2334 = vmatprep.subr.mxu0 0.0
      %2335 = vmatpush1.msra.mxu0 0.0
      %2336 = vmatprep.subr.mxu0 0.0
      %2337 = vmatpush1.msra.mxu0 0.0
      %2338 = vmatprep.subr.mxu0 0.0
      %2339 = vmatpush1.msra.mxu0 0.0
      %2340 = vmatprep.mubr.f32.mxu0 0.0
      %2341 = vmatmul.mubr.f32.gmra.mrb[0].mxu0 %v2129
      %v2342 = vpop.f32.mrb[0].mxu0
      %v2343 = vadd.f32 0.0, %v2342
      %v2344 = vpop.f32.mrb[0].mxu0
      %2345 = vmatprep.mubr.f32.mxu0 0.0
      %2346 = vmatmul.mubr.f32.gmra.mrb[0].mxu0 %v2132
      %v2347 = vpop.f32.mrb[0].mxu0
      %v2348 = vadd.f32 0.0, %v2347
      %v2349 = vpop.f32.mrb[0].mxu0
      %2350 = vmatprep.mubr.f32.mxu0 0.0
      %2351 = vmatmul.mubr.f32.gmra.mrb[0].mxu0 %v2135
      %v2352 = vpop.f32.mrb[0].mxu0
      %v2353 = vadd.f32 0.0, %v2352
      %v2354 = vpop.f32.mrb[0].mxu0
      %2355 = vmatprep.mubr.f32.mxu0 0.0
      %2356 = vmatmul.mubr.f32.gmra.mrb[0].mxu0 %v2138
      %v2357 = vpop.f32.mrb[0].mxu0
      %v2358 = vadd.f32 0.0, %v2357
      %v2359 = vpop.f32.mrb[0].mxu0
      %2360 = vmatprep.mubr.f32.mxu0 0.0
      %2361 = vmatmul.mubr.f32.gmra.mrb[0].mxu0 %v2141
      %v2362 = vpop.f32.mrb[0].mxu0
      %v2363 = vadd.f32 0.0, %v2362
      %v2364 = vpop.f32.mrb[0].mxu0
      %2365 = vmatprep.mubr.f32.mxu0 0.0
      %2366 = vmatmul.mubr.f32.gmra.mrb[0].mxu0 %v2144
      %v2367 = vpop.f32.mrb[0].mxu0
      %v2368 = vadd.f32 0.0, %v2367
      %v2369 = vpop.f32.mrb[0].mxu0
      %2370 = vmatprep.mubr.f32.mxu0 0.0
      %2371 = vmatmul.mubr.f32.gmra.mrb[0].mxu0 %v2147
      %v2372 = vpop.f32.mrb[0].mxu0
      %v2373 = vadd.f32 0.0, %v2372
      %v2374 = vpop.f32.mrb[0].mxu0
      %2375 = vmatprep.mubr.f32.mxu0 0.0
      %2376 = vmatmul.mubr.f32.gmra.mrb[0].mxu0 %v2150
      %v2377 = vpop.f32.mrb[0].mxu0
      %v2378 = vadd.f32 0.0, %v2377
      %v2379 = vpop.f32.mrb[0].mxu0
      %2380 = vmatprep.mubr.f32.mxu0 0.0
      %2381 = vmatmul.mubr.f32.gmra.mrb[0].mxu0 %v2153
      %v2382 = vpop.f32.mrb[0].mxu0
      %v2383 = vadd.f32 0.0, %v2382
      %v2384 = vpop.f32.mrb[0].mxu0
      %2385 = vmatprep.mubr.f32.mxu0 0.0
      %2386 = vmatmul.mubr.f32.gmra.mrb[0].mxu0 %v2156
      %v2387 = vpop.f32.mrb[0].mxu0
      %v2388 = vadd.f32 0.0, %v2387
      %v2389 = vpop.f32.mrb[0].mxu0
      %2390 = vmatprep.mubr.f32.mxu0 0.0
      %2391 = vmatmul.mubr.f32.gmra.mrb[0].mxu0 %v2159
      %v2392 = vpop.f32.mrb[0].mxu0
      %v2393 = vadd.f32 0.0, %v2392
      %v2394 = vpop.f32.mrb[0].mxu0
      %2395 = vmatprep.mubr.f32.mxu0 0.0
      %2396 = vmatmul.mubr.f32.gmra.mrb[0].mxu0 %v2162
      %v2397 = vpop.f32.mrb[0].mxu0
      %v2398 = vadd.f32 0.0, %v2397
      %v2399 = vpop.f32.mrb[0].mxu0
      %2400 = vmatprep.mubr.f32.mxu0 0.0
      %2401 = vmatmul.mubr.f32.gmra.mrb[0].mxu0 %v2165
      %v2402 = vpop.f32.mrb[0].mxu0
      %v2403 = vadd.f32 0.0, %v2402
      %v2404 = vpop.f32.mrb[0].mxu0
      %2405 = vmatprep.mubr.f32.mxu0 0.0
      %2406 = vmatmul.mubr.f32.gmra.mrb[0].mxu0 %v2168
      %v2407 = vpop.f32.mrb[0].mxu0
      %v2408 = vadd.f32 0.0, %v2407
      %v2409 = vpop.f32.mrb[0].mxu0
      %2410 = vmatprep.mubr.f32.mxu0 0.0
      %2411 = vmatmul.mubr.f32.gmra.mrb[0].mxu0 %v2171
      %v2412 = vpop.f32.mrb[0].mxu0
      %v2413 = vadd.f32 0.0, %v2412
      %v2414 = vpop.f32.mrb[0].mxu0
      %2415 = vmatprep.mubr.f32.mxu0 0.0
      %2416 = vmatmul.mubr.f32.gmra.mrb[0].mxu0 %v2174
      %v2417 = vpop.f32.mrb[0].mxu0
      %v2418 = vadd.f32 0.0, %v2417
      %v2419 = vpop.f32.mrb[0].mxu0
      %2420 = vmatprep.mubr.f32.mxu0 0.0
      %2421 = vmatmul.mubr.f32.gmra.mrb[0].mxu0 %v2177
      %v2422 = vpop.f32.mrb[0].mxu0
      %v2423 = vadd.f32 0.0, %v2422
      %v2424 = vpop.f32.mrb[0].mxu0
      %2425 = vmatprep.mubr.f32.mxu0 0.0
      %2426 = vmatmul.mubr.f32.gmra.mrb[0].mxu0 %v2180
      %v2427 = vpop.f32.mrb[0].mxu0
      %v2428 = vadd.f32 0.0, %v2427
      %v2429 = vpop.f32.mrb[0].mxu0
      %2430 = vmatprep.mubr.f32.mxu0 0.0
      %2431 = vmatmul.mubr.f32.gmra.mrb[0].mxu0 %v2183
      %v2432 = vpop.f32.mrb[0].mxu0
      %v2433 = vadd.f32 0.0, %v2432
      %v2434 = vpop.f32.mrb[0].mxu0
      %2435 = vmatprep.mubr.f32.mxu0 0.0
      %2436 = vmatmul.mubr.f32.gmra.mrb[0].mxu0 %v2186
      %v2437 = vpop.f32.mrb[0].mxu0
      %v2438 = vadd.f32 0.0, %v2437
      %v2439 = vpop.f32.mrb[0].mxu0
      %2440 = vmatprep.mubr.f32.mxu0 0.0
      %2441 = vmatmul.mubr.f32.gmra.mrb[0].mxu0 %v2189
      %v2442 = vpop.f32.mrb[0].mxu0
      %v2443 = vadd.f32 0.0, %v2442
      %v2444 = vpop.f32.mrb[0].mxu0
      %2445 = vmatprep.mubr.f32.mxu0 0.0
      %2446 = vmatmul.mubr.f32.gmra.mrb[0].mxu0 %v2192
      %v2447 = vpop.f32.mrb[0].mxu0
      %v2448 = vadd.f32 0.0, %v2447
      %v2449 = vpop.f32.mrb[0].mxu0
      %2450 = vmatprep.mubr.f32.mxu0 0.0
      %2451 = vmatmul.mubr.f32.gmra.mrb[0].mxu0 %v2195
      %v2452 = vpop.f32.mrb[0].mxu0
      %v2453 = vadd.f32 0.0, %v2452
      %v2454 = vpop.f32.mrb[0].mxu0
      %2455 = vmatprep.mubr.f32.mxu0 0.0
      %2456 = vmatmul.mubr.f32.gmra.mrb[0].mxu0 %v2198
      %v2457 = vpop.f32.mrb[0].mxu0
      %v2458 = vadd.f32 0.0, %v2457
      %v2459 = vpop.f32.mrb[0].mxu0
      %2460 = vmatprep.mubr.f32.mxu0 0.0
      %2461 = vmatmul.mubr.f32.gmra.mrb[0].mxu0 %v2201
      %v2462 = vpop.f32.mrb[0].mxu0
      %v2463 = vadd.f32 0.0, %v2462
      %v2464 = vpop.f32.mrb[0].mxu0
      %2465 = vmatprep.mubr.f32.mxu0 0.0
      %2466 = vmatmul.mubr.f32.gmra.mrb[0].mxu0 %v2204
      %v2467 = vpop.f32.mrb[0].mxu0
      %v2468 = vadd.f32 0.0, %v2467
      %v2469 = vpop.f32.mrb[0].mxu0
      %2470 = vmatprep.mubr.f32.mxu0 0.0
      %2471 = vmatmul.mubr.f32.gmra.mrb[0].mxu0 %v2207
      %v2472 = vpop.f32.mrb[0].mxu0
      %v2473 = vadd.f32 0.0, %v2472
      %v2474 = vpop.f32.mrb[0].mxu0
      %2475 = vmatprep.mubr.f32.mxu0 0.0
      %2476 = vmatmul.mubr.f32.gmra.mrb[0].mxu0 %v2210
      %v2477 = vpop.f32.mrb[0].mxu0
      %v2478 = vadd.f32 0.0, %v2477
      %v2479 = vpop.f32.mrb[0].mxu0
      %2480 = vmatprep.mubr.f32.mxu0 0.0
      %2481 = vmatmul.mubr.f32.gmra.mrb[0].mxu0 %v2213
      %v2482 = vpop.f32.mrb[0].mxu0
      %v2483 = vadd.f32 0.0, %v2482
      %v2484 = vpop.f32.mrb[0].mxu0
      %2485 = vmatprep.mubr.f32.mxu0 0.0
      %2486 = vmatmul.mubr.f32.gmra.mrb[0].mxu0 %v2216
      %v2487 = vpop.f32.mrb[0].mxu0
      %v2488 = vadd.f32 0.0, %v2487
      %v2489 = vpop.f32.mrb[0].mxu0
      %2490 = vmatprep.mubr.f32.mxu0 0.0
      %2491 = vmatmul.mubr.f32.gmra.mrb[0].mxu0 %v2219
      %v2492 = vpop.f32.mrb[0].mxu0
      %v2493 = vadd.f32 0.0, %v2492
      %v2494 = vpop.f32.mrb[0].mxu0
      %2495 = vmatprep.mubr.f32.mxu0 0.0
      %2496 = vmatmul.mubr.f32.gmra.mrb[0].mxu0 %v2222
      %v2497 = vpop.f32.mrb[0].mxu0
      %v2498 = vadd.f32 0.0, %v2497
      %v2499 = vpop.f32.mrb[0].mxu0
      %2500 = vmatprep.mubr.f32.mxu0 0.0
      %2501 = vmatmul.mubr.f32.gmra.mrb[0].mxu0 %v2225
      %v2502 = vpop.f32.mrb[0].mxu0
      %v2503 = vadd.f32 0.0, %v2502
      %v2504 = vpop.f32.mrb[0].mxu0
      %2505 = vmatprep.mubr.f32.mxu0 0.0
      %2506 = vmatmul.mubr.f32.gmra.mrb[0].mxu0 %v2228
      %v2507 = vpop.f32.mrb[0].mxu0
      %v2508 = vadd.f32 0.0, %v2507
      %v2509 = vpop.f32.mrb[0].mxu0
      %2510 = vmatprep.mubr.f32.mxu0 0.0
      %2511 = vmatmul.mubr.f32.gmra.mrb[0].mxu0 %v2231
      %v2512 = vpop.f32.mrb[0].mxu0
      %v2513 = vadd.f32 0.0, %v2512
      %v2514 = vpop.f32.mrb[0].mxu0
      %2515 = vmatprep.mubr.f32.mxu0 0.0
      %2516 = vmatmul.mubr.f32.gmra.mrb[0].mxu0 %v2234
      %v2517 = vpop.f32.mrb[0].mxu0
      %v2518 = vadd.f32 0.0, %v2517
      %v2519 = vpop.f32.mrb[0].mxu0
      %2520 = vmatprep.mubr.f32.mxu0 0.0
      %2521 = vmatmul.mubr.f32.gmra.mrb[0].mxu0 %v2237
      %v2522 = vpop.f32.mrb[0].mxu0
      %v2523 = vadd.f32 0.0, %v2522
      %v2524 = vpop.f32.mrb[0].mxu0
      %2525 = vmatprep.mubr.f32.mxu0 0.0
      %2526 = vmatmul.mubr.f32.gmra.mrb[0].mxu0 %v2240
      %v2527 = vpop.f32.mrb[0].mxu0
      %v2528 = vadd.f32 0.0, %v2527
      %v2529 = vpop.f32.mrb[0].mxu0
      %2530 = vmatprep.mubr.f32.mxu0 0.0
      %2531 = vmatmul.mubr.f32.gmra.mrb[0].mxu0 %v2243
      %v2532 = vpop.f32.mrb[0].mxu0
      %v2533 = vadd.f32 0.0, %v2532
      %v2534 = vpop.f32.mrb[0].mxu0
      %2535 = vmatprep.mubr.f32.mxu0 0.0
      %2536 = vmatmul.mubr.f32.gmra.mrb[0].mxu0 %v2246
      %v2537 = vpop.f32.mrb[0].mxu0
      %v2538 = vadd.f32 0.0, %v2537
      %v2539 = vpop.f32.mrb[0].mxu0
      %2540 = vmatprep.mubr.f32.mxu0 0.0
      %2541 = vmatmul.mubr.f32.gmra.mrb[0].mxu0 %v2249
      %v2542 = vpop.f32.mrb[0].mxu0
      %v2543 = vadd.f32 0.0, %v2542
      %v2544 = vpop.f32.mrb[0].mxu0
      %2545 = vmatprep.mubr.f32.mxu0 0.0
      %2546 = vmatmul.mubr.f32.gmra.mrb[0].mxu0 %v2252
      %v2547 = vpop.f32.mrb[0].mxu0
      %v2548 = vadd.f32 0.0, %v2547
      %v2549 = vpop.f32.mrb[0].mxu0
      %2550 = vmatprep.mubr.f32.mxu0 0.0
      %2551 = vmatmul.mubr.f32.gmra.mrb[0].mxu0 %v2255
      %v2552 = vpop.f32.mrb[0].mxu0
      %v2553 = vadd.f32 0.0, %v2552
      %v2554 = vpop.f32.mrb[0].mxu0
      %2555 = vmatprep.mubr.f32.mxu0 0.0
      %2556 = vmatmul.mubr.f32.gmra.mrb[0].mxu0 %v2258
      %v2557 = vpop.f32.mrb[0].mxu0
      %v2558 = vadd.f32 0.0, %v2557
      %v2559 = vpop.f32.mrb[0].mxu0
      %2560 = vmatprep.mubr.f32.mxu0 0.0
      %2561 = vmatmul.mubr.f32.gmra.mrb[0].mxu0 %v2261
      %v2562 = vpop.f32.mrb[0].mxu0
      %v2563 = vadd.f32 0.0, %v2562
      %v2564 = vpop.f32.mrb[0].mxu0
      %2565 = vmatprep.mubr.f32.mxu0 0.0
      %2566 = vmatmul.mubr.f32.gmra.mrb[0].mxu0 %v2264
      %v2567 = vpop.f32.mrb[0].mxu0
      %v2568 = vadd.f32 0.0, %v2567
      %v2569 = vpop.f32.mrb[0].mxu0
      %2570 = vmatprep.mubr.f32.mxu0 0.0
      %2571 = vmatmul.mubr.f32.gmra.mrb[0].mxu0 %v2267
      %v2572 = vpop.f32.mrb[0].mxu0
      %v2573 = vadd.f32 0.0, %v2572
      %v2574 = vpop.f32.mrb[0].mxu0
      %2575 = vmatprep.mubr.f32.mxu0 0.0
      %2576 = vmatmul.mubr.f32.gmra.mrb[0].mxu0 %v2270
      %v2577 = vpop.f32.mrb[0].mxu0
      %v2578 = vadd.f32 0.0, %v2577
      %v2579 = vpop.f32.mrb[0].mxu0
      %2580 = vdwg.mxu0
      %2581 = vst.msk [vmem:[%s245] sm:$0xff] %vm1776, %v2343
      %2582 = vst.msk [vmem:[%s245 + $0x8] sm:$0xff] %vm1776, %v2348
      %2583 = vst.msk [vmem:[%s245 + $0x10] sm:$0xff] %vm1776, %v2353
      %2584 = vst.msk [vmem:[%s245 + $0x18] sm:$0xff] %vm1776, %v2358
      %2585 = vst.msk [vmem:[%s245 + $0x20] sm:$0xff] %vm1776, %v2363
      %2586 = vst.msk [vmem:[%s245 + $0x28] sm:$0xff] %vm1776, %v2368
      %2587 = vst.msk [vmem:[%s245 + $0x30] sm:$0xff] %vm1776, %v2373
      %2588 = vst.msk [vmem:[%s245 + $0x38] sm:$0xff] %vm1776, %v2378
      %2589 = vst.msk [vmem:[%s245 + $0x40] sm:$0xff] %vm1776, %v2383
      %2590 = vst.msk [vmem:[%s245 + $0x48] sm:$0xff] %vm1776, %v2388
      %2591 = vst.msk [vmem:[%s245 + $0x50] sm:$0xff] %vm1776, %v2393
      %2592 = vst.msk [vmem:[%s245 + $0x58] sm:$0xff] %vm1776, %v2398
      %2593 = vst.msk [vmem:[%s245 + $0x60] sm:$0xff] %vm1776, %v2403
      %2594 = vst.msk [vmem:[%s245 + $0x68] sm:$0xff] %vm1776, %v2408
      %2595 = vst.msk [vmem:[%s245 + $0x70] sm:$0xff] %vm1776, %v2413
      %2596 = vst.msk [vmem:[%s245 + $0x78] sm:$0xff] %vm1776, %v2418
      %2597 = vst.msk [vmem:[%s245 + $0x80] sm:$0xff] %vm1776, %v2423
      %2598 = vst.msk [vmem:[%s245 + $0x88] sm:$0xff] %vm1776, %v2428
      %2599 = vst.msk [vmem:[%s245 + $0x90] sm:$0xff] %vm1776, %v2433
      %2600 = vst.msk [vmem:[%s245 + $0x98] sm:$0xff] %vm1776, %v2438
      %2601 = vst.msk [vmem:[%s245 + $0xa0] sm:$0xff] %vm1776, %v2443
      %2602 = vst.msk [vmem:[%s245 + $0xa8] sm:$0xff] %vm1776, %v2448
      %2603 = vst.msk [vmem:[%s245 + $0xb0] sm:$0xff] %vm1776, %v2453
      %2604 = vst.msk [vmem:[%s245 + $0xb8] sm:$0xff] %vm1776, %v2458
      %2605 = vst.msk [vmem:[%s245 + $0xc0] sm:$0xff] %vm1776, %v2463
      %2606 = vst.msk [vmem:[%s245 + $0xc8] sm:$0xff] %vm1776, %v2468
      %2607 = vst.msk [vmem:[%s245 + $0xd0] sm:$0xff] %vm1776, %v2473
      %2608 = vst.msk [vmem:[%s245 + $0xd8] sm:$0xff] %vm1776, %v2478
      %2609 = vst.msk [vmem:[%s245 + $0xe0] sm:$0xff] %vm1776, %v2483
      %2610 = vst.msk [vmem:[%s245 + $0xe8] sm:$0xff] %vm1776, %v2488
      %2611 = vst.msk [vmem:[%s245 + $0xf0] sm:$0xff] %vm1776, %v2493
      %2612 = vst.msk [vmem:[%s245 + $0xf8] sm:$0xff] %vm1776, %v2498
      %2613 = vst.msk [vmem:[%s245 + $0x100] sm:$0xff] %vm1776, %v2503
      %2614 = vst.msk [vmem:[%s245 + $0x108] sm:$0xff] %vm1776, %v2508
      %2615 = vst.msk [vmem:[%s245 + $0x110] sm:$0xff] %vm1776, %v2513
      %2616 = vst.msk [vmem:[%s245 + $0x118] sm:$0xff] %vm1776, %v2518
      %2617 = vst.msk [vmem:[%s245 + $0x120] sm:$0xff] %vm1776, %v2523
      %2618 = vst.msk [vmem:[%s245 + $0x128] sm:$0xff] %vm1776, %v2528
      %2619 = vst.msk [vmem:[%s245 + $0x130] sm:$0xff] %vm1776, %v2533
      %2620 = vst.msk [vmem:[%s245 + $0x138] sm:$0xff] %vm1776, %v2538
      %2621 = vst.msk [vmem:[%s245 + $0x140] sm:$0xff] %vm1776, %v2543
      %2622 = vst.msk [vmem:[%s245 + $0x148] sm:$0xff] %vm1776, %v2548
      %2623 = vst.msk [vmem:[%s245 + $0x150] sm:$0xff] %vm1776, %v2553
      %2624 = vst.msk [vmem:[%s245 + $0x158] sm:$0xff] %vm1776, %v2558
      %2625 = vst.msk [vmem:[%s245 + $0x160] sm:$0xff] %vm1776, %v2563
      %2626 = vst.msk [vmem:[%s245 + $0x168] sm:$0xff] %vm1776, %v2568
      %2627 = vst.msk [vmem:[%s245 + $0x170] sm:$0xff] %vm1776, %v2573
      %2628 = vst.msk [vmem:[%s245 + $0x178] sm:$0xff] %vm1776, %v2578
      %2629 = vmatprep.subr.mxu0 0.0
      %2630 = vmatpush1.msra.mxu0 %v2343
      %2631 = vmatprep.subr.mxu0 0.0
      %2632 = vmatpush1.msra.mxu0 %v2348
      %2633 = vmatprep.subr.mxu0 0.0
      %2634 = vmatpush1.msra.mxu0 %v2353
      %2635 = vmatprep.subr.mxu0 0.0
      %2636 = vmatpush1.msra.mxu0 %v2358
      %2637 = vmatprep.subr.mxu0 0.0
      %2638 = vmatpush1.msra.mxu0 %v2363
      %2639 = vmatprep.subr.mxu0 0.0
      %2640 = vmatpush1.msra.mxu0 %v2368
      %2641 = vmatprep.subr.mxu0 0.0
      %2642 = vmatpush1.msra.mxu0 %v2373
      %2643 = vmatprep.subr.mxu0 0.0
      %2644 = vmatpush1.msra.mxu0 %v2378
      %2645 = vmatprep.subr.mxu0 0.0
      %2646 = vmatpush1.msra.mxu0 %v2383
      %2647 = vmatprep.subr.mxu0 0.0
      %2648 = vmatpush1.msra.mxu0 %v2388
      %2649 = vmatprep.subr.mxu0 0.0
      %2650 = vmatpush1.msra.mxu0 %v2393
      %2651 = vmatprep.subr.mxu0 0.0
      %2652 = vmatpush1.msra.mxu0 %v2398
      %2653 = vmatprep.subr.mxu0 0.0
      %2654 = vmatpush1.msra.mxu0 %v2403
      %2655 = vmatprep.subr.mxu0 0.0
      %2656 = vmatpush1.msra.mxu0 %v2408
      %2657 = vmatprep.subr.mxu0 0.0
      %2658 = vmatpush1.msra.mxu0 %v2413
      %2659 = vmatprep.subr.mxu0 0.0
      %2660 = vmatpush1.msra.mxu0 %v2418
      %2661 = vmatprep.subr.mxu0 0.0
      %2662 = vmatpush1.msra.mxu0 %v2423
      %2663 = vmatprep.subr.mxu0 0.0
      %2664 = vmatpush1.msra.mxu0 %v2428
      %2665 = vmatprep.subr.mxu0 0.0
      %2666 = vmatpush1.msra.mxu0 %v2433
      %2667 = vmatprep.subr.mxu0 0.0
      %2668 = vmatpush1.msra.mxu0 %v2438
      %2669 = vmatprep.subr.mxu0 0.0
      %2670 = vmatpush1.msra.mxu0 %v2443
      %2671 = vmatprep.subr.mxu0 0.0
      %2672 = vmatpush1.msra.mxu0 %v2448
      %2673 = vmatprep.subr.mxu0 0.0
      %2674 = vmatpush1.msra.mxu0 %v2453
      %2675 = vmatprep.subr.mxu0 0.0
      %2676 = vmatpush1.msra.mxu0 %v2458
      %2677 = vmatprep.subr.mxu0 0.0
      %2678 = vmatpush1.msra.mxu0 %v2463
      %2679 = vmatprep.subr.mxu0 0.0
      %2680 = vmatpush1.msra.mxu0 %v2468
      %2681 = vmatprep.subr.mxu0 0.0
      %2682 = vmatpush1.msra.mxu0 %v2473
      %2683 = vmatprep.subr.mxu0 0.0
      %2684 = vmatpush1.msra.mxu0 %v2478
      %2685 = vmatprep.subr.mxu0 0.0
      %2686 = vmatpush1.msra.mxu0 %v2483
      %2687 = vmatprep.subr.mxu0 0.0
      %2688 = vmatpush1.msra.mxu0 %v2488
      %2689 = vmatprep.subr.mxu0 0.0
      %2690 = vmatpush1.msra.mxu0 %v2493
      %2691 = vmatprep.subr.mxu0 0.0
      %2692 = vmatpush1.msra.mxu0 %v2498
      %2693 = vmatprep.mubr.f32.mxu0 %v2120
      %2694 = vmatmul.mubr.f32.gmra.mrb[0].mxu0 %v2119
      %v2695 = vpop.f32.mrb[0].mxu0
      %v2696 = vadd.f32 0.0, %v2695
      %v2697 = vpop.f32.mrb[0].mxu0
      %2698 = vdwg.mxu0
      %2699 = vmatprep.subr.mxu0 0.0
      %2700 = vmatpush1.msra.mxu0 %v2503
      %2701 = vmatprep.subr.mxu0 0.0
      %2702 = vmatpush1.msra.mxu0 %v2508
      %2703 = vmatprep.subr.mxu0 0.0
      %2704 = vmatpush1.msra.mxu0 %v2513
      %2705 = vmatprep.subr.mxu0 0.0
      %2706 = vmatpush1.msra.mxu0 %v2518
      %2707 = vmatprep.subr.mxu0 0.0
      %2708 = vmatpush1.msra.mxu0 %v2523
      %2709 = vmatprep.subr.mxu0 0.0
      %2710 = vmatpush1.msra.mxu0 %v2528
      %2711 = vmatprep.subr.mxu0 0.0
      %2712 = vmatpush1.msra.mxu0 %v2533
      %2713 = vmatprep.subr.mxu0 0.0
      %2714 = vmatpush1.msra.mxu0 %v2538
      %2715 = vmatprep.subr.mxu0 0.0
      %2716 = vmatpush1.msra.mxu0 %v2543
      %2717 = vmatprep.subr.mxu0 0.0
      %2718 = vmatpush1.msra.mxu0 %v2548
      %2719 = vmatprep.subr.mxu0 0.0
      %2720 = vmatpush1.msra.mxu0 %v2553
      %2721 = vmatprep.subr.mxu0 0.0
      %2722 = vmatpush1.msra.mxu0 %v2558
      %2723 = vmatprep.subr.mxu0 0.0
      %2724 = vmatpush1.msra.mxu0 %v2563
      %2725 = vmatprep.subr.mxu0 0.0
      %2726 = vmatpush1.msra.mxu0 %v2568
      %2727 = vmatprep.subr.mxu0 0.0
      %2728 = vmatpush1.msra.mxu0 %v2573
      %2729 = vmatprep.subr.mxu0 0.0
      %2730 = vmatpush1.msra.mxu0 %v2578
      %2731 = vmatprep.subr.mxu0 0.0
      %2732 = vmatpush1.msra.mxu0 0.0
      %2733 = vmatprep.subr.mxu0 0.0
      %2734 = vmatpush1.msra.mxu0 0.0
      %2735 = vmatprep.subr.mxu0 0.0
      %2736 = vmatpush1.msra.mxu0 0.0
      %2737 = vmatprep.subr.mxu0 0.0
      %2738 = vmatpush1.msra.mxu0 0.0
      %2739 = vmatprep.subr.mxu0 0.0
      %2740 = vmatpush1.msra.mxu0 0.0
      %2741 = vmatprep.subr.mxu0 0.0
      %2742 = vmatpush1.msra.mxu0 0.0
      %2743 = vmatprep.subr.mxu0 0.0
      %2744 = vmatpush1.msra.mxu0 0.0
      %2745 = vmatprep.subr.mxu0 0.0
      %2746 = vmatpush1.msra.mxu0 0.0
      %2747 = vmatprep.subr.mxu0 0.0
      %2748 = vmatpush1.msra.mxu0 0.0
      %2749 = vmatprep.subr.mxu0 0.0
      %2750 = vmatpush1.msra.mxu0 0.0
      %2751 = vmatprep.subr.mxu0 0.0
      %2752 = vmatpush1.msra.mxu0 0.0
      %2753 = vmatprep.subr.mxu0 0.0
      %2754 = vmatpush1.msra.mxu0 0.0
      %2755 = vmatprep.subr.mxu0 0.0
      %2756 = vmatpush1.msra.mxu0 0.0
      %2757 = vmatprep.subr.mxu0 0.0
      %2758 = vmatpush1.msra.mxu0 0.0
      %2759 = vmatprep.subr.mxu0 0.0
      %2760 = vmatpush1.msra.mxu0 0.0
      %2761 = vmatprep.subr.mxu0 0.0
      %2762 = vmatpush1.msra.mxu0 0.0
      %2763 = vmatprep.mubr.f32.mxu0 0.0
      %2764 = vmatmul.mubr.f32.gmra.mrb[0].mxu0 %v2121
      %v2765 = vpop.f32.mrb[0].mxu0
      %v2766 = vadd.f32 %v2696, %v2765
      %v2767 = vpop.f32.mrb[0].mxu0
      %2768 = vdwg.mxu0
      %v2769 = vmul.f32 %v2343, %v2343
      %v2770 = vmul.f32 %v2348, %v2348
      %v2771 = vmul.f32 %v2353, %v2353
      %v2772 = vmul.f32 %v2358, %v2358
      %v2773 = vmul.f32 %v2363, %v2363
      %v2774 = vmul.f32 %v2368, %v2368
      %v2775 = vmul.f32 %v2373, %v2373
      %v2776 = vmul.f32 %v2378, %v2378
      %v2777 = vmul.f32 %v2383, %v2383
      %v2778 = vmul.f32 %v2388, %v2388
      %v2779 = vmul.f32 %v2393, %v2393
      %v2780 = vmul.f32 %v2398, %v2398
      %v2781 = vmul.f32 %v2403, %v2403
      %v2782 = vmul.f32 %v2408, %v2408
      %v2783 = vmul.f32 %v2413, %v2413
      %v2784 = vmul.f32 %v2418, %v2418
      %v2785 = vmul.f32 %v2423, %v2423
      %v2786 = vmul.f32 %v2428, %v2428
      %v2787 = vmul.f32 %v2433, %v2433
      %v2788 = vmul.f32 %v2438, %v2438
      %v2789 = vmul.f32 %v2443, %v2443
      %v2790 = vmul.f32 %v2448, %v2448
      %v2791 = vmul.f32 %v2453, %v2453
      %v2792 = vmul.f32 %v2458, %v2458
      %v2793 = vmul.f32 %v2463, %v2463
      %v2794 = vmul.f32 %v2468, %v2468
      %v2795 = vmul.f32 %v2473, %v2473
      %v2796 = vmul.f32 %v2478, %v2478
      %v2797 = vmul.f32 %v2483, %v2483
      %v2798 = vmul.f32 %v2488, %v2488
      %v2799 = vmul.f32 %v2493, %v2493
      %v2800 = vmul.f32 %v2498, %v2498
      %v2801 = vmul.f32 %v2503, %v2503
      %v2802 = vmul.f32 %v2508, %v2508
      %v2803 = vmul.f32 %v2513, %v2513
      %v2804 = vmul.f32 %v2518, %v2518
      %v2805 = vmul.f32 %v2523, %v2523
      %v2806 = vmul.f32 %v2528, %v2528
      %v2807 = vmul.f32 %v2533, %v2533
      %v2808 = vmul.f32 %v2538, %v2538
      %v2809 = vmul.f32 %v2543, %v2543
      %v2810 = vmul.f32 %v2548, %v2548
      %v2811 = vmul.f32 %v2553, %v2553
      %v2812 = vmul.f32 %v2558, %v2558
      %v2813 = vmul.f32 %v2563, %v2563
      %v2814 = vmul.f32 %v2568, %v2568
      %v2815 = vmul.f32 %v2573, %v2573
      %v2816 = vmul.f32 %v2578, %v2578
      %2817 = vmatprep.subr.mxu0 0.0
      %2818 = vmatpush1.msra.mxu0 %v2769
      %2819 = vmatprep.subr.mxu0 0.0
      %2820 = vmatpush1.msra.mxu0 %v2770
      %2821 = vmatprep.subr.mxu0 0.0
      %2822 = vmatpush1.msra.mxu0 %v2771
      %2823 = vmatprep.subr.mxu0 0.0
      %2824 = vmatpush1.msra.mxu0 %v2772
      %2825 = vmatprep.subr.mxu0 0.0
      %2826 = vmatpush1.msra.mxu0 %v2773
      %2827 = vmatprep.subr.mxu0 0.0
      %2828 = vmatpush1.msra.mxu0 %v2774
      %2829 = vmatprep.subr.mxu0 0.0
      %2830 = vmatpush1.msra.mxu0 %v2775
      %2831 = vmatprep.subr.mxu0 0.0
      %2832 = vmatpush1.msra.mxu0 %v2776
      %2833 = vmatprep.subr.mxu0 0.0
      %2834 = vmatpush1.msra.mxu0 %v2777
      %2835 = vmatprep.subr.mxu0 0.0
      %2836 = vmatpush1.msra.mxu0 %v2778
      %2837 = vmatprep.subr.mxu0 0.0
      %2838 = vmatpush1.msra.mxu0 %v2779
      %2839 = vmatprep.subr.mxu0 0.0
      %2840 = vmatpush1.msra.mxu0 %v2780
      %2841 = vmatprep.subr.mxu0 0.0
      %2842 = vmatpush1.msra.mxu0 %v2781
      %2843 = vmatprep.subr.mxu0 0.0
      %2844 = vmatpush1.msra.mxu0 %v2782
      %2845 = vmatprep.subr.mxu0 0.0
      %2846 = vmatpush1.msra.mxu0 %v2783
      %2847 = vmatprep.subr.mxu0 0.0
      %2848 = vmatpush1.msra.mxu0 %v2784
      %2849 = vmatprep.subr.mxu0 0.0
      %2850 = vmatpush1.msra.mxu0 %v2785
      %2851 = vmatprep.subr.mxu0 0.0
      %2852 = vmatpush1.msra.mxu0 %v2786
      %2853 = vmatprep.subr.mxu0 0.0
      %2854 = vmatpush1.msra.mxu0 %v2787
      %2855 = vmatprep.subr.mxu0 0.0
      %2856 = vmatpush1.msra.mxu0 %v2788
      %2857 = vmatprep.subr.mxu0 0.0
      %2858 = vmatpush1.msra.mxu0 %v2789
      %2859 = vmatprep.subr.mxu0 0.0
      %2860 = vmatpush1.msra.mxu0 %v2790
      %2861 = vmatprep.subr.mxu0 0.0
      %2862 = vmatpush1.msra.mxu0 %v2791
      %2863 = vmatprep.subr.mxu0 0.0
      %2864 = vmatpush1.msra.mxu0 %v2792
      %2865 = vmatprep.subr.mxu0 0.0
      %2866 = vmatpush1.msra.mxu0 %v2793
      %2867 = vmatprep.subr.mxu0 0.0
      %2868 = vmatpush1.msra.mxu0 %v2794
      %2869 = vmatprep.subr.mxu0 0.0
      %2870 = vmatpush1.msra.mxu0 %v2795
      %2871 = vmatprep.subr.mxu0 0.0
      %2872 = vmatpush1.msra.mxu0 %v2796
      %2873 = vmatprep.subr.mxu0 0.0
      %2874 = vmatpush1.msra.mxu0 %v2797
      %2875 = vmatprep.subr.mxu0 0.0
      %2876 = vmatpush1.msra.mxu0 %v2798
      %2877 = vmatprep.subr.mxu0 0.0
      %2878 = vmatpush1.msra.mxu0 %v2799
      %2879 = vmatprep.subr.mxu0 0.0
      %2880 = vmatpush1.msra.mxu0 %v2800
      %2881 = vmatprep.mubr.f32.mxu0 %v2120
      %2882 = vmatmul.mubr.f32.gmra.mrb[0].mxu0 %v2119
      %v2883 = vpop.f32.mrb[0].mxu0
      %v2884 = vadd.f32 0.0, %v2883
      %v2885 = vpop.f32.mrb[0].mxu0
      %2886 = vdwg.mxu0
      %2887 = vmatprep.subr.mxu0 0.0
      %2888 = vmatpush1.msra.mxu0 %v2801
      %2889 = vmatprep.subr.mxu0 0.0
      %2890 = vmatpush1.msra.mxu0 %v2802
      %2891 = vmatprep.subr.mxu0 0.0
      %2892 = vmatpush1.msra.mxu0 %v2803
      %2893 = vmatprep.subr.mxu0 0.0
      %2894 = vmatpush1.msra.mxu0 %v2804
      %2895 = vmatprep.subr.mxu0 0.0
      %2896 = vmatpush1.msra.mxu0 %v2805
      %2897 = vmatprep.subr.mxu0 0.0
      %2898 = vmatpush1.msra.mxu0 %v2806
      %2899 = vmatprep.subr.mxu0 0.0
      %2900 = vmatpush1.msra.mxu0 %v2807
      %2901 = vmatprep.subr.mxu0 0.0
      %2902 = vmatpush1.msra.mxu0 %v2808
      %2903 = vmatprep.subr.mxu0 0.0
      %2904 = vmatpush1.msra.mxu0 %v2809
      %2905 = vmatprep.subr.mxu0 0.0
      %2906 = vmatpush1.msra.mxu0 %v2810
      %2907 = vmatprep.subr.mxu0 0.0
      %2908 = vmatpush1.msra.mxu0 %v2811
      %2909 = vmatprep.subr.mxu0 0.0
      %2910 = vmatpush1.msra.mxu0 %v2812
      %2911 = vmatprep.subr.mxu0 0.0
      %2912 = vmatpush1.msra.mxu0 %v2813
      %2913 = vmatprep.subr.mxu0 0.0
      %2914 = vmatpush1.msra.mxu0 %v2814
      %2915 = vmatprep.subr.mxu0 0.0
      %2916 = vmatpush1.msra.mxu0 %v2815
      %2917 = vmatprep.subr.mxu0 0.0
      %2918 = vmatpush1.msra.mxu0 %v2816
      %2919 = vmatprep.subr.mxu0 0.0
      %2920 = vmatpush1.msra.mxu0 0.0
      %2921 = vmatprep.subr.mxu0 0.0
      %2922 = vmatpush1.msra.mxu0 0.0
      %2923 = vmatprep.subr.mxu0 0.0
      %2924 = vmatpush1.msra.mxu0 0.0
      %2925 = vmatprep.subr.mxu0 0.0
      %2926 = vmatpush1.msra.mxu0 0.0
      %2927 = vmatprep.subr.mxu0 0.0
      %2928 = vmatpush1.msra.mxu0 0.0
      %2929 = vmatprep.subr.mxu0 0.0
      %2930 = vmatpush1.msra.mxu0 0.0
      %2931 = vmatprep.subr.mxu0 0.0
      %2932 = vmatpush1.msra.mxu0 0.0
      %2933 = vmatprep.subr.mxu0 0.0
      %2934 = vmatpush1.msra.mxu0 0.0
      %2935 = vmatprep.subr.mxu0 0.0
      %2936 = vmatpush1.msra.mxu0 0.0
      %2937 = vmatprep.subr.mxu0 0.0
      %2938 = vmatpush1.msra.mxu0 0.0
      %2939 = vmatprep.subr.mxu0 0.0
      %2940 = vmatpush1.msra.mxu0 0.0
      %2941 = vmatprep.subr.mxu0 0.0
      %2942 = vmatpush1.msra.mxu0 0.0
      %2943 = vmatprep.subr.mxu0 0.0
      %2944 = vmatpush1.msra.mxu0 0.0
      %2945 = vmatprep.subr.mxu0 0.0
      %2946 = vmatpush1.msra.mxu0 0.0
      %2947 = vmatprep.subr.mxu0 0.0
      %2948 = vmatpush1.msra.mxu0 0.0
      %2949 = vmatprep.subr.mxu0 0.0
      %2950 = vmatpush1.msra.mxu0 0.0
      %2951 = vmatprep.mubr.f32.mxu0 0.0
      %2952 = vmatmul.mubr.f32.gmra.mrb[0].mxu0 %v2121
      %v2953 = vpop.f32.mrb[0].mxu0
      %v2954 = vadd.f32 %v2884, %v2953
      %v2955 = vpop.f32.mrb[0].mxu0
      %2956 = vdwg.mxu0
      %s2957 = scalar_lea.vmem %s1, 40
      %v2958 = vld [vmem:[%s2957] sm:$0xff]
      %v2959 = vld [vmem:[%s2957 + $0x8] sm:$0xff]
      %v2960 = vld [vmem:[%s2957 + $0x10] sm:$0xff]
      %v2961 = vld [vmem:[%s2957 + $0x18] sm:$0xff]
      %v2962 = vld [vmem:[%s2957 + $0x20] sm:$0xf]
      %v2964 = vsel %vm2272, %v2962, 0
      %2966 = vmatprep.subr.mxu0 0.0
      %2967 = vmatpush1.msra.mxu0 %v2958
      %2968 = vmatprep.subr.mxu0 0.0
      %2969 = vmatpush1.msra.mxu0 %v2959
      %2970 = vmatprep.subr.mxu0 0.0
      %2971 = vmatpush1.msra.mxu0 %v2960
      %2972 = vmatprep.subr.mxu0 0.0
      %2973 = vmatpush1.msra.mxu0 %v2961
      %2974 = vmatprep.subr.mxu0 0.0
      %2975 = vmatpush1.msra.mxu0 %v2964
      %2976 = vmatprep.subr.mxu0 0.0
      %2977 = vmatpush1.msra.mxu0 0.0
      %2978 = vmatprep.subr.mxu0 0.0
      %2979 = vmatpush1.msra.mxu0 0.0
      %2980 = vmatprep.subr.mxu0 0.0
      %2981 = vmatpush1.msra.mxu0 0.0
      %2982 = vmatprep.subr.mxu0 0.0
      %2983 = vmatpush1.msra.mxu0 0.0
      %2984 = vmatprep.subr.mxu0 0.0
      %2985 = vmatpush1.msra.mxu0 0.0
      %2986 = vmatprep.subr.mxu0 0.0
      %2987 = vmatpush1.msra.mxu0 0.0
      %2988 = vmatprep.subr.mxu0 0.0
      %2989 = vmatpush1.msra.mxu0 0.0
      %2990 = vmatprep.subr.mxu0 0.0
      %2991 = vmatpush1.msra.mxu0 0.0
      %2992 = vmatprep.subr.mxu0 0.0
      %2993 = vmatpush1.msra.mxu0 0.0
      %2994 = vmatprep.subr.mxu0 0.0
      %2995 = vmatpush1.msra.mxu0 0.0
      %2996 = vmatprep.subr.mxu0 0.0
      %2997 = vmatpush1.msra.mxu0 0.0
      %2998 = vmatprep.subr.mxu0 0.0
      %2999 = vmatpush1.msra.mxu0 0.0
      %3000 = vmatprep.subr.mxu0 0.0
      %3001 = vmatpush1.msra.mxu0 0.0
      %3002 = vmatprep.subr.mxu0 0.0
      %3003 = vmatpush1.msra.mxu0 0.0
      %3004 = vmatprep.subr.mxu0 0.0
      %3005 = vmatpush1.msra.mxu0 0.0
      %3006 = vmatprep.subr.mxu0 0.0
      %3007 = vmatpush1.msra.mxu0 0.0
      %3008 = vmatprep.subr.mxu0 0.0
      %3009 = vmatpush1.msra.mxu0 0.0
      %3010 = vmatprep.subr.mxu0 0.0
      %3011 = vmatpush1.msra.mxu0 0.0
      %3012 = vmatprep.subr.mxu0 0.0
      %3013 = vmatpush1.msra.mxu0 0.0
      %3014 = vmatprep.subr.mxu0 0.0
      %3015 = vmatpush1.msra.mxu0 0.0
      %3016 = vmatprep.subr.mxu0 0.0
      %3017 = vmatpush1.msra.mxu0 0.0
      %3018 = vmatprep.subr.mxu0 0.0
      %3019 = vmatpush1.msra.mxu0 0.0
      %3020 = vmatprep.subr.mxu0 0.0
      %3021 = vmatpush1.msra.mxu0 0.0
      %3022 = vmatprep.subr.mxu0 0.0
      %3023 = vmatpush1.msra.mxu0 0.0
      %3024 = vmatprep.subr.mxu0 0.0
      %3025 = vmatpush1.msra.mxu0 0.0
      %3026 = vmatprep.subr.mxu0 0.0
      %3027 = vmatpush1.msra.mxu0 0.0
      %3028 = vmatprep.subr.mxu0 0.0
      %3029 = vmatpush1.msra.mxu0 0.0
      %3030 = vmatprep.mubr.f32.mxu0 0.0
      %3031 = vmatmul.mubr.f32.gmra.mrb[0].mxu0 %v2129
      %v3032 = vpop.f32.mrb[0].mxu0
      %v3033 = vadd.f32 0.0, %v3032
      %v3034 = vpop.f32.mrb[0].mxu0
      %3035 = vmatprep.mubr.f32.mxu0 0.0
      %3036 = vmatmul.mubr.f32.gmra.mrb[0].mxu0 %v2132
      %v3037 = vpop.f32.mrb[0].mxu0
      %v3038 = vadd.f32 0.0, %v3037
      %v3039 = vpop.f32.mrb[0].mxu0
      %3040 = vmatprep.mubr.f32.mxu0 0.0
      %3041 = vmatmul.mubr.f32.gmra.mrb[0].mxu0 %v2135
      %v3042 = vpop.f32.mrb[0].mxu0
      %v3043 = vadd.f32 0.0, %v3042
      %v3044 = vpop.f32.mrb[0].mxu0
      %3045 = vmatprep.mubr.f32.mxu0 0.0
      %3046 = vmatmul.mubr.f32.gmra.mrb[0].mxu0 %v2138
      %v3047 = vpop.f32.mrb[0].mxu0
      %v3048 = vadd.f32 0.0, %v3047
      %v3049 = vpop.f32.mrb[0].mxu0
      %3050 = vmatprep.mubr.f32.mxu0 0.0
      %3051 = vmatmul.mubr.f32.gmra.mrb[0].mxu0 %v2141
      %v3052 = vpop.f32.mrb[0].mxu0
      %v3053 = vadd.f32 0.0, %v3052
      %v3054 = vpop.f32.mrb[0].mxu0
      %3055 = vmatprep.mubr.f32.mxu0 0.0
      %3056 = vmatmul.mubr.f32.gmra.mrb[0].mxu0 %v2144
      %v3057 = vpop.f32.mrb[0].mxu0
      %v3058 = vadd.f32 0.0, %v3057
      %v3059 = vpop.f32.mrb[0].mxu0
      %3060 = vmatprep.mubr.f32.mxu0 0.0
      %3061 = vmatmul.mubr.f32.gmra.mrb[0].mxu0 %v2147
      %v3062 = vpop.f32.mrb[0].mxu0
      %v3063 = vadd.f32 0.0, %v3062
      %v3064 = vpop.f32.mrb[0].mxu0
      %3065 = vmatprep.mubr.f32.mxu0 0.0
      %3066 = vmatmul.mubr.f32.gmra.mrb[0].mxu0 %v2150
      %v3067 = vpop.f32.mrb[0].mxu0
      %v3068 = vadd.f32 0.0, %v3067
      %v3069 = vpop.f32.mrb[0].mxu0
      %3070 = vmatprep.mubr.f32.mxu0 0.0
      %3071 = vmatmul.mubr.f32.gmra.mrb[0].mxu0 %v2153
      %v3072 = vpop.f32.mrb[0].mxu0
      %v3073 = vadd.f32 0.0, %v3072
      %v3074 = vpop.f32.mrb[0].mxu0
      %3075 = vmatprep.mubr.f32.mxu0 0.0
      %3076 = vmatmul.mubr.f32.gmra.mrb[0].mxu0 %v2156
      %v3077 = vpop.f32.mrb[0].mxu0
      %v3078 = vadd.f32 0.0, %v3077
      %v3079 = vpop.f32.mrb[0].mxu0
      %3080 = vmatprep.mubr.f32.mxu0 0.0
      %3081 = vmatmul.mubr.f32.gmra.mrb[0].mxu0 %v2159
      %v3082 = vpop.f32.mrb[0].mxu0
      %v3083 = vadd.f32 0.0, %v3082
      %v3084 = vpop.f32.mrb[0].mxu0
      %3085 = vmatprep.mubr.f32.mxu0 0.0
      %3086 = vmatmul.mubr.f32.gmra.mrb[0].mxu0 %v2162
      %v3087 = vpop.f32.mrb[0].mxu0
      %v3088 = vadd.f32 0.0, %v3087
      %v3089 = vpop.f32.mrb[0].mxu0
      %3090 = vmatprep.mubr.f32.mxu0 0.0
      %3091 = vmatmul.mubr.f32.gmra.mrb[0].mxu0 %v2165
      %v3092 = vpop.f32.mrb[0].mxu0
      %v3093 = vadd.f32 0.0, %v3092
      %v3094 = vpop.f32.mrb[0].mxu0
      %3095 = vmatprep.mubr.f32.mxu0 0.0
      %3096 = vmatmul.mubr.f32.gmra.mrb[0].mxu0 %v2168
      %v3097 = vpop.f32.mrb[0].mxu0
      %v3098 = vadd.f32 0.0, %v3097
      %v3099 = vpop.f32.mrb[0].mxu0
      %3100 = vmatprep.mubr.f32.mxu0 0.0
      %3101 = vmatmul.mubr.f32.gmra.mrb[0].mxu0 %v2171
      %v3102 = vpop.f32.mrb[0].mxu0
      %v3103 = vadd.f32 0.0, %v3102
      %v3104 = vpop.f32.mrb[0].mxu0
      %3105 = vmatprep.mubr.f32.mxu0 0.0
      %3106 = vmatmul.mubr.f32.gmra.mrb[0].mxu0 %v2174
      %v3107 = vpop.f32.mrb[0].mxu0
      %v3108 = vadd.f32 0.0, %v3107
      %v3109 = vpop.f32.mrb[0].mxu0
      %3110 = vmatprep.mubr.f32.mxu0 0.0
      %3111 = vmatmul.mubr.f32.gmra.mrb[0].mxu0 %v2177
      %v3112 = vpop.f32.mrb[0].mxu0
      %v3113 = vadd.f32 0.0, %v3112
      %v3114 = vpop.f32.mrb[0].mxu0
      %3115 = vmatprep.mubr.f32.mxu0 0.0
      %3116 = vmatmul.mubr.f32.gmra.mrb[0].mxu0 %v2180
      %v3117 = vpop.f32.mrb[0].mxu0
      %v3118 = vadd.f32 0.0, %v3117
      %v3119 = vpop.f32.mrb[0].mxu0
      %3120 = vmatprep.mubr.f32.mxu0 0.0
      %3121 = vmatmul.mubr.f32.gmra.mrb[0].mxu0 %v2183
      %v3122 = vpop.f32.mrb[0].mxu0
      %v3123 = vadd.f32 0.0, %v3122
      %v3124 = vpop.f32.mrb[0].mxu0
      %3125 = vmatprep.mubr.f32.mxu0 0.0
      %3126 = vmatmul.mubr.f32.gmra.mrb[0].mxu0 %v2186
      %v3127 = vpop.f32.mrb[0].mxu0
      %v3128 = vadd.f32 0.0, %v3127
      %v3129 = vpop.f32.mrb[0].mxu0
      %3130 = vmatprep.mubr.f32.mxu0 0.0
      %3131 = vmatmul.mubr.f32.gmra.mrb[0].mxu0 %v2189
      %v3132 = vpop.f32.mrb[0].mxu0
      %v3133 = vadd.f32 0.0, %v3132
      %v3134 = vpop.f32.mrb[0].mxu0
      %3135 = vmatprep.mubr.f32.mxu0 0.0
      %3136 = vmatmul.mubr.f32.gmra.mrb[0].mxu0 %v2192
      %v3137 = vpop.f32.mrb[0].mxu0
      %v3138 = vadd.f32 0.0, %v3137
      %v3139 = vpop.f32.mrb[0].mxu0
      %3140 = vmatprep.mubr.f32.mxu0 0.0
      %3141 = vmatmul.mubr.f32.gmra.mrb[0].mxu0 %v2195
      %v3142 = vpop.f32.mrb[0].mxu0
      %v3143 = vadd.f32 0.0, %v3142
      %v3144 = vpop.f32.mrb[0].mxu0
      %3145 = vmatprep.mubr.f32.mxu0 0.0
      %3146 = vmatmul.mubr.f32.gmra.mrb[0].mxu0 %v2198
      %v3147 = vpop.f32.mrb[0].mxu0
      %v3148 = vadd.f32 0.0, %v3147
      %v3149 = vpop.f32.mrb[0].mxu0
      %3150 = vmatprep.mubr.f32.mxu0 0.0
      %3151 = vmatmul.mubr.f32.gmra.mrb[0].mxu0 %v2201
      %v3152 = vpop.f32.mrb[0].mxu0
      %v3153 = vadd.f32 0.0, %v3152
      %v3154 = vpop.f32.mrb[0].mxu0
      %3155 = vmatprep.mubr.f32.mxu0 0.0
      %3156 = vmatmul.mubr.f32.gmra.mrb[0].mxu0 %v2204
      %v3157 = vpop.f32.mrb[0].mxu0
      %v3158 = vadd.f32 0.0, %v3157
      %v3159 = vpop.f32.mrb[0].mxu0
      %3160 = vmatprep.mubr.f32.mxu0 0.0
      %3161 = vmatmul.mubr.f32.gmra.mrb[0].mxu0 %v2207
      %v3162 = vpop.f32.mrb[0].mxu0
      %v3163 = vadd.f32 0.0, %v3162
      %v3164 = vpop.f32.mrb[0].mxu0
      %3165 = vmatprep.mubr.f32.mxu0 0.0
      %3166 = vmatmul.mubr.f32.gmra.mrb[0].mxu0 %v2210
      %v3167 = vpop.f32.mrb[0].mxu0
      %v3168 = vadd.f32 0.0, %v3167
      %v3169 = vpop.f32.mrb[0].mxu0
      %3170 = vmatprep.mubr.f32.mxu0 0.0
      %3171 = vmatmul.mubr.f32.gmra.mrb[0].mxu0 %v2213
      %v3172 = vpop.f32.mrb[0].mxu0
      %v3173 = vadd.f32 0.0, %v3172
      %v3174 = vpop.f32.mrb[0].mxu0
      %3175 = vmatprep.mubr.f32.mxu0 0.0
      %3176 = vmatmul.mubr.f32.gmra.mrb[0].mxu0 %v2216
      %v3177 = vpop.f32.mrb[0].mxu0
      %v3178 = vadd.f32 0.0, %v3177
      %v3179 = vpop.f32.mrb[0].mxu0
      %3180 = vmatprep.mubr.f32.mxu0 0.0
      %3181 = vmatmul.mubr.f32.gmra.mrb[0].mxu0 %v2219
      %v3182 = vpop.f32.mrb[0].mxu0
      %v3183 = vadd.f32 0.0, %v3182
      %v3184 = vpop.f32.mrb[0].mxu0
      %3185 = vmatprep.mubr.f32.mxu0 0.0
      %3186 = vmatmul.mubr.f32.gmra.mrb[0].mxu0 %v2222
      %v3187 = vpop.f32.mrb[0].mxu0
      %v3188 = vadd.f32 0.0, %v3187
      %v3189 = vpop.f32.mrb[0].mxu0
      %3190 = vmatprep.mubr.f32.mxu0 0.0
      %3191 = vmatmul.mubr.f32.gmra.mrb[0].mxu0 %v2225
      %v3192 = vpop.f32.mrb[0].mxu0
      %v3193 = vadd.f32 0.0, %v3192
      %v3194 = vpop.f32.mrb[0].mxu0
      %3195 = vmatprep.mubr.f32.mxu0 0.0
      %3196 = vmatmul.mubr.f32.gmra.mrb[0].mxu0 %v2228
      %v3197 = vpop.f32.mrb[0].mxu0
      %v3198 = vadd.f32 0.0, %v3197
      %v3199 = vpop.f32.mrb[0].mxu0
      %3200 = vmatprep.mubr.f32.mxu0 0.0
      %3201 = vmatmul.mubr.f32.gmra.mrb[0].mxu0 %v2231
      %v3202 = vpop.f32.mrb[0].mxu0
      %v3203 = vadd.f32 0.0, %v3202
      %v3204 = vpop.f32.mrb[0].mxu0
      %3205 = vmatprep.mubr.f32.mxu0 0.0
      %3206 = vmatmul.mubr.f32.gmra.mrb[0].mxu0 %v2234
      %v3207 = vpop.f32.mrb[0].mxu0
      %v3208 = vadd.f32 0.0, %v3207
      %v3209 = vpop.f32.mrb[0].mxu0
      %3210 = vmatprep.mubr.f32.mxu0 0.0
      %3211 = vmatmul.mubr.f32.gmra.mrb[0].mxu0 %v2237
      %v3212 = vpop.f32.mrb[0].mxu0
      %v3213 = vadd.f32 0.0, %v3212
      %v3214 = vpop.f32.mrb[0].mxu0
      %3215 = vmatprep.mubr.f32.mxu0 0.0
      %3216 = vmatmul.mubr.f32.gmra.mrb[0].mxu0 %v2240
      %v3217 = vpop.f32.mrb[0].mxu0
      %v3218 = vadd.f32 0.0, %v3217
      %v3219 = vpop.f32.mrb[0].mxu0
      %3220 = vmatprep.mubr.f32.mxu0 0.0
      %3221 = vmatmul.mubr.f32.gmra.mrb[0].mxu0 %v2243
      %v3222 = vpop.f32.mrb[0].mxu0
      %v3223 = vadd.f32 0.0, %v3222
      %v3224 = vpop.f32.mrb[0].mxu0
      %3225 = vmatprep.mubr.f32.mxu0 0.0
      %3226 = vmatmul.mubr.f32.gmra.mrb[0].mxu0 %v2246
      %v3227 = vpop.f32.mrb[0].mxu0
      %v3228 = vadd.f32 0.0, %v3227
      %v3229 = vpop.f32.mrb[0].mxu0
      %3230 = vmatprep.mubr.f32.mxu0 0.0
      %3231 = vmatmul.mubr.f32.gmra.mrb[0].mxu0 %v2249
      %v3232 = vpop.f32.mrb[0].mxu0
      %v3233 = vadd.f32 0.0, %v3232
      %v3234 = vpop.f32.mrb[0].mxu0
      %3235 = vmatprep.mubr.f32.mxu0 0.0
      %3236 = vmatmul.mubr.f32.gmra.mrb[0].mxu0 %v2252
      %v3237 = vpop.f32.mrb[0].mxu0
      %v3238 = vadd.f32 0.0, %v3237
      %v3239 = vpop.f32.mrb[0].mxu0
      %3240 = vmatprep.mubr.f32.mxu0 0.0
      %3241 = vmatmul.mubr.f32.gmra.mrb[0].mxu0 %v2255
      %v3242 = vpop.f32.mrb[0].mxu0
      %v3243 = vadd.f32 0.0, %v3242
      %v3244 = vpop.f32.mrb[0].mxu0
      %3245 = vmatprep.mubr.f32.mxu0 0.0
      %3246 = vmatmul.mubr.f32.gmra.mrb[0].mxu0 %v2258
      %v3247 = vpop.f32.mrb[0].mxu0
      %v3248 = vadd.f32 0.0, %v3247
      %v3249 = vpop.f32.mrb[0].mxu0
      %3250 = vmatprep.mubr.f32.mxu0 0.0
      %3251 = vmatmul.mubr.f32.gmra.mrb[0].mxu0 %v2261
      %v3252 = vpop.f32.mrb[0].mxu0
      %v3253 = vadd.f32 0.0, %v3252
      %v3254 = vpop.f32.mrb[0].mxu0
      %3255 = vmatprep.mubr.f32.mxu0 0.0
      %3256 = vmatmul.mubr.f32.gmra.mrb[0].mxu0 %v2264
      %v3257 = vpop.f32.mrb[0].mxu0
      %v3258 = vadd.f32 0.0, %v3257
      %v3259 = vpop.f32.mrb[0].mxu0
      %3260 = vmatprep.mubr.f32.mxu0 0.0
      %3261 = vmatmul.mubr.f32.gmra.mrb[0].mxu0 %v2267
      %v3262 = vpop.f32.mrb[0].mxu0
      %v3263 = vadd.f32 0.0, %v3262
      %v3264 = vpop.f32.mrb[0].mxu0
      %3265 = vmatprep.mubr.f32.mxu0 0.0
      %3266 = vmatmul.mubr.f32.gmra.mrb[0].mxu0 %v2270
      %v3267 = vpop.f32.mrb[0].mxu0
      %v3268 = vadd.f32 0.0, %v3267
      %v3269 = vpop.f32.mrb[0].mxu0
      %3270 = vdwg.mxu0
      %s3271 = scalar_lea.vmem %s245, 384
      %3272 = vst.msk [vmem:[%s3271] sm:$0xff] %vm1776, %v3033
      %3273 = vst.msk [vmem:[%s3271 + $0x8] sm:$0xff] %vm1776, %v3038
      %3274 = vst.msk [vmem:[%s3271 + $0x10] sm:$0xff] %vm1776, %v3043
      %3275 = vst.msk [vmem:[%s3271 + $0x18] sm:$0xff] %vm1776, %v3048
      %3276 = vst.msk [vmem:[%s3271 + $0x20] sm:$0xff] %vm1776, %v3053
      %3277 = vst.msk [vmem:[%s3271 + $0x28] sm:$0xff] %vm1776, %v3058
      %3278 = vst.msk [vmem:[%s3271 + $0x30] sm:$0xff] %vm1776, %v3063
      %3279 = vst.msk [vmem:[%s3271 + $0x38] sm:$0xff] %vm1776, %v3068
      %3280 = vst.msk [vmem:[%s3271 + $0x40] sm:$0xff] %vm1776, %v3073
      %3281 = vst.msk [vmem:[%s3271 + $0x48] sm:$0xff] %vm1776, %v3078
      %3282 = vst.msk [vmem:[%s3271 + $0x50] sm:$0xff] %vm1776, %v3083
      %3283 = vst.msk [vmem:[%s3271 + $0x58] sm:$0xff] %vm1776, %v3088
      %3284 = vst.msk [vmem:[%s3271 + $0x60] sm:$0xff] %vm1776, %v3093
      %3285 = vst.msk [vmem:[%s3271 + $0x68] sm:$0xff] %vm1776, %v3098
      %3286 = vst.msk [vmem:[%s3271 + $0x70] sm:$0xff] %vm1776, %v3103
      %3287 = vst.msk [vmem:[%s3271 + $0x78] sm:$0xff] %vm1776, %v3108
      %3288 = vst.msk [vmem:[%s3271 + $0x80] sm:$0xff] %vm1776, %v3113
      %3289 = vst.msk [vmem:[%s3271 + $0x88] sm:$0xff] %vm1776, %v3118
      %3290 = vst.msk [vmem:[%s3271 + $0x90] sm:$0xff] %vm1776, %v3123
      %3291 = vst.msk [vmem:[%s3271 + $0x98] sm:$0xff] %vm1776, %v3128
      %3292 = vst.msk [vmem:[%s3271 + $0xa0] sm:$0xff] %vm1776, %v3133
      %3293 = vst.msk [vmem:[%s3271 + $0xa8] sm:$0xff] %vm1776, %v3138
      %3294 = vst.msk [vmem:[%s3271 + $0xb0] sm:$0xff] %vm1776, %v3143
      %3295 = vst.msk [vmem:[%s3271 + $0xb8] sm:$0xff] %vm1776, %v3148
      %3296 = vst.msk [vmem:[%s3271 + $0xc0] sm:$0xff] %vm1776, %v3153
      %3297 = vst.msk [vmem:[%s3271 + $0xc8] sm:$0xff] %vm1776, %v3158
      %3298 = vst.msk [vmem:[%s3271 + $0xd0] sm:$0xff] %vm1776, %v3163
      %3299 = vst.msk [vmem:[%s3271 + $0xd8] sm:$0xff] %vm1776, %v3168
      %3300 = vst.msk [vmem:[%s3271 + $0xe0] sm:$0xff] %vm1776, %v3173
      %3301 = vst.msk [vmem:[%s3271 + $0xe8] sm:$0xff] %vm1776, %v3178
      %3302 = vst.msk [vmem:[%s3271 + $0xf0] sm:$0xff] %vm1776, %v3183
      %3303 = vst.msk [vmem:[%s3271 + $0xf8] sm:$0xff] %vm1776, %v3188
      %3304 = vst.msk [vmem:[%s3271 + $0x100] sm:$0xff] %vm1776, %v3193
      %3305 = vst.msk [vmem:[%s3271 + $0x108] sm:$0xff] %vm1776, %v3198
      %3306 = vst.msk [vmem:[%s3271 + $0x110] sm:$0xff] %vm1776, %v3203
      %3307 = vst.msk [vmem:[%s3271 + $0x118] sm:$0xff] %vm1776, %v3208
      %3308 = vst.msk [vmem:[%s3271 + $0x120] sm:$0xff] %vm1776, %v3213
      %3309 = vst.msk [vmem:[%s3271 + $0x128] sm:$0xff] %vm1776, %v3218
      %3310 = vst.msk [vmem:[%s3271 + $0x130] sm:$0xff] %vm1776, %v3223
      %3311 = vst.msk [vmem:[%s3271 + $0x138] sm:$0xff] %vm1776, %v3228
      %3312 = vst.msk [vmem:[%s3271 + $0x140] sm:$0xff] %vm1776, %v3233
      %3313 = vst.msk [vmem:[%s3271 + $0x148] sm:$0xff] %vm1776, %v3238
      %3314 = vst.msk [vmem:[%s3271 + $0x150] sm:$0xff] %vm1776, %v3243
      %3315 = vst.msk [vmem:[%s3271 + $0x158] sm:$0xff] %vm1776, %v3248
      %3316 = vst.msk [vmem:[%s3271 + $0x160] sm:$0xff] %vm1776, %v3253
      %3317 = vst.msk [vmem:[%s3271 + $0x168] sm:$0xff] %vm1776, %v3258
      %3318 = vst.msk [vmem:[%s3271 + $0x170] sm:$0xff] %vm1776, %v3263
      %3319 = vst.msk [vmem:[%s3271 + $0x178] sm:$0xff] %vm1776, %v3268
      %3320 = vmatprep.subr.mxu0 0.0
      %3321 = vmatpush1.msra.mxu0 %v3033
      %3322 = vmatprep.subr.mxu0 0.0
      %3323 = vmatpush1.msra.mxu0 %v3038
      %3324 = vmatprep.subr.mxu0 0.0
      %3325 = vmatpush1.msra.mxu0 %v3043
      %3326 = vmatprep.subr.mxu0 0.0
      %3327 = vmatpush1.msra.mxu0 %v3048
      %3328 = vmatprep.subr.mxu0 0.0
      %3329 = vmatpush1.msra.mxu0 %v3053
      %3330 = vmatprep.subr.mxu0 0.0
      %3331 = vmatpush1.msra.mxu0 %v3058
      %3332 = vmatprep.subr.mxu0 0.0
      %3333 = vmatpush1.msra.mxu0 %v3063
      %3334 = vmatprep.subr.mxu0 0.0
      %3335 = vmatpush1.msra.mxu0 %v3068
      %3336 = vmatprep.subr.mxu0 0.0
      %3337 = vmatpush1.msra.mxu0 %v3073
      %3338 = vmatprep.subr.mxu0 0.0
      %3339 = vmatpush1.msra.mxu0 %v3078
      %3340 = vmatprep.subr.mxu0 0.0
      %3341 = vmatpush1.msra.mxu0 %v3083
      %3342 = vmatprep.subr.mxu0 0.0
      %3343 = vmatpush1.msra.mxu0 %v3088
      %3344 = vmatprep.subr.mxu0 0.0
      %3345 = vmatpush1.msra.mxu0 %v3093
      %3346 = vmatprep.subr.mxu0 0.0
      %3347 = vmatpush1.msra.mxu0 %v3098
      %3348 = vmatprep.subr.mxu0 0.0
      %3349 = vmatpush1.msra.mxu0 %v3103
      %3350 = vmatprep.subr.mxu0 0.0
      %3351 = vmatpush1.msra.mxu0 %v3108
      %3352 = vmatprep.subr.mxu0 0.0
      %3353 = vmatpush1.msra.mxu0 %v3113
      %3354 = vmatprep.subr.mxu0 0.0
      %3355 = vmatpush1.msra.mxu0 %v3118
      %3356 = vmatprep.subr.mxu0 0.0
      %3357 = vmatpush1.msra.mxu0 %v3123
      %3358 = vmatprep.subr.mxu0 0.0
      %3359 = vmatpush1.msra.mxu0 %v3128
      %3360 = vmatprep.subr.mxu0 0.0
      %3361 = vmatpush1.msra.mxu0 %v3133
      %3362 = vmatprep.subr.mxu0 0.0
      %3363 = vmatpush1.msra.mxu0 %v3138
      %3364 = vmatprep.subr.mxu0 0.0
      %3365 = vmatpush1.msra.mxu0 %v3143
      %3366 = vmatprep.subr.mxu0 0.0
      %3367 = vmatpush1.msra.mxu0 %v3148
      %3368 = vmatprep.subr.mxu0 0.0
      %3369 = vmatpush1.msra.mxu0 %v3153
      %3370 = vmatprep.subr.mxu0 0.0
      %3371 = vmatpush1.msra.mxu0 %v3158
      %3372 = vmatprep.subr.mxu0 0.0
      %3373 = vmatpush1.msra.mxu0 %v3163
      %3374 = vmatprep.subr.mxu0 0.0
      %3375 = vmatpush1.msra.mxu0 %v3168
      %3376 = vmatprep.subr.mxu0 0.0
      %3377 = vmatpush1.msra.mxu0 %v3173
      %3378 = vmatprep.subr.mxu0 0.0
      %3379 = vmatpush1.msra.mxu0 %v3178
      %3380 = vmatprep.subr.mxu0 0.0
      %3381 = vmatpush1.msra.mxu0 %v3183
      %3382 = vmatprep.subr.mxu0 0.0
      %3383 = vmatpush1.msra.mxu0 %v3188
      %3384 = vmatprep.mubr.f32.mxu0 %v2120
      %3385 = vmatmul.mubr.f32.gmra.mrb[0].mxu0 %v2119
      %v3386 = vpop.f32.mrb[0].mxu0
      %v3387 = vadd.f32 0.0, %v3386
      %v3388 = vpop.f32.mrb[0].mxu0
      %3389 = vdwg.mxu0
      %3390 = vmatprep.subr.mxu0 0.0
      %3391 = vmatpush1.msra.mxu0 %v3193
      %3392 = vmatprep.subr.mxu0 0.0
      %3393 = vmatpush1.msra.mxu0 %v3198
      %3394 = vmatprep.subr.mxu0 0.0
      %3395 = vmatpush1.msra.mxu0 %v3203
      %3396 = vmatprep.subr.mxu0 0.0
      %3397 = vmatpush1.msra.mxu0 %v3208
      %3398 = vmatprep.subr.mxu0 0.0
      %3399 = vmatpush1.msra.mxu0 %v3213
      %3400 = vmatprep.subr.mxu0 0.0
      %3401 = vmatpush1.msra.mxu0 %v3218
      %3402 = vmatprep.subr.mxu0 0.0
      %3403 = vmatpush1.msra.mxu0 %v3223
      %3404 = vmatprep.subr.mxu0 0.0
      %3405 = vmatpush1.msra.mxu0 %v3228
      %3406 = vmatprep.subr.mxu0 0.0
      %3407 = vmatpush1.msra.mxu0 %v3233
      %3408 = vmatprep.subr.mxu0 0.0
      %3409 = vmatpush1.msra.mxu0 %v3238
      %3410 = vmatprep.subr.mxu0 0.0
      %3411 = vmatpush1.msra.mxu0 %v3243
      %3412 = vmatprep.subr.mxu0 0.0
      %3413 = vmatpush1.msra.mxu0 %v3248
      %3414 = vmatprep.subr.mxu0 0.0
      %3415 = vmatpush1.msra.mxu0 %v3253
      %3416 = vmatprep.subr.mxu0 0.0
      %3417 = vmatpush1.msra.mxu0 %v3258
      %3418 = vmatprep.subr.mxu0 0.0
      %3419 = vmatpush1.msra.mxu0 %v3263
      %3420 = vmatprep.subr.mxu0 0.0
      %3421 = vmatpush1.msra.mxu0 %v3268
      %3422 = vmatprep.subr.mxu0 0.0
      %3423 = vmatpush1.msra.mxu0 0.0
      %3424 = vmatprep.subr.mxu0 0.0
      %3425 = vmatpush1.msra.mxu0 0.0
      %3426 = vmatprep.subr.mxu0 0.0
      %3427 = vmatpush1.msra.mxu0 0.0
      %3428 = vmatprep.subr.mxu0 0.0
      %3429 = vmatpush1.msra.mxu0 0.0
      %3430 = vmatprep.subr.mxu0 0.0
      %3431 = vmatpush1.msra.mxu0 0.0
      %3432 = vmatprep.subr.mxu0 0.0
      %3433 = vmatpush1.msra.mxu0 0.0
      %3434 = vmatprep.subr.mxu0 0.0
      %3435 = vmatpush1.msra.mxu0 0.0
      %3436 = vmatprep.subr.mxu0 0.0
      %3437 = vmatpush1.msra.mxu0 0.0
      %3438 = vmatprep.subr.mxu0 0.0
      %3439 = vmatpush1.msra.mxu0 0.0
      %3440 = vmatprep.subr.mxu0 0.0
      %3441 = vmatpush1.msra.mxu0 0.0
      %3442 = vmatprep.subr.mxu0 0.0
      %3443 = vmatpush1.msra.mxu0 0.0
      %3444 = vmatprep.subr.mxu0 0.0
      %3445 = vmatpush1.msra.mxu0 0.0
      %3446 = vmatprep.subr.mxu0 0.0
      %3447 = vmatpush1.msra.mxu0 0.0
      %3448 = vmatprep.subr.mxu0 0.0
      %3449 = vmatpush1.msra.mxu0 0.0
      %3450 = vmatprep.subr.mxu0 0.0
      %3451 = vmatpush1.msra.mxu0 0.0
      %3452 = vmatprep.subr.mxu0 0.0
      %3453 = vmatpush1.msra.mxu0 0.0
      %3454 = vmatprep.mubr.f32.mxu0 0.0
      %3455 = vmatmul.mubr.f32.gmra.mrb[0].mxu0 %v2121
      %v3456 = vpop.f32.mrb[0].mxu0
      %v3457 = vadd.f32 %v3387, %v3456
      %v3458 = vpop.f32.mrb[0].mxu0
      %3459 = vdwg.mxu0
      %v3460 = vmul.f32 %v3033, %v3033
      %v3461 = vmul.f32 %v3038, %v3038
      %v3462 = vmul.f32 %v3043, %v3043
      %v3463 = vmul.f32 %v3048, %v3048
      %v3464 = vmul.f32 %v3053, %v3053
      %v3465 = vmul.f32 %v3058, %v3058
      %v3466 = vmul.f32 %v3063, %v3063
      %v3467 = vmul.f32 %v3068, %v3068
      %v3468 = vmul.f32 %v3073, %v3073
      %v3469 = vmul.f32 %v3078, %v3078
      %v3470 = vmul.f32 %v3083, %v3083
      %v3471 = vmul.f32 %v3088, %v3088
      %v3472 = vmul.f32 %v3093, %v3093
      %v3473 = vmul.f32 %v3098, %v3098
      %v3474 = vmul.f32 %v3103, %v3103
      %v3475 = vmul.f32 %v3108, %v3108
      %v3476 = vmul.f32 %v3113, %v3113
      %v3477 = vmul.f32 %v3118, %v3118
      %v3478 = vmul.f32 %v3123, %v3123
      %v3479 = vmul.f32 %v3128, %v3128
      %v3480 = vmul.f32 %v3133, %v3133
      %v3481 = vmul.f32 %v3138, %v3138
      %v3482 = vmul.f32 %v3143, %v3143
      %v3483 = vmul.f32 %v3148, %v3148
      %v3484 = vmul.f32 %v3153, %v3153
      %v3485 = vmul.f32 %v3158, %v3158
      %v3486 = vmul.f32 %v3163, %v3163
      %v3487 = vmul.f32 %v3168, %v3168
      %v3488 = vmul.f32 %v3173, %v3173
      %v3489 = vmul.f32 %v3178, %v3178
      %v3490 = vmul.f32 %v3183, %v3183
      %v3491 = vmul.f32 %v3188, %v3188
      %v3492 = vmul.f32 %v3193, %v3193
      %v3493 = vmul.f32 %v3198, %v3198
      %v3494 = vmul.f32 %v3203, %v3203
      %v3495 = vmul.f32 %v3208, %v3208
      %v3496 = vmul.f32 %v3213, %v3213
      %v3497 = vmul.f32 %v3218, %v3218
      %v3498 = vmul.f32 %v3223, %v3223
      %v3499 = vmul.f32 %v3228, %v3228
      %v3500 = vmul.f32 %v3233, %v3233
      %v3501 = vmul.f32 %v3238, %v3238
      %v3502 = vmul.f32 %v3243, %v3243
      %v3503 = vmul.f32 %v3248, %v3248
      %v3504 = vmul.f32 %v3253, %v3253
      %v3505 = vmul.f32 %v3258, %v3258
      %v3506 = vmul.f32 %v3263, %v3263
      %v3507 = vmul.f32 %v3268, %v3268
      %3508 = vmatprep.subr.mxu0 0.0
      %3509 = vmatpush1.msra.mxu0 %v3460
      %3510 = vmatprep.subr.mxu0 0.0
      %3511 = vmatpush1.msra.mxu0 %v3461
      %3512 = vmatprep.subr.mxu0 0.0
      %3513 = vmatpush1.msra.mxu0 %v3462
      %3514 = vmatprep.subr.mxu0 0.0
      %3515 = vmatpush1.msra.mxu0 %v3463
      %3516 = vmatprep.subr.mxu0 0.0
      %3517 = vmatpush1.msra.mxu0 %v3464
      %3518 = vmatprep.subr.mxu0 0.0
      %3519 = vmatpush1.msra.mxu0 %v3465
      %3520 = vmatprep.subr.mxu0 0.0
      %3521 = vmatpush1.msra.mxu0 %v3466
      %3522 = vmatprep.subr.mxu0 0.0
      %3523 = vmatpush1.msra.mxu0 %v3467
      %3524 = vmatprep.subr.mxu0 0.0
      %3525 = vmatpush1.msra.mxu0 %v3468
      %3526 = vmatprep.subr.mxu0 0.0
      %3527 = vmatpush1.msra.mxu0 %v3469
      %3528 = vmatprep.subr.mxu0 0.0
      %3529 = vmatpush1.msra.mxu0 %v3470
      %3530 = vmatprep.subr.mxu0 0.0
      %3531 = vmatpush1.msra.mxu0 %v3471
      %3532 = vmatprep.subr.mxu0 0.0
      %3533 = vmatpush1.msra.mxu0 %v3472
      %3534 = vmatprep.subr.mxu0 0.0
      %3535 = vmatpush1.msra.mxu0 %v3473
      %3536 = vmatprep.subr.mxu0 0.0
      %3537 = vmatpush1.msra.mxu0 %v3474
      %3538 = vmatprep.subr.mxu0 0.0
      %3539 = vmatpush1.msra.mxu0 %v3475
      %3540 = vmatprep.subr.mxu0 0.0
      %3541 = vmatpush1.msra.mxu0 %v3476
      %3542 = vmatprep.subr.mxu0 0.0
      %3543 = vmatpush1.msra.mxu0 %v3477
      %3544 = vmatprep.subr.mxu0 0.0
      %3545 = vmatpush1.msra.mxu0 %v3478
      %3546 = vmatprep.subr.mxu0 0.0
      %3547 = vmatpush1.msra.mxu0 %v3479
      %3548 = vmatprep.subr.mxu0 0.0
      %3549 = vmatpush1.msra.mxu0 %v3480
      %3550 = vmatprep.subr.mxu0 0.0
      %3551 = vmatpush1.msra.mxu0 %v3481
      %3552 = vmatprep.subr.mxu0 0.0
      %3553 = vmatpush1.msra.mxu0 %v3482
      %3554 = vmatprep.subr.mxu0 0.0
      %3555 = vmatpush1.msra.mxu0 %v3483
      %3556 = vmatprep.subr.mxu0 0.0
      %3557 = vmatpush1.msra.mxu0 %v3484
      %3558 = vmatprep.subr.mxu0 0.0
      %3559 = vmatpush1.msra.mxu0 %v3485
      %3560 = vmatprep.subr.mxu0 0.0
      %3561 = vmatpush1.msra.mxu0 %v3486
      %3562 = vmatprep.subr.mxu0 0.0
      %3563 = vmatpush1.msra.mxu0 %v3487
      %3564 = vmatprep.subr.mxu0 0.0
      %3565 = vmatpush1.msra.mxu0 %v3488
      %3566 = vmatprep.subr.mxu0 0.0
      %3567 = vmatpush1.msra.mxu0 %v3489
      %3568 = vmatprep.subr.mxu0 0.0
      %3569 = vmatpush1.msra.mxu0 %v3490
      %3570 = vmatprep.subr.mxu0 0.0
      %3571 = vmatpush1.msra.mxu0 %v3491
      %3572 = vmatprep.mubr.f32.mxu0 %v2120
      %3573 = vmatmul.mubr.f32.gmra.mrb[0].mxu0 %v2119
      %v3574 = vpop.f32.mrb[0].mxu0
      %v3575 = vadd.f32 0.0, %v3574
      %v3576 = vpop.f32.mrb[0].mxu0
      %3577 = vdwg.mxu0
      %3578 = vmatprep.subr.mxu0 0.0
      %3579 = vmatpush1.msra.mxu0 %v3492
      %3580 = vmatprep.subr.mxu0 0.0
      %3581 = vmatpush1.msra.mxu0 %v3493
      %3582 = vmatprep.subr.mxu0 0.0
      %3583 = vmatpush1.msra.mxu0 %v3494
      %3584 = vmatprep.subr.mxu0 0.0
      %3585 = vmatpush1.msra.mxu0 %v3495
      %3586 = vmatprep.subr.mxu0 0.0
      %3587 = vmatpush1.msra.mxu0 %v3496
      %3588 = vmatprep.subr.mxu0 0.0
      %3589 = vmatpush1.msra.mxu0 %v3497
      %3590 = vmatprep.subr.mxu0 0.0
      %3591 = vmatpush1.msra.mxu0 %v3498
      %3592 = vmatprep.subr.mxu0 0.0
      %3593 = vmatpush1.msra.mxu0 %v3499
      %3594 = vmatprep.subr.mxu0 0.0
      %3595 = vmatpush1.msra.mxu0 %v3500
      %3596 = vmatprep.subr.mxu0 0.0
      %3597 = vmatpush1.msra.mxu0 %v3501
      %3598 = vmatprep.subr.mxu0 0.0
      %3599 = vmatpush1.msra.mxu0 %v3502
      %3600 = vmatprep.subr.mxu0 0.0
      %3601 = vmatpush1.msra.mxu0 %v3503
      %3602 = vmatprep.subr.mxu0 0.0
      %3603 = vmatpush1.msra.mxu0 %v3504
      %3604 = vmatprep.subr.mxu0 0.0
      %3605 = vmatpush1.msra.mxu0 %v3505
      %3606 = vmatprep.subr.mxu0 0.0
      %3607 = vmatpush1.msra.mxu0 %v3506
      %3608 = vmatprep.subr.mxu0 0.0
      %3609 = vmatpush1.msra.mxu0 %v3507
      %3610 = vmatprep.subr.mxu0 0.0
      %3611 = vmatpush1.msra.mxu0 0.0
      %3612 = vmatprep.subr.mxu0 0.0
      %3613 = vmatpush1.msra.mxu0 0.0
      %3614 = vmatprep.subr.mxu0 0.0
      %3615 = vmatpush1.msra.mxu0 0.0
      %3616 = vmatprep.subr.mxu0 0.0
      %3617 = vmatpush1.msra.mxu0 0.0
      %3618 = vmatprep.subr.mxu0 0.0
      %3619 = vmatpush1.msra.mxu0 0.0
      %3620 = vmatprep.subr.mxu0 0.0
      %3621 = vmatpush1.msra.mxu0 0.0
      %3622 = vmatprep.subr.mxu0 0.0
      %3623 = vmatpush1.msra.mxu0 0.0
      %3624 = vmatprep.subr.mxu0 0.0
      %3625 = vmatpush1.msra.mxu0 0.0
      %3626 = vmatprep.subr.mxu0 0.0
      %3627 = vmatpush1.msra.mxu0 0.0
      %3628 = vmatprep.subr.mxu0 0.0
      %3629 = vmatpush1.msra.mxu0 0.0
      %3630 = vmatprep.subr.mxu0 0.0
      %3631 = vmatpush1.msra.mxu0 0.0
      %3632 = vmatprep.subr.mxu0 0.0
      %3633 = vmatpush1.msra.mxu0 0.0
      %3634 = vmatprep.subr.mxu0 0.0
      %3635 = vmatpush1.msra.mxu0 0.0
      %3636 = vmatprep.subr.mxu0 0.0
      %3637 = vmatpush1.msra.mxu0 0.0
      %3638 = vmatprep.subr.mxu0 0.0
      %3639 = vmatpush1.msra.mxu0 0.0
      %3640 = vmatprep.subr.mxu0 0.0
      %3641 = vmatpush1.msra.mxu0 0.0
      %3642 = vmatprep.mubr.f32.mxu0 0.0
      %3643 = vmatmul.mubr.f32.gmra.mrb[0].mxu0 %v2121
      %v3644 = vpop.f32.mrb[0].mxu0
      %v3645 = vadd.f32 %v3575, %v3644
      %v3646 = vpop.f32.mrb[0].mxu0
      %3647 = vdwg.mxu0
      %s3648 = scalar_lea.vmem %s1, 80
      %v3649 = vld [vmem:[%s3648] sm:$0xff]
      %v3650 = vld [vmem:[%s3648 + $0x8] sm:$0xff]
      %v3651 = vld [vmem:[%s3648 + $0x10] sm:$0xff]
      %v3652 = vld [vmem:[%s3648 + $0x18] sm:$0xff]
      %v3653 = vld [vmem:[%s3648 + $0x20] sm:$0xf]
      %v3655 = vsel %vm2272, %v3653, 0
      %3657 = vmatprep.subr.mxu0 0.0
      %3658 = vmatpush1.msra.mxu0 %v3649
      %3659 = vmatprep.subr.mxu0 0.0
      %3660 = vmatpush1.msra.mxu0 %v3650
      %3661 = vmatprep.subr.mxu0 0.0
      %3662 = vmatpush1.msra.mxu0 %v3651
      %3663 = vmatprep.subr.mxu0 0.0
      %3664 = vmatpush1.msra.mxu0 %v3652
      %3665 = vmatprep.subr.mxu0 0.0
      %3666 = vmatpush1.msra.mxu0 %v3655
      %3667 = vmatprep.subr.mxu0 0.0
      %3668 = vmatpush1.msra.mxu0 0.0
      %3669 = vmatprep.subr.mxu0 0.0
      %3670 = vmatpush1.msra.mxu0 0.0
      %3671 = vmatprep.subr.mxu0 0.0
      %3672 = vmatpush1.msra.mxu0 0.0
      %3673 = vmatprep.subr.mxu0 0.0
      %3674 = vmatpush1.msra.mxu0 0.0
      %3675 = vmatprep.subr.mxu0 0.0
      %3676 = vmatpush1.msra.mxu0 0.0
      %3677 = vmatprep.subr.mxu0 0.0
      %3678 = vmatpush1.msra.mxu0 0.0
      %3679 = vmatprep.subr.mxu0 0.0
      %3680 = vmatpush1.msra.mxu0 0.0
      %3681 = vmatprep.subr.mxu0 0.0
      %3682 = vmatpush1.msra.mxu0 0.0
      %3683 = vmatprep.subr.mxu0 0.0
      %3684 = vmatpush1.msra.mxu0 0.0
      %3685 = vmatprep.subr.mxu0 0.0
      %3686 = vmatpush1.msra.mxu0 0.0
      %3687 = vmatprep.subr.mxu0 0.0
      %3688 = vmatpush1.msra.mxu0 0.0
      %3689 = vmatprep.subr.mxu0 0.0
      %3690 = vmatpush1.msra.mxu0 0.0
      %3691 = vmatprep.subr.mxu0 0.0
      %3692 = vmatpush1.msra.mxu0 0.0
      %3693 = vmatprep.subr.mxu0 0.0
      %3694 = vmatpush1.msra.mxu0 0.0
      %3695 = vmatprep.subr.mxu0 0.0
      %3696 = vmatpush1.msra.mxu0 0.0
      %3697 = vmatprep.subr.mxu0 0.0
      %3698 = vmatpush1.msra.mxu0 0.0
      %3699 = vmatprep.subr.mxu0 0.0
      %3700 = vmatpush1.msra.mxu0 0.0
      %3701 = vmatprep.subr.mxu0 0.0
      %3702 = vmatpush1.msra.mxu0 0.0
      %3703 = vmatprep.subr.mxu0 0.0
      %3704 = vmatpush1.msra.mxu0 0.0
      %3705 = vmatprep.subr.mxu0 0.0
      %3706 = vmatpush1.msra.mxu0 0.0
      %3707 = vmatprep.subr.mxu0 0.0
      %3708 = vmatpush1.msra.mxu0 0.0
      %3709 = vmatprep.subr.mxu0 0.0
      %3710 = vmatpush1.msra.mxu0 0.0
      %3711 = vmatprep.subr.mxu0 0.0
      %3712 = vmatpush1.msra.mxu0 0.0
      %3713 = vmatprep.subr.mxu0 0.0
      %3714 = vmatpush1.msra.mxu0 0.0
      %3715 = vmatprep.subr.mxu0 0.0
      %3716 = vmatpush1.msra.mxu0 0.0
      %3717 = vmatprep.subr.mxu0 0.0
      %3718 = vmatpush1.msra.mxu0 0.0
      %3719 = vmatprep.subr.mxu0 0.0
      %3720 = vmatpush1.msra.mxu0 0.0
      %3721 = vmatprep.mubr.f32.mxu0 0.0
      %3722 = vmatmul.mubr.f32.gmra.mrb[0].mxu0 %v2129
      %v3723 = vpop.f32.mrb[0].mxu0
      %v3724 = vadd.f32 0.0, %v3723
      %v3725 = vpop.f32.mrb[0].mxu0
      %3726 = vmatprep.mubr.f32.mxu0 0.0
      %3727 = vmatmul.mubr.f32.gmra.mrb[0].mxu0 %v2132
      %v3728 = vpop.f32.mrb[0].mxu0
      %v3729 = vadd.f32 0.0, %v3728
      %v3730 = vpop.f32.mrb[0].mxu0
      %3731 = vmatprep.mubr.f32.mxu0 0.0
      %3732 = vmatmul.mubr.f32.gmra.mrb[0].mxu0 %v2135
      %v3733 = vpop.f32.mrb[0].mxu0
      %v3734 = vadd.f32 0.0, %v3733
      %v3735 = vpop.f32.mrb[0].mxu0
      %3736 = vmatprep.mubr.f32.mxu0 0.0
      %3737 = vmatmul.mubr.f32.gmra.mrb[0].mxu0 %v2138
      %v3738 = vpop.f32.mrb[0].mxu0
      %v3739 = vadd.f32 0.0, %v3738
      %v3740 = vpop.f32.mrb[0].mxu0
      %3741 = vmatprep.mubr.f32.mxu0 0.0
      %3742 = vmatmul.mubr.f32.gmra.mrb[0].mxu0 %v2141
      %v3743 = vpop.f32.mrb[0].mxu0
      %v3744 = vadd.f32 0.0, %v3743
      %v3745 = vpop.f32.mrb[0].mxu0
      %3746 = vmatprep.mubr.f32.mxu0 0.0
      %3747 = vmatmul.mubr.f32.gmra.mrb[0].mxu0 %v2144
      %v3748 = vpop.f32.mrb[0].mxu0
      %v3749 = vadd.f32 0.0, %v3748
      %v3750 = vpop.f32.mrb[0].mxu0
      %3751 = vmatprep.mubr.f32.mxu0 0.0
      %3752 = vmatmul.mubr.f32.gmra.mrb[0].mxu0 %v2147
      %v3753 = vpop.f32.mrb[0].mxu0
      %v3754 = vadd.f32 0.0, %v3753
      %v3755 = vpop.f32.mrb[0].mxu0
      %3756 = vmatprep.mubr.f32.mxu0 0.0
      %3757 = vmatmul.mubr.f32.gmra.mrb[0].mxu0 %v2150
      %v3758 = vpop.f32.mrb[0].mxu0
      %v3759 = vadd.f32 0.0, %v3758
      %v3760 = vpop.f32.mrb[0].mxu0
      %3761 = vmatprep.mubr.f32.mxu0 0.0
      %3762 = vmatmul.mubr.f32.gmra.mrb[0].mxu0 %v2153
      %v3763 = vpop.f32.mrb[0].mxu0
      %v3764 = vadd.f32 0.0, %v3763
      %v3765 = vpop.f32.mrb[0].mxu0
      %3766 = vmatprep.mubr.f32.mxu0 0.0
      %3767 = vmatmul.mubr.f32.gmra.mrb[0].mxu0 %v2156
      %v3768 = vpop.f32.mrb[0].mxu0
      %v3769 = vadd.f32 0.0, %v3768
      %v3770 = vpop.f32.mrb[0].mxu0
      %3771 = vmatprep.mubr.f32.mxu0 0.0
      %3772 = vmatmul.mubr.f32.gmra.mrb[0].mxu0 %v2159
      %v3773 = vpop.f32.mrb[0].mxu0
      %v3774 = vadd.f32 0.0, %v3773
      %v3775 = vpop.f32.mrb[0].mxu0
      %3776 = vmatprep.mubr.f32.mxu0 0.0
      %3777 = vmatmul.mubr.f32.gmra.mrb[0].mxu0 %v2162
      %v3778 = vpop.f32.mrb[0].mxu0
      %v3779 = vadd.f32 0.0, %v3778
      %v3780 = vpop.f32.mrb[0].mxu0
      %3781 = vmatprep.mubr.f32.mxu0 0.0
      %3782 = vmatmul.mubr.f32.gmra.mrb[0].mxu0 %v2165
      %v3783 = vpop.f32.mrb[0].mxu0
      %v3784 = vadd.f32 0.0, %v3783
      %v3785 = vpop.f32.mrb[0].mxu0
      %3786 = vmatprep.mubr.f32.mxu0 0.0
      %3787 = vmatmul.mubr.f32.gmra.mrb[0].mxu0 %v2168
      %v3788 = vpop.f32.mrb[0].mxu0
      %v3789 = vadd.f32 0.0, %v3788
      %v3790 = vpop.f32.mrb[0].mxu0
      %3791 = vmatprep.mubr.f32.mxu0 0.0
      %3792 = vmatmul.mubr.f32.gmra.mrb[0].mxu0 %v2171
      %v3793 = vpop.f32.mrb[0].mxu0
      %v3794 = vadd.f32 0.0, %v3793
      %v3795 = vpop.f32.mrb[0].mxu0
      %3796 = vmatprep.mubr.f32.mxu0 0.0
      %3797 = vmatmul.mubr.f32.gmra.mrb[0].mxu0 %v2174
      %v3798 = vpop.f32.mrb[0].mxu0
      %v3799 = vadd.f32 0.0, %v3798
      %v3800 = vpop.f32.mrb[0].mxu0
      %3801 = vmatprep.mubr.f32.mxu0 0.0
      %3802 = vmatmul.mubr.f32.gmra.mrb[0].mxu0 %v2177
      %v3803 = vpop.f32.mrb[0].mxu0
      %v3804 = vadd.f32 0.0, %v3803
      %v3805 = vpop.f32.mrb[0].mxu0
      %3806 = vmatprep.mubr.f32.mxu0 0.0
      %3807 = vmatmul.mubr.f32.gmra.mrb[0].mxu0 %v2180
      %v3808 = vpop.f32.mrb[0].mxu0
      %v3809 = vadd.f32 0.0, %v3808
      %v3810 = vpop.f32.mrb[0].mxu0
      %3811 = vmatprep.mubr.f32.mxu0 0.0
      %3812 = vmatmul.mubr.f32.gmra.mrb[0].mxu0 %v2183
      %v3813 = vpop.f32.mrb[0].mxu0
      %v3814 = vadd.f32 0.0, %v3813
      %v3815 = vpop.f32.mrb[0].mxu0
      %3816 = vmatprep.mubr.f32.mxu0 0.0
      %3817 = vmatmul.mubr.f32.gmra.mrb[0].mxu0 %v2186
      %v3818 = vpop.f32.mrb[0].mxu0
      %v3819 = vadd.f32 0.0, %v3818
      %v3820 = vpop.f32.mrb[0].mxu0
      %3821 = vmatprep.mubr.f32.mxu0 0.0
      %3822 = vmatmul.mubr.f32.gmra.mrb[0].mxu0 %v2189
      %v3823 = vpop.f32.mrb[0].mxu0
      %v3824 = vadd.f32 0.0, %v3823
      %v3825 = vpop.f32.mrb[0].mxu0
      %3826 = vmatprep.mubr.f32.mxu0 0.0
      %3827 = vmatmul.mubr.f32.gmra.mrb[0].mxu0 %v2192
      %v3828 = vpop.f32.mrb[0].mxu0
      %v3829 = vadd.f32 0.0, %v3828
      %v3830 = vpop.f32.mrb[0].mxu0
      %3831 = vmatprep.mubr.f32.mxu0 0.0
      %3832 = vmatmul.mubr.f32.gmra.mrb[0].mxu0 %v2195
      %v3833 = vpop.f32.mrb[0].mxu0
      %v3834 = vadd.f32 0.0, %v3833
      %v3835 = vpop.f32.mrb[0].mxu0
      %3836 = vmatprep.mubr.f32.mxu0 0.0
      %3837 = vmatmul.mubr.f32.gmra.mrb[0].mxu0 %v2198
      %v3838 = vpop.f32.mrb[0].mxu0
      %v3839 = vadd.f32 0.0, %v3838
      %v3840 = vpop.f32.mrb[0].mxu0
      %3841 = vmatprep.mubr.f32.mxu0 0.0
      %3842 = vmatmul.mubr.f32.gmra.mrb[0].mxu0 %v2201
      %v3843 = vpop.f32.mrb[0].mxu0
      %v3844 = vadd.f32 0.0, %v3843
      %v3845 = vpop.f32.mrb[0].mxu0
      %3846 = vmatprep.mubr.f32.mxu0 0.0
      %3847 = vmatmul.mubr.f32.gmra.mrb[0].mxu0 %v2204
      %v3848 = vpop.f32.mrb[0].mxu0
      %v3849 = vadd.f32 0.0, %v3848
      %v3850 = vpop.f32.mrb[0].mxu0
      %3851 = vmatprep.mubr.f32.mxu0 0.0
      %3852 = vmatmul.mubr.f32.gmra.mrb[0].mxu0 %v2207
      %v3853 = vpop.f32.mrb[0].mxu0
      %v3854 = vadd.f32 0.0, %v3853
      %v3855 = vpop.f32.mrb[0].mxu0
      %3856 = vmatprep.mubr.f32.mxu0 0.0
      %3857 = vmatmul.mubr.f32.gmra.mrb[0].mxu0 %v2210
      %v3858 = vpop.f32.mrb[0].mxu0
      %v3859 = vadd.f32 0.0, %v3858
      %v3860 = vpop.f32.mrb[0].mxu0
      %3861 = vmatprep.mubr.f32.mxu0 0.0
      %3862 = vmatmul.mubr.f32.gmra.mrb[0].mxu0 %v2213
      %v3863 = vpop.f32.mrb[0].mxu0
      %v3864 = vadd.f32 0.0, %v3863
      %v3865 = vpop.f32.mrb[0].mxu0
      %3866 = vmatprep.mubr.f32.mxu0 0.0
      %3867 = vmatmul.mubr.f32.gmra.mrb[0].mxu0 %v2216
      %v3868 = vpop.f32.mrb[0].mxu0
      %v3869 = vadd.f32 0.0, %v3868
      %v3870 = vpop.f32.mrb[0].mxu0
      %3871 = vmatprep.mubr.f32.mxu0 0.0
      %3872 = vmatmul.mubr.f32.gmra.mrb[0].mxu0 %v2219
      %v3873 = vpop.f32.mrb[0].mxu0
      %v3874 = vadd.f32 0.0, %v3873
      %v3875 = vpop.f32.mrb[0].mxu0
      %3876 = vmatprep.mubr.f32.mxu0 0.0
      %3877 = vmatmul.mubr.f32.gmra.mrb[0].mxu0 %v2222
      %v3878 = vpop.f32.mrb[0].mxu0
      %v3879 = vadd.f32 0.0, %v3878
      %v3880 = vpop.f32.mrb[0].mxu0
      %3881 = vmatprep.mubr.f32.mxu0 0.0
      %3882 = vmatmul.mubr.f32.gmra.mrb[0].mxu0 %v2225
      %v3883 = vpop.f32.mrb[0].mxu0
      %v3884 = vadd.f32 0.0, %v3883
      %v3885 = vpop.f32.mrb[0].mxu0
      %3886 = vmatprep.mubr.f32.mxu0 0.0
      %3887 = vmatmul.mubr.f32.gmra.mrb[0].mxu0 %v2228
      %v3888 = vpop.f32.mrb[0].mxu0
      %v3889 = vadd.f32 0.0, %v3888
      %v3890 = vpop.f32.mrb[0].mxu0
      %3891 = vmatprep.mubr.f32.mxu0 0.0
      %3892 = vmatmul.mubr.f32.gmra.mrb[0].mxu0 %v2231
      %v3893 = vpop.f32.mrb[0].mxu0
      %v3894 = vadd.f32 0.0, %v3893
      %v3895 = vpop.f32.mrb[0].mxu0
      %3896 = vmatprep.mubr.f32.mxu0 0.0
      %3897 = vmatmul.mubr.f32.gmra.mrb[0].mxu0 %v2234
      %v3898 = vpop.f32.mrb[0].mxu0
      %v3899 = vadd.f32 0.0, %v3898
      %v3900 = vpop.f32.mrb[0].mxu0
      %3901 = vmatprep.mubr.f32.mxu0 0.0
      %3902 = vmatmul.mubr.f32.gmra.mrb[0].mxu0 %v2237
      %v3903 = vpop.f32.mrb[0].mxu0
      %v3904 = vadd.f32 0.0, %v3903
      %v3905 = vpop.f32.mrb[0].mxu0
      %3906 = vmatprep.mubr.f32.mxu0 0.0
      %3907 = vmatmul.mubr.f32.gmra.mrb[0].mxu0 %v2240
      %v3908 = vpop.f32.mrb[0].mxu0
      %v3909 = vadd.f32 0.0, %v3908
      %v3910 = vpop.f32.mrb[0].mxu0
      %3911 = vmatprep.mubr.f32.mxu0 0.0
      %3912 = vmatmul.mubr.f32.gmra.mrb[0].mxu0 %v2243
      %v3913 = vpop.f32.mrb[0].mxu0
      %v3914 = vadd.f32 0.0, %v3913
      %v3915 = vpop.f32.mrb[0].mxu0
      %3916 = vmatprep.mubr.f32.mxu0 0.0
      %3917 = vmatmul.mubr.f32.gmra.mrb[0].mxu0 %v2246
      %v3918 = vpop.f32.mrb[0].mxu0
      %v3919 = vadd.f32 0.0, %v3918
      %v3920 = vpop.f32.mrb[0].mxu0
      %3921 = vmatprep.mubr.f32.mxu0 0.0
      %3922 = vmatmul.mubr.f32.gmra.mrb[0].mxu0 %v2249
      %v3923 = vpop.f32.mrb[0].mxu0
      %v3924 = vadd.f32 0.0, %v3923
      %v3925 = vpop.f32.mrb[0].mxu0
      %3926 = vmatprep.mubr.f32.mxu0 0.0
      %3927 = vmatmul.mubr.f32.gmra.mrb[0].mxu0 %v2252
      %v3928 = vpop.f32.mrb[0].mxu0
      %v3929 = vadd.f32 0.0, %v3928
      %v3930 = vpop.f32.mrb[0].mxu0
      %3931 = vmatprep.mubr.f32.mxu0 0.0
      %3932 = vmatmul.mubr.f32.gmra.mrb[0].mxu0 %v2255
      %v3933 = vpop.f32.mrb[0].mxu0
      %v3934 = vadd.f32 0.0, %v3933
      %v3935 = vpop.f32.mrb[0].mxu0
      %3936 = vmatprep.mubr.f32.mxu0 0.0
      %3937 = vmatmul.mubr.f32.gmra.mrb[0].mxu0 %v2258
      %v3938 = vpop.f32.mrb[0].mxu0
      %v3939 = vadd.f32 0.0, %v3938
      %v3940 = vpop.f32.mrb[0].mxu0
      %3941 = vmatprep.mubr.f32.mxu0 0.0
      %3942 = vmatmul.mubr.f32.gmra.mrb[0].mxu0 %v2261
      %v3943 = vpop.f32.mrb[0].mxu0
      %v3944 = vadd.f32 0.0, %v3943
      %v3945 = vpop.f32.mrb[0].mxu0
      %3946 = vmatprep.mubr.f32.mxu0 0.0
      %3947 = vmatmul.mubr.f32.gmra.mrb[0].mxu0 %v2264
      %v3948 = vpop.f32.mrb[0].mxu0
      %v3949 = vadd.f32 0.0, %v3948
      %v3950 = vpop.f32.mrb[0].mxu0
      %3951 = vmatprep.mubr.f32.mxu0 0.0
      %3952 = vmatmul.mubr.f32.gmra.mrb[0].mxu0 %v2267
      %v3953 = vpop.f32.mrb[0].mxu0
      %v3954 = vadd.f32 0.0, %v3953
      %v3955 = vpop.f32.mrb[0].mxu0
      %3956 = vmatprep.mubr.f32.mxu0 0.0
      %3957 = vmatmul.mubr.f32.gmra.mrb[0].mxu0 %v2270
      %v3958 = vpop.f32.mrb[0].mxu0
      %v3959 = vadd.f32 0.0, %v3958
      %v3960 = vpop.f32.mrb[0].mxu0
      %3961 = vdwg.mxu0
      %s3962 = scalar_lea.vmem %s245, 768
      %3963 = vst.msk [vmem:[%s3962] sm:$0xff] %vm1776, %v3724
      %3964 = vst.msk [vmem:[%s3962 + $0x8] sm:$0xff] %vm1776, %v3729
      %3965 = vst.msk [vmem:[%s3962 + $0x10] sm:$0xff] %vm1776, %v3734
      %3966 = vst.msk [vmem:[%s3962 + $0x18] sm:$0xff] %vm1776, %v3739
      %3967 = vst.msk [vmem:[%s3962 + $0x20] sm:$0xff] %vm1776, %v3744
      %3968 = vst.msk [vmem:[%s3962 + $0x28] sm:$0xff] %vm1776, %v3749
      %3969 = vst.msk [vmem:[%s3962 + $0x30] sm:$0xff] %vm1776, %v3754
      %3970 = vst.msk [vmem:[%s3962 + $0x38] sm:$0xff] %vm1776, %v3759
      %3971 = vst.msk [vmem:[%s3962 + $0x40] sm:$0xff] %vm1776, %v3764
      %3972 = vst.msk [vmem:[%s3962 + $0x48] sm:$0xff] %vm1776, %v3769
      %3973 = vst.msk [vmem:[%s3962 + $0x50] sm:$0xff] %vm1776, %v3774
      %3974 = vst.msk [vmem:[%s3962 + $0x58] sm:$0xff] %vm1776, %v3779
      %3975 = vst.msk [vmem:[%s3962 + $0x60] sm:$0xff] %vm1776, %v3784
      %3976 = vst.msk [vmem:[%s3962 + $0x68] sm:$0xff] %vm1776, %v3789
      %3977 = vst.msk [vmem:[%s3962 + $0x70] sm:$0xff] %vm1776, %v3794
      %3978 = vst.msk [vmem:[%s3962 + $0x78] sm:$0xff] %vm1776, %v3799
      %3979 = vst.msk [vmem:[%s3962 + $0x80] sm:$0xff] %vm1776, %v3804
      %3980 = vst.msk [vmem:[%s3962 + $0x88] sm:$0xff] %vm1776, %v3809
      %3981 = vst.msk [vmem:[%s3962 + $0x90] sm:$0xff] %vm1776, %v3814
      %3982 = vst.msk [vmem:[%s3962 + $0x98] sm:$0xff] %vm1776, %v3819
      %3983 = vst.msk [vmem:[%s3962 + $0xa0] sm:$0xff] %vm1776, %v3824
      %3984 = vst.msk [vmem:[%s3962 + $0xa8] sm:$0xff] %vm1776, %v3829
      %3985 = vst.msk [vmem:[%s3962 + $0xb0] sm:$0xff] %vm1776, %v3834
      %3986 = vst.msk [vmem:[%s3962 + $0xb8] sm:$0xff] %vm1776, %v3839
      %3987 = vst.msk [vmem:[%s3962 + $0xc0] sm:$0xff] %vm1776, %v3844
      %3988 = vst.msk [vmem:[%s3962 + $0xc8] sm:$0xff] %vm1776, %v3849
      %3989 = vst.msk [vmem:[%s3962 + $0xd0] sm:$0xff] %vm1776, %v3854
      %3990 = vst.msk [vmem:[%s3962 + $0xd8] sm:$0xff] %vm1776, %v3859
      %3991 = vst.msk [vmem:[%s3962 + $0xe0] sm:$0xff] %vm1776, %v3864
      %3992 = vst.msk [vmem:[%s3962 + $0xe8] sm:$0xff] %vm1776, %v3869
      %3993 = vst.msk [vmem:[%s3962 + $0xf0] sm:$0xff] %vm1776, %v3874
      %3994 = vst.msk [vmem:[%s3962 + $0xf8] sm:$0xff] %vm1776, %v3879
      %3995 = vst.msk [vmem:[%s3962 + $0x100] sm:$0xff] %vm1776, %v3884
      %3996 = vst.msk [vmem:[%s3962 + $0x108] sm:$0xff] %vm1776, %v3889
      %3997 = vst.msk [vmem:[%s3962 + $0x110] sm:$0xff] %vm1776, %v3894
      %3998 = vst.msk [vmem:[%s3962 + $0x118] sm:$0xff] %vm1776, %v3899
      %3999 = vst.msk [vmem:[%s3962 + $0x120] sm:$0xff] %vm1776, %v3904
      %4000 = vst.msk [vmem:[%s3962 + $0x128] sm:$0xff] %vm1776, %v3909
      %4001 = vst.msk [vmem:[%s3962 + $0x130] sm:$0xff] %vm1776, %v3914
      %4002 = vst.msk [vmem:[%s3962 + $0x138] sm:$0xff] %vm1776, %v3919
      %4003 = vst.msk [vmem:[%s3962 + $0x140] sm:$0xff] %vm1776, %v3924
      %4004 = vst.msk [vmem:[%s3962 + $0x148] sm:$0xff] %vm1776, %v3929
      %4005 = vst.msk [vmem:[%s3962 + $0x150] sm:$0xff] %vm1776, %v3934
      %4006 = vst.msk [vmem:[%s3962 + $0x158] sm:$0xff] %vm1776, %v3939
      %4007 = vst.msk [vmem:[%s3962 + $0x160] sm:$0xff] %vm1776, %v3944
      %4008 = vst.msk [vmem:[%s3962 + $0x168] sm:$0xff] %vm1776, %v3949
      %4009 = vst.msk [vmem:[%s3962 + $0x170] sm:$0xff] %vm1776, %v3954
      %4010 = vst.msk [vmem:[%s3962 + $0x178] sm:$0xff] %vm1776, %v3959
      %4011 = vmatprep.subr.mxu0 0.0
      %4012 = vmatpush1.msra.mxu0 %v3724
      %4013 = vmatprep.subr.mxu0 0.0
      %4014 = vmatpush1.msra.mxu0 %v3729
      %4015 = vmatprep.subr.mxu0 0.0
      %4016 = vmatpush1.msra.mxu0 %v3734
      %4017 = vmatprep.subr.mxu0 0.0
      %4018 = vmatpush1.msra.mxu0 %v3739
      %4019 = vmatprep.subr.mxu0 0.0
      %4020 = vmatpush1.msra.mxu0 %v3744
      %4021 = vmatprep.subr.mxu0 0.0
      %4022 = vmatpush1.msra.mxu0 %v3749
      %4023 = vmatprep.subr.mxu0 0.0
      %4024 = vmatpush1.msra.mxu0 %v3754
      %4025 = vmatprep.subr.mxu0 0.0
      %4026 = vmatpush1.msra.mxu0 %v3759
      %4027 = vmatprep.subr.mxu0 0.0
      %4028 = vmatpush1.msra.mxu0 %v3764
      %4029 = vmatprep.subr.mxu0 0.0
      %4030 = vmatpush1.msra.mxu0 %v3769
      %4031 = vmatprep.subr.mxu0 0.0
      %4032 = vmatpush1.msra.mxu0 %v3774
      %4033 = vmatprep.subr.mxu0 0.0
      %4034 = vmatpush1.msra.mxu0 %v3779
      %4035 = vmatprep.subr.mxu0 0.0
      %4036 = vmatpush1.msra.mxu0 %v3784
      %4037 = vmatprep.subr.mxu0 0.0
      %4038 = vmatpush1.msra.mxu0 %v3789
      %4039 = vmatprep.subr.mxu0 0.0
      %4040 = vmatpush1.msra.mxu0 %v3794
      %4041 = vmatprep.subr.mxu0 0.0
      %4042 = vmatpush1.msra.mxu0 %v3799
      %4043 = vmatprep.subr.mxu0 0.0
      %4044 = vmatpush1.msra.mxu0 %v3804
      %4045 = vmatprep.subr.mxu0 0.0
      %4046 = vmatpush1.msra.mxu0 %v3809
      %4047 = vmatprep.subr.mxu0 0.0
      %4048 = vmatpush1.msra.mxu0 %v3814
      %4049 = vmatprep.subr.mxu0 0.0
      %4050 = vmatpush1.msra.mxu0 %v3819
      %4051 = vmatprep.subr.mxu0 0.0
      %4052 = vmatpush1.msra.mxu0 %v3824
      %4053 = vmatprep.subr.mxu0 0.0
      %4054 = vmatpush1.msra.mxu0 %v3829
      %4055 = vmatprep.subr.mxu0 0.0
      %4056 = vmatpush1.msra.mxu0 %v3834
      %4057 = vmatprep.subr.mxu0 0.0
      %4058 = vmatpush1.msra.mxu0 %v3839
      %4059 = vmatprep.subr.mxu0 0.0
      %4060 = vmatpush1.msra.mxu0 %v3844
      %4061 = vmatprep.subr.mxu0 0.0
      %4062 = vmatpush1.msra.mxu0 %v3849
      %4063 = vmatprep.subr.mxu0 0.0
      %4064 = vmatpush1.msra.mxu0 %v3854
      %4065 = vmatprep.subr.mxu0 0.0
      %4066 = vmatpush1.msra.mxu0 %v3859
      %4067 = vmatprep.subr.mxu0 0.0
      %4068 = vmatpush1.msra.mxu0 %v3864
      %4069 = vmatprep.subr.mxu0 0.0
      %4070 = vmatpush1.msra.mxu0 %v3869
      %4071 = vmatprep.subr.mxu0 0.0
      %4072 = vmatpush1.msra.mxu0 %v3874
      %4073 = vmatprep.subr.mxu0 0.0
      %4074 = vmatpush1.msra.mxu0 %v3879
      %4075 = vmatprep.mubr.f32.mxu0 %v2120
      %4076 = vmatmul.mubr.f32.gmra.mrb[0].mxu0 %v2119
      %v4077 = vpop.f32.mrb[0].mxu0
      %v4078 = vadd.f32 0.0, %v4077
      %v4079 = vpop.f32.mrb[0].mxu0
      %4080 = vdwg.mxu0
      %4081 = vmatprep.subr.mxu0 0.0
      %4082 = vmatpush1.msra.mxu0 %v3884
      %4083 = vmatprep.subr.mxu0 0.0
      %4084 = vmatpush1.msra.mxu0 %v3889
      %4085 = vmatprep.subr.mxu0 0.0
      %4086 = vmatpush1.msra.mxu0 %v3894
      %4087 = vmatprep.subr.mxu0 0.0
      %4088 = vmatpush1.msra.mxu0 %v3899
      %4089 = vmatprep.subr.mxu0 0.0
      %4090 = vmatpush1.msra.mxu0 %v3904
      %4091 = vmatprep.subr.mxu0 0.0
      %4092 = vmatpush1.msra.mxu0 %v3909
      %4093 = vmatprep.subr.mxu0 0.0
      %4094 = vmatpush1.msra.mxu0 %v3914
      %4095 = vmatprep.subr.mxu0 0.0
      %4096 = vmatpush1.msra.mxu0 %v3919
      %4097 = vmatprep.subr.mxu0 0.0
      %4098 = vmatpush1.msra.mxu0 %v3924
      %4099 = vmatprep.subr.mxu0 0.0
      %4100 = vmatpush1.msra.mxu0 %v3929
      %4101 = vmatprep.subr.mxu0 0.0
      %4102 = vmatpush1.msra.mxu0 %v3934
      %4103 = vmatprep.subr.mxu0 0.0
      %4104 = vmatpush1.msra.mxu0 %v3939
      %4105 = vmatprep.subr.mxu0 0.0
      %4106 = vmatpush1.msra.mxu0 %v3944
      %4107 = vmatprep.subr.mxu0 0.0
      %4108 = vmatpush1.msra.mxu0 %v3949
      %4109 = vmatprep.subr.mxu0 0.0
      %4110 = vmatpush1.msra.mxu0 %v3954
      %4111 = vmatprep.subr.mxu0 0.0
      %4112 = vmatpush1.msra.mxu0 %v3959
      %4113 = vmatprep.subr.mxu0 0.0
      %4114 = vmatpush1.msra.mxu0 0.0
      %4115 = vmatprep.subr.mxu0 0.0
      %4116 = vmatpush1.msra.mxu0 0.0
      %4117 = vmatprep.subr.mxu0 0.0
      %4118 = vmatpush1.msra.mxu0 0.0
      %4119 = vmatprep.subr.mxu0 0.0
      %4120 = vmatpush1.msra.mxu0 0.0
      %4121 = vmatprep.subr.mxu0 0.0
      %4122 = vmatpush1.msra.mxu0 0.0
      %4123 = vmatprep.subr.mxu0 0.0
      %4124 = vmatpush1.msra.mxu0 0.0
      %4125 = vmatprep.subr.mxu0 0.0
      %4126 = vmatpush1.msra.mxu0 0.0
      %4127 = vmatprep.subr.mxu0 0.0
      %4128 = vmatpush1.msra.mxu0 0.0
      %4129 = vmatprep.subr.mxu0 0.0
      %4130 = vmatpush1.msra.mxu0 0.0
      %4131 = vmatprep.subr.mxu0 0.0
      %4132 = vmatpush1.msra.mxu0 0.0
      %4133 = vmatprep.subr.mxu0 0.0
      %4134 = vmatpush1.msra.mxu0 0.0
      %4135 = vmatprep.subr.mxu0 0.0
      %4136 = vmatpush1.msra.mxu0 0.0
      %4137 = vmatprep.subr.mxu0 0.0
      %4138 = vmatpush1.msra.mxu0 0.0
      %4139 = vmatprep.subr.mxu0 0.0
      %4140 = vmatpush1.msra.mxu0 0.0
      %4141 = vmatprep.subr.mxu0 0.0
      %4142 = vmatpush1.msra.mxu0 0.0
      %4143 = vmatprep.subr.mxu0 0.0
      %4144 = vmatpush1.msra.mxu0 0.0
      %4145 = vmatprep.mubr.f32.mxu0 0.0
      %4146 = vmatmul.mubr.f32.gmra.mrb[0].mxu0 %v2121
      %v4147 = vpop.f32.mrb[0].mxu0
      %v4148 = vadd.f32 %v4078, %v4147
      %v4149 = vpop.f32.mrb[0].mxu0
      %4150 = vdwg.mxu0
      %v4151 = vmul.f32 %v3724, %v3724
      %v4152 = vmul.f32 %v3729, %v3729
      %v4153 = vmul.f32 %v3734, %v3734
      %v4154 = vmul.f32 %v3739, %v3739
      %v4155 = vmul.f32 %v3744, %v3744
      %v4156 = vmul.f32 %v3749, %v3749
      %v4157 = vmul.f32 %v3754, %v3754
      %v4158 = vmul.f32 %v3759, %v3759
      %v4159 = vmul.f32 %v3764, %v3764
      %v4160 = vmul.f32 %v3769, %v3769
      %v4161 = vmul.f32 %v3774, %v3774
      %v4162 = vmul.f32 %v3779, %v3779
      %v4163 = vmul.f32 %v3784, %v3784
      %v4164 = vmul.f32 %v3789, %v3789
      %v4165 = vmul.f32 %v3794, %v3794
      %v4166 = vmul.f32 %v3799, %v3799
      %v4167 = vmul.f32 %v3804, %v3804
      %v4168 = vmul.f32 %v3809, %v3809
      %v4169 = vmul.f32 %v3814, %v3814
      %v4170 = vmul.f32 %v3819, %v3819
      %v4171 = vmul.f32 %v3824, %v3824
      %v4172 = vmul.f32 %v3829, %v3829
      %v4173 = vmul.f32 %v3834, %v3834
      %v4174 = vmul.f32 %v3839, %v3839
      %v4175 = vmul.f32 %v3844, %v3844
      %v4176 = vmul.f32 %v3849, %v3849
      %v4177 = vmul.f32 %v3854, %v3854
      %v4178 = vmul.f32 %v3859, %v3859
      %v4179 = vmul.f32 %v3864, %v3864
      %v4180 = vmul.f32 %v3869, %v3869
      %v4181 = vmul.f32 %v3874, %v3874
      %v4182 = vmul.f32 %v3879, %v3879
      %v4183 = vmul.f32 %v3884, %v3884
      %v4184 = vmul.f32 %v3889, %v3889
      %v4185 = vmul.f32 %v3894, %v3894
      %v4186 = vmul.f32 %v3899, %v3899
      %v4187 = vmul.f32 %v3904, %v3904
      %v4188 = vmul.f32 %v3909, %v3909
      %v4189 = vmul.f32 %v3914, %v3914
      %v4190 = vmul.f32 %v3919, %v3919
      %v4191 = vmul.f32 %v3924, %v3924
      %v4192 = vmul.f32 %v3929, %v3929
      %v4193 = vmul.f32 %v3934, %v3934
      %v4194 = vmul.f32 %v3939, %v3939
      %v4195 = vmul.f32 %v3944, %v3944
      %v4196 = vmul.f32 %v3949, %v3949
      %v4197 = vmul.f32 %v3954, %v3954
      %v4198 = vmul.f32 %v3959, %v3959
      %4199 = vmatprep.subr.mxu0 0.0
      %4200 = vmatpush1.msra.mxu0 %v4151
      %4201 = vmatprep.subr.mxu0 0.0
      %4202 = vmatpush1.msra.mxu0 %v4152
      %4203 = vmatprep.subr.mxu0 0.0
      %4204 = vmatpush1.msra.mxu0 %v4153
      %4205 = vmatprep.subr.mxu0 0.0
      %4206 = vmatpush1.msra.mxu0 %v4154
      %4207 = vmatprep.subr.mxu0 0.0
      %4208 = vmatpush1.msra.mxu0 %v4155
      %4209 = vmatprep.subr.mxu0 0.0
      %4210 = vmatpush1.msra.mxu0 %v4156
      %4211 = vmatprep.subr.mxu0 0.0
      %4212 = vmatpush1.msra.mxu0 %v4157
      %4213 = vmatprep.subr.mxu0 0.0
      %4214 = vmatpush1.msra.mxu0 %v4158
      %4215 = vmatprep.subr.mxu0 0.0
      %4216 = vmatpush1.msra.mxu0 %v4159
      %4217 = vmatprep.subr.mxu0 0.0
      %4218 = vmatpush1.msra.mxu0 %v4160
      %4219 = vmatprep.subr.mxu0 0.0
      %4220 = vmatpush1.msra.mxu0 %v4161
      %4221 = vmatprep.subr.mxu0 0.0
      %4222 = vmatpush1.msra.mxu0 %v4162
      %4223 = vmatprep.subr.mxu0 0.0
      %4224 = vmatpush1.msra.mxu0 %v4163
      %4225 = vmatprep.subr.mxu0 0.0
      %4226 = vmatpush1.msra.mxu0 %v4164
      %4227 = vmatprep.subr.mxu0 0.0
      %4228 = vmatpush1.msra.mxu0 %v4165
      %4229 = vmatprep.subr.mxu0 0.0
      %4230 = vmatpush1.msra.mxu0 %v4166
      %4231 = vmatprep.subr.mxu0 0.0
      %4232 = vmatpush1.msra.mxu0 %v4167
      %4233 = vmatprep.subr.mxu0 0.0
      %4234 = vmatpush1.msra.mxu0 %v4168
      %4235 = vmatprep.subr.mxu0 0.0
      %4236 = vmatpush1.msra.mxu0 %v4169
      %4237 = vmatprep.subr.mxu0 0.0
      %4238 = vmatpush1.msra.mxu0 %v4170
      %4239 = vmatprep.subr.mxu0 0.0
      %4240 = vmatpush1.msra.mxu0 %v4171
      %4241 = vmatprep.subr.mxu0 0.0
      %4242 = vmatpush1.msra.mxu0 %v4172
      %4243 = vmatprep.subr.mxu0 0.0
      %4244 = vmatpush1.msra.mxu0 %v4173
      %4245 = vmatprep.subr.mxu0 0.0
      %4246 = vmatpush1.msra.mxu0 %v4174
      %4247 = vmatprep.subr.mxu0 0.0
      %4248 = vmatpush1.msra.mxu0 %v4175
      %4249 = vmatprep.subr.mxu0 0.0
      %4250 = vmatpush1.msra.mxu0 %v4176
      %4251 = vmatprep.subr.mxu0 0.0
      %4252 = vmatpush1.msra.mxu0 %v4177
      %4253 = vmatprep.subr.mxu0 0.0
      %4254 = vmatpush1.msra.mxu0 %v4178
      %4255 = vmatprep.subr.mxu0 0.0
      %4256 = vmatpush1.msra.mxu0 %v4179
      %4257 = vmatprep.subr.mxu0 0.0
      %4258 = vmatpush1.msra.mxu0 %v4180
      %4259 = vmatprep.subr.mxu0 0.0
      %4260 = vmatpush1.msra.mxu0 %v4181
      %4261 = vmatprep.subr.mxu0 0.0
      %4262 = vmatpush1.msra.mxu0 %v4182
      %4263 = vmatprep.mubr.f32.mxu0 %v2120
      %4264 = vmatmul.mubr.f32.gmra.mrb[0].mxu0 %v2119
      %v4265 = vpop.f32.mrb[0].mxu0
      %v4266 = vadd.f32 0.0, %v4265
      %v4267 = vpop.f32.mrb[0].mxu0
      %4268 = vdwg.mxu0
      %4269 = vmatprep.subr.mxu0 0.0
      %4270 = vmatpush1.msra.mxu0 %v4183
      %4271 = vmatprep.subr.mxu0 0.0
      %4272 = vmatpush1.msra.mxu0 %v4184
      %4273 = vmatprep.subr.mxu0 0.0
      %4274 = vmatpush1.msra.mxu0 %v4185
      %4275 = vmatprep.subr.mxu0 0.0
      %4276 = vmatpush1.msra.mxu0 %v4186
      %4277 = vmatprep.subr.mxu0 0.0
      %4278 = vmatpush1.msra.mxu0 %v4187
      %4279 = vmatprep.subr.mxu0 0.0
      %4280 = vmatpush1.msra.mxu0 %v4188
      %4281 = vmatprep.subr.mxu0 0.0
      %4282 = vmatpush1.msra.mxu0 %v4189
      %4283 = vmatprep.subr.mxu0 0.0
      %4284 = vmatpush1.msra.mxu0 %v4190
      %4285 = vmatprep.subr.mxu0 0.0
      %4286 = vmatpush1.msra.mxu0 %v4191
      %4287 = vmatprep.subr.mxu0 0.0
      %4288 = vmatpush1.msra.mxu0 %v4192
      %4289 = vmatprep.subr.mxu0 0.0
      %4290 = vmatpush1.msra.mxu0 %v4193
      %4291 = vmatprep.subr.mxu0 0.0
      %4292 = vmatpush1.msra.mxu0 %v4194
      %4293 = vmatprep.subr.mxu0 0.0
      %4294 = vmatpush1.msra.mxu0 %v4195
      %4295 = vmatprep.subr.mxu0 0.0
      %4296 = vmatpush1.msra.mxu0 %v4196
      %4297 = vmatprep.subr.mxu0 0.0
      %4298 = vmatpush1.msra.mxu0 %v4197
      %4299 = vmatprep.subr.mxu0 0.0
      %4300 = vmatpush1.msra.mxu0 %v4198
      %4301 = vmatprep.subr.mxu0 0.0
      %4302 = vmatpush1.msra.mxu0 0.0
      %4303 = vmatprep.subr.mxu0 0.0
      %4304 = vmatpush1.msra.mxu0 0.0
      %4305 = vmatprep.subr.mxu0 0.0
      %4306 = vmatpush1.msra.mxu0 0.0
      %4307 = vmatprep.subr.mxu0 0.0
      %4308 = vmatpush1.msra.mxu0 0.0
      %4309 = vmatprep.subr.mxu0 0.0
      %4310 = vmatpush1.msra.mxu0 0.0
      %4311 = vmatprep.subr.mxu0 0.0
      %4312 = vmatpush1.msra.mxu0 0.0
      %4313 = vmatprep.subr.mxu0 0.0
      %4314 = vmatpush1.msra.mxu0 0.0
      %4315 = vmatprep.subr.mxu0 0.0
      %4316 = vmatpush1.msra.mxu0 0.0
      %4317 = vmatprep.subr.mxu0 0.0
      %4318 = vmatpush1.msra.mxu0 0.0
      %4319 = vmatprep.subr.mxu0 0.0
      %4320 = vmatpush1.msra.mxu0 0.0
      %4321 = vmatprep.subr.mxu0 0.0
      %4322 = vmatpush1.msra.mxu0 0.0
      %4323 = vmatprep.subr.mxu0 0.0
      %4324 = vmatpush1.msra.mxu0 0.0
      %4325 = vmatprep.subr.mxu0 0.0
      %4326 = vmatpush1.msra.mxu0 0.0
      %4327 = vmatprep.subr.mxu0 0.0
      %4328 = vmatpush1.msra.mxu0 0.0
      %4329 = vmatprep.subr.mxu0 0.0
      %4330 = vmatpush1.msra.mxu0 0.0
      %4331 = vmatprep.subr.mxu0 0.0
      %4332 = vmatpush1.msra.mxu0 0.0
      %4333 = vmatprep.mubr.f32.mxu0 0.0
      %4334 = vmatmul.mubr.f32.gmra.mrb[0].mxu0 %v2121
      %v4335 = vpop.f32.mrb[0].mxu0
      %v4336 = vadd.f32 %v4266, %v4335
      %v4337 = vpop.f32.mrb[0].mxu0
      %4338 = vdwg.mxu0
      %v4340 = vrot.slane %v3457, 7
      %v4343 = vrot.slane %v4148, 6
      %v4346 = vrot.slane %v2954, 5
      %v4349 = vrot.slane %v3645, 4
      %v4352 = vrot.slane %v4336, 3
      %vm4354 = vcmask 1040384
      %v4355 = vsel %vm4354, %v2766, %v4340
      %vm4356 = vcmask 1041408
      %v4357 = vsel %vm4356, %v4355, %v4343
      %vm4358 = vcmask 1042432
      %v4359 = vsel %vm4358, %v4357, %v4346
      %v4360 = vsel %vm2272, %v4359, %v4349
      %vm4361 = vcmask 1044480
      %v4362 = vsel %vm4361, %v4360, %v4352
      %vm4363 = vcmask 62464
      %4364 = vst.msk [vmem:[%s253] sm:$0x3f] %vm4363, %v4362
      %s4365 = smul.u32 48, %s21
      %p4366 = scmp.lt.s32.totalorder %s20, 1
      %s4367 = scalar_select %p4366, %s20, 1
      %p4368 = scmp.lt.s32.totalorder %s4365, 47
      %s4369 = scalar_select %p4368, %s4365, 47
      %s4370 = smul.addr %s4367, 144
      %s4371 = sadd.s32 %s4369, %s4370
      %s4372 = smul.addr %s4371, 8
      %s4373 = scalar_lea.vmem %s3, %s4372
      %p4374 = scmp.lt.s32.totalorder %s20, 1
      %s4375 = scalar_select %p4374, %s20, 1
      %p4376 = scmp.lt.s32.totalorder %s21, 0
      %s4377 = scalar_select %p4376, %s21, 0
      %s4378 = sadd.s32 %s4377, %s4375
      %s4379 = smul.addr %s4378, 8
      %s4380 = scalar_lea.vmem %s4, %s4379
      // Predicated region
      $region33: #{acblock_forward.2} parent=31 // pred_check
        %p4381 = pneg %p118
      $region34: #{acblock_forward.2} parent=31 // pred_check_branch
        %4383 = sbr.rel (%p4381) target = $region36
      $region35: #{acblock_forward.2} parent=31 // pred_region
        %s4384 = smul.u32 48, %s21
      $region36: #{acblock_forward.2} parent=31 // pred_fallthru
        _
      // Predicated region
      $region37: #{acblock_forward.2} parent=31 // pred_check
        %p4385 = pneg %p146
      $region38: #{acblock_forward.2} parent=31 // pred_check_branch
        %4387 = sbr.rel (%p4385) target = $region40
      $region39: #{acblock_forward.2} parent=31 // pred_region
        _
      $region40: #{acblock_forward.2} parent=31 // pred_fallthru
        _
    $region32: #{acblock_forward.2} parent=5 // pred_fallthru
      _
    %p4388 = scmp.le.s32.totalorder 2, %s11
    // Predicated region
    $region41: #{acblock_forward.2} parent=5 // pred_check
      %p4389 = pneg %p4388
    $region42: #{acblock_forward.2} parent=5 // pred_check_branch
      %4391 = sbr.rel (%p4389) target = $region44
    $region43: #{acblock_forward.2} parent=5 // pred_region
      %s4392 = ssub.s32 %s11, 2
      // Predicated region
      $region45: #{acblock_forward.2} parent=43 // pred_check
        %p4393 = pneg %p124
      $region46: #{acblock_forward.2} parent=43 // pred_check_branch
        %4395 = sbr.rel (%p4393) target = $region48
      $region47: #{acblock_forward.2} parent=43 // pred_region
        %s4396 = smul.u32 48, %s23
        %p4397 = scmp.lt.s32.totalorder %s22, 1
        %s4398 = scalar_select %p4397, %s22, 1
        %p4399 = scmp.lt.s32.totalorder %s4396, 47
        %s4400 = scalar_select %p4399, %s4396, 47
        %s4401 = smul.addr %s4398, 144
        %s4402 = sadd.s32 %s4400, %s4401
        %s4403 = smul.addr %s4402, 8
        %s4404 = scalar_lea.vmem %s3, %s4403
      $region48: #{acblock_forward.2} parent=43 // pred_fallthru
        _
      // Predicated region
      $region49: #{acblock_forward.2} parent=43 // pred_check
        %p4405 = pneg %p152
      $region50: #{acblock_forward.2} parent=43 // pred_check_branch
        %4407 = sbr.rel (%p4405) target = $region52
      $region51: #{acblock_forward.2} parent=43 // pred_region
        %p4408 = scmp.lt.s32.totalorder %s22, 1
        %s4409 = scalar_select %p4408, %s22, 1
        %p4410 = scmp.lt.s32.totalorder %s23, 0
        %s4411 = scalar_select %p4410, %s23, 0
        %s4412 = sadd.s32 %s4411, %s4409
        %s4413 = smul.addr %s4412, 8
        %s4414 = scalar_lea.vmem %s4, %s4413
      $region52: #{acblock_forward.2} parent=43 // pred_fallthru
        _
    $region44: #{acblock_forward.2} parent=5 // pred_fallthru
      _
  $region6: #{acblock_forward.2} parent=0 // loop_footer
    %s15 = sadd.s32 1, %s11
  $region7: #{acblock_forward.2} parent=0 // loop_footer_branch
    %10 = sbr.rel target = $region3
  $region8: #{acblock_forward.2} parent=0 // loop_exit
    _

</llo_original>
